<compile_context>
chip_gen: v5e
topology: v5e:2x2
jax: 0.10.0
libtpu: 0.0.40
codegen_flags: <defaults>
</compile_context>

<pallas_src>
import math

import numpy as np
import jax
import jax.numpy as jnp
from jax.experimental import pallas as pl
from jax.experimental.pallas import tpu as pltpu

# ---------------- configuration (small, consistent with the module) ----------
B = 2            # batch
C = 32           # dim
NUM_HEADS = 4
HD = C // NUM_HEADS
H = W = 8        # spatial
N = H * W        # tokens
WS = 4           # window size (ws)
S = WS * WS      # tokens per window
HG, WG = H // WS, W // WS
GROUPS = HG * WG
BG = B * GROUPS  # windows across the whole batch
BN = B * N       # all tokens across the batch
MLP_RATIO = 4.0
HID = int(C * MLP_RATIO)
SCALE = HD ** (-0.5)
LN_EPS = 1e-5
INV_SQRT2 = 1.0 / math.sqrt(2.0)


# ---------------- fused CMT block kernel --------------------------------------
def _layernorm_k(x, g, b):
    # biased variance, matching PyTorch nn.LayerNorm
    m = jnp.mean(x, axis=-1, keepdims=True)
    v = jnp.mean((x - m) ** 2, axis=-1, keepdims=True)
    return (x - m) * jax.lax.rsqrt(v + LN_EPS) * g + b


def _fused_block_kernel(x_ref, pf_ref, pb_ref, wqkv_ref, wproj_ref,
                        w1_ref, w2_ref, nb_ref, o_ref):
    x = x_ref[...]                              # (BN, C) f32, natural token order

    nb = nb_ref[...]                            # (8, HID) packed LN gains / biases
    g1, b1 = nb[0:1, :C], nb[1:2, :C]
    g2, b2 = nb[2:3, :C], nb[3:4, :C]
    bproj, bb2 = nb[4:5, :C], nb[5:6, :C]
    bb1 = nb[6:7, :]                            # (1, HID)

    # ---- LayerNorm1 (per token, natural order).
    xn = _layernorm_k(x, g1, b1).astype(jnp.bfloat16)

    # ---- natural -> window-order row permutation, done on the MXU with an
    #      exact 0/1 matrix (former wrapper-side transpose, now in-kernel).
    xn_w = jnp.dot(pf_ref[...], xn, preferred_element_type=jnp.float32)   # (BN, C)

    # ---- QKV projection over all tokens (softmax scale pre-folded into q cols).
    qkv = jnp.dot(xn_w.astype(jnp.bfloat16), wqkv_ref[...],
                  preferred_element_type=jnp.float32)                     # (BN, 3C)
    qkv_g = qkv.reshape(BG, S, 3 * C)           # contiguous 16-row windows

    # ---- merged-head attention: heads stacked into the einsum batch dim.
    q = jnp.stack([qkv_g[:, :, h * HD:(h + 1) * HD]
                   for h in range(NUM_HEADS)], 0).reshape(NUM_HEADS * BG, S, HD)
    k = jnp.stack([qkv_g[:, :, C + h * HD:C + (h + 1) * HD]
                   for h in range(NUM_HEADS)], 0).reshape(NUM_HEADS * BG, S, HD)
    v = jnp.stack([qkv_g[:, :, 2 * C + h * HD:2 * C + (h + 1) * HD]
                   for h in range(NUM_HEADS)], 0).reshape(NUM_HEADS * BG, S, HD)
    q = q.astype(jnp.bfloat16)
    k = k.astype(jnp.bfloat16)
    v = v.astype(jnp.bfloat16)

    a = jnp.einsum('bqd,bkd->bqk', q, k,
                   preferred_element_type=jnp.float32)                    # (NH*BG, S, S)
    a = a - jnp.max(a, axis=-1, keepdims=True)
    p = jnp.exp(a)
    p = p * pl.reciprocal(jnp.sum(p, axis=-1, keepdims=True), approx=True)
    o = jnp.einsum('bqk,bkd->bqd', p.astype(jnp.bfloat16), v,
                   preferred_element_type=jnp.float32)                    # (NH*BG, S, HD)

    o4 = o.reshape(NUM_HEADS, BG, S, HD)
    o_att_w = jnp.concatenate(
        [o4[h].reshape(BN, HD) for h in range(NUM_HEADS)], axis=-1)       # (BN, C) window order

    # ---- window -> natural order (exact 0/1 MXU matmul), projection, residual 1.
    o_att = jnp.dot(pb_ref[...], o_att_w.astype(jnp.bfloat16),
                    preferred_element_type=jnp.float32)                   # (BN, C)
    x1 = x + jnp.dot(o_att.astype(jnp.bfloat16), wproj_ref[...],
                     preferred_element_type=jnp.float32) + bproj

    # ---- LayerNorm2 + MLP (exact erf GELU) + residual 2.
    xn2 = _layernorm_k(x1, g2, b2)
    hdn = jnp.dot(xn2.astype(jnp.bfloat16), w1_ref[...],
                  preferred_element_type=jnp.float32) + bb1               # (BN, HID)
    hdn = 0.5 * hdn * (1.0 + jax.lax.erf(hdn * INV_SQRT2))
    y2 = jnp.dot(hdn.astype(jnp.bfloat16), w2_ref[...],
                 preferred_element_type=jnp.float32) + bb2

    # TODO(synk): present the store through a lane-dense (32, 128) view once a
    # cheap in-kernel (128,32)<->(32,128) repack is worth it; at 16 KiB the
    # masked-store cost is negligible versus the relayout it would require.
    o_ref[...] = (x1 + y2).astype(o_ref.dtype)


def _spec2(shape):
    return pl.BlockSpec(shape, lambda i: (0, 0))


def _run_fused_block(x2d, kp):
    ce = pl.CostEstimate(flops=6_500_000, transcendentals=25_000,
                         bytes_accessed=127_000)
    return pl.pallas_call(
        _fused_block_kernel,
        out_shape=jax.ShapeDtypeStruct((BN, C), jnp.float32),
        grid_spec=pltpu.PrefetchScalarGridSpec(
            num_scalar_prefetch=0,
            grid=(1,),                       # single step: no per-step overhead
            in_specs=[
                _spec2((BN, C)),             # x (natural order)
                _spec2((BN, BN)),            # forward permutation (natural->window)
                _spec2((BN, BN)),            # backward permutation (window->natural)
                _spec2((C, 3 * C)),          # wqkv (scale folded into q cols, bf16)
                _spec2((C, C)),              # wproj
                _spec2((C, HID)),            # w1
                _spec2((HID, C)),            # w2
                _spec2((8, HID)),            # packed LN gains / biases (f32)
            ],
            out_specs=_spec2((BN, C)),
        ),
        compiler_params=pltpu.CompilerParams(
            dimension_semantics=("arbitrary",)),
        cost_estimate=ce,
    )(x2d, kp["pf"], kp["pb"], kp["wqkv"], kp["wproj"], kp["w1"], kp["w2"],
      kp["nb"])


# ---------------- CMTBlock forward --------------------------------------------
@jax.jit
def cmt_block_forward(x, kparams):
    # The whole block (both residuals, window grouping included) runs inside a
    # single pallas_call; the only wrapper ops are free contiguous reshapes.
    out2d = _run_fused_block(x.reshape(BN, C), kparams)
    return out2d.reshape(B, N, C)


# ---------------- one-time parameter preprocessing -----------------------------
def _window_perm_matrix():
    # xw[dst] = x[src]: block-diagonal per batch element, one 1 per row.
    idx = np.empty((BN,), dtype=np.int64)
    for b in range(B):
        for gy in range(HG):
            for gx in range(WG):
                for i in range(WS):
                    for j in range(WS):
                        dst = b * N + (gy * WG + gx) * S + i * WS + j
                        src = b * N + (gy * WS + i) * W + gx * WS + j
                        idx[dst] = src
    pf = np.zeros((BN, BN), dtype=np.float32)
    pf[np.arange(BN), idx] = 1.0
    return pf


def prepare_params(p):
    pf = jnp.asarray(_window_perm_matrix())
    # fold the softmax scale into the q-columns of the QKV weight (free).
    wqkv = jnp.concatenate([p["wqkv"][:, :C] * SCALE, p["wqkv"][:, C:]], axis=1)
    nb = jnp.zeros((8, HID), jnp.float32)
    nb = nb.at[0, :C].set(p["g1"][0]).at[1, :C].set(p["b1"][0])
    nb = nb.at[2, :C].set(p["g2"][0]).at[3, :C].set(p["b2"][0])
    nb = nb.at[4, :C].set(p["bproj"][0]).at[5, :C].set(p["bb2"][0])
    nb = nb.at[6, :].set(p["bb1"][0])
    return {
        "pf": pf.astype(jnp.bfloat16),        # 0/1 entries: exact in bf16
        "pb": pf.T.astype(jnp.bfloat16),
        "wqkv": wqkv.astype(jnp.bfloat16),
        "wproj": p["wproj"].astype(jnp.bfloat16),
        "w1": p["w1"].astype(jnp.bfloat16),
        "w2": p["w2"].astype(jnp.bfloat16),
        "nb": nb,
    }


# ---------------- pure-JAX reference (mirrors the PyTorch module) -------------
def _layernorm(x, g, b):
    m = jnp.mean(x, axis=-1, keepdims=True)
    v = jnp.mean((x - m) ** 2, axis=-1, keepdims=True)
    return (x - m) / jnp.sqrt(v + LN_EPS) * g + b


def reference_forward(x, p):
    bg = B * GROUPS
    xn = _layernorm(x, p["g1"][0], p["b1"][0])
    xw = xn.reshape(B, HG, WS, WG, WS, C).transpose(0, 1, 3, 2, 4, 5)
    xw = xw.reshape(bg, S, C)
    qkv = xw @ p["wqkv"]                                   # (bg, S, 3C)
    q, k, v = jnp.split(qkv, 3, axis=-1)
    q = q.reshape(bg, S, NUM_HEADS, HD).transpose(0, 2, 1, 3)
    k = k.reshape(bg, S, NUM_HEADS, HD).transpose(0, 2, 1, 3)
    v = v.reshape(bg, S, NUM_HEADS, HD).transpose(0, 2, 1, 3)
    a = jnp.einsum("ghqd,ghkd->ghqk", q, k) * SCALE
    a = jax.nn.softmax(a, axis=-1)
    o = jnp.einsum("ghqk,ghkd->ghqd", a, v).transpose(0, 2, 1, 3).reshape(bg, S, C)
    o = o.reshape(B, HG, WG, WS, WS, C).transpose(0, 1, 3, 2, 4, 5).reshape(B, N, C)
    o = o @ p["wproj"] + p["bproj"][0]
    x1 = x + o
    xn2 = _layernorm(x1, p["g2"][0], p["b2"][0])
    h = xn2 @ p["w1"] + p["bb1"][0]
    h = 0.5 * h * (1.0 + jax.lax.erf(h / math.sqrt(2.0)))
    return x1 + (h @ p["w2"] + p["bb2"][0])


# ---------------- deterministic parameter init --------------------------------
def make_params(key):
    ks = jax.random.split(key, 6)
    std = 0.02
    return {
        "g1": jnp.ones((1, C), jnp.float32),
        "b1": jnp.zeros((1, C), jnp.float32),
        "wqkv": std * jax.random.normal(ks[0], (C, 3 * C), jnp.float32),
        "wproj": std * jax.random.normal(ks[1], (C, C), jnp.float32),
        "bproj": std * jax.random.normal(ks[2], (1, C), jnp.float32),
        "g2": jnp.ones((1, C), jnp.float32),
        "b2": jnp.zeros((1, C), jnp.float32),
        "w1": std * jax.random.normal(ks[3], (C, HID), jnp.float32),
        "bb1": jnp.zeros((1, HID), jnp.float32),
        "w2": std * jax.random.normal(ks[4], (HID, C), jnp.float32),
        "bb2": jnp.zeros((1, C), jnp.float32),
    }


if __name__ == "__main__":
    key = jax.random.PRNGKey(0)
    kx, kp = jax.random.split(key)
    x = jax.random.normal(kx, (B, N, C), jnp.float32)
    params = make_params(kp)
    kparams = prepare_params(params)       # one-time, outside the jitted forward

    out = cmt_block_forward(x, kparams)
    out = jax.block_until_ready(out)

    ref = reference_forward(x, params)
    assert out.shape == (B, N, C)
    max_err = float(jnp.max(jnp.abs(out - ref)))
    assert jnp.allclose(out, ref, atol=2e-3, rtol=2e-3), max_err

    print("KERNEL_OK")
</pallas_src>

<mosaic_0001>
module attributes {stable_mosaic.version = 11 : i64} {
  func.func @_fused_block_kernel(%arg0: i32, %arg1: memref<128x32xf32, #tpu.memory_space<vmem>>, %arg2: memref<128x128xbf16, #tpu.memory_space<vmem>>, %arg3: memref<128x128xbf16, #tpu.memory_space<vmem>>, %arg4: memref<32x96xbf16, #tpu.memory_space<vmem>>, %arg5: memref<32x32xbf16, #tpu.memory_space<vmem>>, %arg6: memref<32x128xbf16, #tpu.memory_space<vmem>>, %arg7: memref<128x32xbf16, #tpu.memory_space<vmem>>, %arg8: memref<8x128xf32, #tpu.memory_space<vmem>>, %arg9: memref<128x32xf32, #tpu.memory_space<vmem>>) attributes {dimension_semantics = [#tpu.dimension_semantics<arbitrary>], iteration_bounds = array<i64: 1>, scalar_prefetch = 0 : i64, scratch_operands = 0 : i64, tpu.core_type = #tpu.core_type<tc>, window_params = [{pipeline_mode = #tpu.pipeline_mode<synchronous>, transform_indices = @transform_0, window_bounds = array<i64: 128, 32>}, {pipeline_mode = #tpu.pipeline_mode<synchronous>, transform_indices = @transform_1, window_bounds = array<i64: 128, 128>}, {pipeline_mode = #tpu.pipeline_mode<synchronous>, transform_indices = @transform_2, window_bounds = array<i64: 128, 128>}, {pipeline_mode = #tpu.pipeline_mode<synchronous>, transform_indices = @transform_3, window_bounds = array<i64: 32, 96>}, {pipeline_mode = #tpu.pipeline_mode<synchronous>, transform_indices = @transform_4, window_bounds = array<i64: 32, 32>}, {pipeline_mode = #tpu.pipeline_mode<synchronous>, transform_indices = @transform_5, window_bounds = array<i64: 32, 128>}, {pipeline_mode = #tpu.pipeline_mode<synchronous>, transform_indices = @transform_6, window_bounds = array<i64: 128, 32>}, {pipeline_mode = #tpu.pipeline_mode<synchronous>, transform_indices = @transform_7, window_bounds = array<i64: 8, 128>}, {pipeline_mode = #tpu.pipeline_mode<synchronous>, transform_indices = @transform_8, window_bounds = array<i64: 128, 32>}]} {
    %c0 = arith.constant 0 : index
    %c0_0 = arith.constant 0 : index
    %0 = vector.load %arg1[%c0, %c0_0] : memref<128x32xf32, #tpu.memory_space<vmem>>, vector<128x32xf32>
    %c0_1 = arith.constant 0 : index
    %c0_2 = arith.constant 0 : index
    %1 = vector.load %arg8[%c0_1, %c0_2] : memref<8x128xf32, #tpu.memory_space<vmem>>, vector<8x128xf32>
    %2 = vector.extract_strided_slice %1 {offsets = [0, 0], sizes = [1, 32], strides = [1, 1]} : vector<8x128xf32> to vector<1x32xf32>
    %3 = vector.extract_strided_slice %1 {offsets = [1, 0], sizes = [1, 32], strides = [1, 1]} : vector<8x128xf32> to vector<1x32xf32>
    %4 = vector.extract_strided_slice %1 {offsets = [2, 0], sizes = [1, 32], strides = [1, 1]} : vector<8x128xf32> to vector<1x32xf32>
    %5 = vector.extract_strided_slice %1 {offsets = [3, 0], sizes = [1, 32], strides = [1, 1]} : vector<8x128xf32> to vector<1x32xf32>
    %6 = vector.extract_strided_slice %1 {offsets = [4, 0], sizes = [1, 32], strides = [1, 1]} : vector<8x128xf32> to vector<1x32xf32>
    %7 = vector.extract_strided_slice %1 {offsets = [5, 0], sizes = [1, 32], strides = [1, 1]} : vector<8x128xf32> to vector<1x32xf32>
    %8 = vector.extract_strided_slice %1 {offsets = [6, 0], sizes = [1, 128], strides = [1, 1]} : vector<8x128xf32> to vector<1x128xf32>
    %cst = arith.constant dense<0.000000e+00> : vector<128xf32>
    %9 = vector.multi_reduction <add>, %0, %cst [1] : vector<128x32xf32> to vector<128xf32>
    %10 = vector.shape_cast %9 : vector<128xf32> to vector<128x1xf32>
    %cst_3 = arith.constant 3.200000e+01 : f32
    %11 = vector.broadcast %cst_3 : f32 to vector<128x1xf32>
    %12 = arith.divf %10, %11 : vector<128x1xf32>
    %13 = vector.broadcast %12 : vector<128x1xf32> to vector<128x32xf32>
    %14 = arith.subf %0, %13 : vector<128x32xf32>
    %15 = arith.mulf %14, %14 : vector<128x32xf32>
    %cst_4 = arith.constant dense<0.000000e+00> : vector<128xf32>
    %16 = vector.multi_reduction <add>, %15, %cst_4 [1] : vector<128x32xf32> to vector<128xf32>
    %17 = vector.shape_cast %16 : vector<128xf32> to vector<128x1xf32>
    %cst_5 = arith.constant 3.200000e+01 : f32
    %18 = vector.broadcast %cst_5 : f32 to vector<128x1xf32>
    %19 = arith.divf %17, %18 : vector<128x1xf32>
    %20 = vector.broadcast %12 : vector<128x1xf32> to vector<128x32xf32>
    %21 = arith.subf %0, %20 : vector<128x32xf32>
    %cst_6 = arith.constant 9.99999974E-6 : f32
    %22 = vector.broadcast %cst_6 : f32 to vector<128x1xf32>
    %23 = arith.addf %19, %22 : vector<128x1xf32>
    %24 = math.rsqrt %23 : vector<128x1xf32>
    %25 = vector.broadcast %24 : vector<128x1xf32> to vector<128x32xf32>
    %26 = arith.mulf %21, %25 : vector<128x32xf32>
    %27 = vector.broadcast %2 : vector<1x32xf32> to vector<128x32xf32>
    %28 = arith.mulf %26, %27 : vector<128x32xf32>
    %29 = vector.broadcast %3 : vector<1x32xf32> to vector<128x32xf32>
    %30 = arith.addf %28, %29 : vector<128x32xf32>
    %31 = arith.truncf %30 : vector<128x32xf32> to vector<128x32xbf16>
    %c0_7 = arith.constant 0 : index
    %c0_8 = arith.constant 0 : index
    %32 = vector.load %arg2[%c0_7, %c0_8] : memref<128x128xbf16, #tpu.memory_space<vmem>>, vector<128x128xbf16>
    %cst_9 = arith.constant dense<0.000000e+00> : vector<128x32xf32>
    %33 = tpu.matmul %32, %31, %cst_9 {dimension_numbers = #tpu.dot_dimension_numbers<[1], [0], [0], [1], [0, 0, 1, 1], [], []>} : vector<128x128xbf16>, vector<128x32xbf16>, vector<128x32xf32> -> vector<128x32xf32>
    %34 = arith.truncf %33 : vector<128x32xf32> to vector<128x32xbf16>
    %c0_10 = arith.constant 0 : index
    %c0_11 = arith.constant 0 : index
    %35 = vector.load %arg4[%c0_10, %c0_11] : memref<32x96xbf16, #tpu.memory_space<vmem>>, vector<32x96xbf16>
    %cst_12 = arith.constant dense<0.000000e+00> : vector<128x96xf32>
    %36 = tpu.matmul %34, %35, %cst_12 {dimension_numbers = #tpu.dot_dimension_numbers<[1], [0], [0], [1], [0, 0, 1, 1], [], []>} : vector<128x32xbf16>, vector<32x96xbf16>, vector<128x96xf32> -> vector<128x96xf32>
    %37 = vector.shape_cast %36 : vector<128x96xf32> to vector<8x16x96xf32>
    %38 = vector.extract_strided_slice %37 {offsets = [0, 0, 0], sizes = [8, 16, 8], strides = [1, 1, 1]} : vector<8x16x96xf32> to vector<8x16x8xf32>
    %39 = vector.extract_strided_slice %37 {offsets = [0, 0, 8], sizes = [8, 16, 8], strides = [1, 1, 1]} : vector<8x16x96xf32> to vector<8x16x8xf32>
    %40 = vector.extract_strided_slice %37 {offsets = [0, 0, 16], sizes = [8, 16, 8], strides = [1, 1, 1]} : vector<8x16x96xf32> to vector<8x16x8xf32>
    %41 = vector.extract_strided_slice %37 {offsets = [0, 0, 24], sizes = [8, 16, 8], strides = [1, 1, 1]} : vector<8x16x96xf32> to vector<8x16x8xf32>
    %42 = vector.shape_cast %38 : vector<8x16x8xf32> to vector<1x8x16x8xf32>
    %43 = vector.shape_cast %39 : vector<8x16x8xf32> to vector<1x8x16x8xf32>
    %44 = vector.shape_cast %40 : vector<8x16x8xf32> to vector<1x8x16x8xf32>
    %45 = vector.shape_cast %41 : vector<8x16x8xf32> to vector<1x8x16x8xf32>
    %46 = tpu.concatenate %42, %43, %44, %45 in 0 : vector<1x8x16x8xf32>, vector<1x8x16x8xf32>, vector<1x8x16x8xf32>, vector<1x8x16x8xf32> -> vector<4x8x16x8xf32>
    %47 = vector.shape_cast %46 : vector<4x8x16x8xf32> to vector<32x16x8xf32>
    %48 = vector.extract_strided_slice %37 {offsets = [0, 0, 32], sizes = [8, 16, 8], strides = [1, 1, 1]} : vector<8x16x96xf32> to vector<8x16x8xf32>
    %49 = vector.extract_strided_slice %37 {offsets = [0, 0, 40], sizes = [8, 16, 8], strides = [1, 1, 1]} : vector<8x16x96xf32> to vector<8x16x8xf32>
    %50 = vector.extract_strided_slice %37 {offsets = [0, 0, 48], sizes = [8, 16, 8], strides = [1, 1, 1]} : vector<8x16x96xf32> to vector<8x16x8xf32>
    %51 = vector.extract_strided_slice %37 {offsets = [0, 0, 56], sizes = [8, 16, 8], strides = [1, 1, 1]} : vector<8x16x96xf32> to vector<8x16x8xf32>
    %52 = vector.shape_cast %48 : vector<8x16x8xf32> to vector<1x8x16x8xf32>
    %53 = vector.shape_cast %49 : vector<8x16x8xf32> to vector<1x8x16x8xf32>
    %54 = vector.shape_cast %50 : vector<8x16x8xf32> to vector<1x8x16x8xf32>
    %55 = vector.shape_cast %51 : vector<8x16x8xf32> to vector<1x8x16x8xf32>
    %56 = tpu.concatenate %52, %53, %54, %55 in 0 : vector<1x8x16x8xf32>, vector<1x8x16x8xf32>, vector<1x8x16x8xf32>, vector<1x8x16x8xf32> -> vector<4x8x16x8xf32>
    %57 = vector.shape_cast %56 : vector<4x8x16x8xf32> to vector<32x16x8xf32>
    %58 = vector.extract_strided_slice %37 {offsets = [0, 0, 64], sizes = [8, 16, 8], strides = [1, 1, 1]} : vector<8x16x96xf32> to vector<8x16x8xf32>
    %59 = vector.extract_strided_slice %37 {offsets = [0, 0, 72], sizes = [8, 16, 8], strides = [1, 1, 1]} : vector<8x16x96xf32> to vector<8x16x8xf32>
    %60 = vector.extract_strided_slice %37 {offsets = [0, 0, 80], sizes = [8, 16, 8], strides = [1, 1, 1]} : vector<8x16x96xf32> to vector<8x16x8xf32>
    %61 = vector.extract_strided_slice %37 {offsets = [0, 0, 88], sizes = [8, 16, 8], strides = [1, 1, 1]} : vector<8x16x96xf32> to vector<8x16x8xf32>
    %62 = vector.shape_cast %58 : vector<8x16x8xf32> to vector<1x8x16x8xf32>
    %63 = vector.shape_cast %59 : vector<8x16x8xf32> to vector<1x8x16x8xf32>
    %64 = vector.shape_cast %60 : vector<8x16x8xf32> to vector<1x8x16x8xf32>
    %65 = vector.shape_cast %61 : vector<8x16x8xf32> to vector<1x8x16x8xf32>
    %66 = tpu.concatenate %62, %63, %64, %65 in 0 : vector<1x8x16x8xf32>, vector<1x8x16x8xf32>, vector<1x8x16x8xf32>, vector<1x8x16x8xf32> -> vector<4x8x16x8xf32>
    %67 = vector.shape_cast %66 : vector<4x8x16x8xf32> to vector<32x16x8xf32>
    %68 = arith.truncf %47 : vector<32x16x8xf32> to vector<32x16x8xbf16>
    %69 = arith.truncf %57 : vector<32x16x8xf32> to vector<32x16x8xbf16>
    %70 = arith.truncf %67 : vector<32x16x8xf32> to vector<32x16x8xbf16>
    "tpu.trace_start"() <{level = 10 : i32, message = "bqd,bkd->bqk"}> : () -> ()
    %cst_13 = arith.constant dense<0.000000e+00> : vector<32x16x16xf32>
    %71 = tpu.matmul %68, %69, %cst_13 {dimension_numbers = #tpu.dot_dimension_numbers<[2], [2], [1], [1], [0, 0, 0, 1, 1, 1], [0], [0]>} : vector<32x16x8xbf16>, vector<32x16x8xbf16>, vector<32x16x16xf32> -> vector<32x16x16xf32>
    "tpu.trace_stop"() : () -> ()
    %cst_14 = arith.constant dense<0xFF800000> : vector<32x16xf32>
    %72 = vector.multi_reduction <maximumf>, %71, %cst_14 [2] : vector<32x16x16xf32> to vector<32x16xf32>
    %73 = vector.shape_cast %72 : vector<32x16xf32> to vector<32x16x1xf32>
    %74 = vector.broadcast %73 : vector<32x16x1xf32> to vector<32x16x16xf32>
    %75 = arith.subf %71, %74 : vector<32x16x16xf32>
    %76 = math.exp %75 : vector<32x16x16xf32>
    %cst_15 = arith.constant dense<0.000000e+00> : vector<32x16xf32>
    %77 = vector.multi_reduction <add>, %76, %cst_15 [2] : vector<32x16x16xf32> to vector<32x16xf32>
    %78 = vector.shape_cast %77 : vector<32x16xf32> to vector<32x16x1xf32>
    %79 = tpu.reciprocal %78 {approx = true} : vector<32x16x1xf32> -> vector<32x16x1xf32>
    %80 = vector.broadcast %79 : vector<32x16x1xf32> to vector<32x16x16xf32>
    %81 = arith.mulf %76, %80 : vector<32x16x16xf32>
    %82 = arith.truncf %81 : vector<32x16x16xf32> to vector<32x16x16xbf16>
    "tpu.trace_start"() <{level = 10 : i32, message = "bqk,bkd->bqd"}> : () -> ()
    %cst_16 = arith.constant dense<0.000000e+00> : vector<32x16x8xf32>
    %83 = tpu.matmul %82, %70, %cst_16 {dimension_numbers = #tpu.dot_dimension_numbers<[2], [1], [1], [2], [0, 0, 0, 1, 1, 2], [0], [0]>} : vector<32x16x16xbf16>, vector<32x16x8xbf16>, vector<32x16x8xf32> -> vector<32x16x8xf32>
    "tpu.trace_stop"() : () -> ()
    %84 = vector.shape_cast %83 : vector<32x16x8xf32> to vector<4x8x16x8xf32>
    %85 = vector.extract_strided_slice %84 {offsets = [0, 0, 0, 0], sizes = [1, 8, 16, 8], strides = [1, 1, 1, 1]} : vector<4x8x16x8xf32> to vector<1x8x16x8xf32>
    %86 = vector.shape_cast %85 : vector<1x8x16x8xf32> to vector<8x16x8xf32>
    %87 = vector.shape_cast %86 : vector<8x16x8xf32> to vector<128x8xf32>
    %88 = vector.extract_strided_slice %84 {offsets = [1, 0, 0, 0], sizes = [1, 8, 16, 8], strides = [1, 1, 1, 1]} : vector<4x8x16x8xf32> to vector<1x8x16x8xf32>
    %89 = vector.shape_cast %88 : vector<1x8x16x8xf32> to vector<8x16x8xf32>
    %90 = vector.shape_cast %89 : vector<8x16x8xf32> to vector<128x8xf32>
    %91 = vector.extract_strided_slice %84 {offsets = [2, 0, 0, 0], sizes = [1, 8, 16, 8], strides = [1, 1, 1, 1]} : vector<4x8x16x8xf32> to vector<1x8x16x8xf32>
    %92 = vector.shape_cast %91 : vector<1x8x16x8xf32> to vector<8x16x8xf32>
    %93 = vector.shape_cast %92 : vector<8x16x8xf32> to vector<128x8xf32>
    %94 = vector.extract_strided_slice %84 {offsets = [3, 0, 0, 0], sizes = [1, 8, 16, 8], strides = [1, 1, 1, 1]} : vector<4x8x16x8xf32> to vector<1x8x16x8xf32>
    %95 = vector.shape_cast %94 : vector<1x8x16x8xf32> to vector<8x16x8xf32>
    %96 = vector.shape_cast %95 : vector<8x16x8xf32> to vector<128x8xf32>
    %97 = tpu.concatenate %87, %90, %93, %96 in 1 : vector<128x8xf32>, vector<128x8xf32>, vector<128x8xf32>, vector<128x8xf32> -> vector<128x32xf32>
    %c0_17 = arith.constant 0 : index
    %c0_18 = arith.constant 0 : index
    %98 = vector.load %arg3[%c0_17, %c0_18] : memref<128x128xbf16, #tpu.memory_space<vmem>>, vector<128x128xbf16>
    %99 = arith.truncf %97 : vector<128x32xf32> to vector<128x32xbf16>
    %cst_19 = arith.constant dense<0.000000e+00> : vector<128x32xf32>
    %100 = tpu.matmul %98, %99, %cst_19 {dimension_numbers = #tpu.dot_dimension_numbers<[1], [0], [0], [1], [0, 0, 1, 1], [], []>} : vector<128x128xbf16>, vector<128x32xbf16>, vector<128x32xf32> -> vector<128x32xf32>
    %101 = arith.truncf %100 : vector<128x32xf32> to vector<128x32xbf16>
    %c0_20 = arith.constant 0 : index
    %c0_21 = arith.constant 0 : index
    %102 = vector.load %arg5[%c0_20, %c0_21] : memref<32x32xbf16, #tpu.memory_space<vmem>>, vector<32x32xbf16>
    %cst_22 = arith.constant dense<0.000000e+00> : vector<128x32xf32>
    %103 = tpu.matmul %101, %102, %cst_22 {dimension_numbers = #tpu.dot_dimension_numbers<[1], [0], [0], [1], [0, 0, 1, 1], [], []>} : vector<128x32xbf16>, vector<32x32xbf16>, vector<128x32xf32> -> vector<128x32xf32>
    %104 = arith.addf %0, %103 : vector<128x32xf32>
    %105 = vector.broadcast %6 : vector<1x32xf32> to vector<128x32xf32>
    %106 = arith.addf %104, %105 : vector<128x32xf32>
    %cst_23 = arith.constant dense<0.000000e+00> : vector<128xf32>
    %107 = vector.multi_reduction <add>, %106, %cst_23 [1] : vector<128x32xf32> to vector<128xf32>
    %108 = vector.shape_cast %107 : vector<128xf32> to vector<128x1xf32>
    %cst_24 = arith.constant 3.200000e+01 : f32
    %109 = vector.broadcast %cst_24 : f32 to vector<128x1xf32>
    %110 = arith.divf %108, %109 : vector<128x1xf32>
    %111 = vector.broadcast %110 : vector<128x1xf32> to vector<128x32xf32>
    %112 = arith.subf %106, %111 : vector<128x32xf32>
    %113 = arith.mulf %112, %112 : vector<128x32xf32>
    %cst_25 = arith.constant dense<0.000000e+00> : vector<128xf32>
    %114 = vector.multi_reduction <add>, %113, %cst_25 [1] : vector<128x32xf32> to vector<128xf32>
    %115 = vector.shape_cast %114 : vector<128xf32> to vector<128x1xf32>
    %cst_26 = arith.constant 3.200000e+01 : f32
    %116 = vector.broadcast %cst_26 : f32 to vector<128x1xf32>
    %117 = arith.divf %115, %116 : vector<128x1xf32>
    %118 = vector.broadcast %110 : vector<128x1xf32> to vector<128x32xf32>
    %119 = arith.subf %106, %118 : vector<128x32xf32>
    %cst_27 = arith.constant 9.99999974E-6 : f32
    %120 = vector.broadcast %cst_27 : f32 to vector<128x1xf32>
    %121 = arith.addf %117, %120 : vector<128x1xf32>
    %122 = math.rsqrt %121 : vector<128x1xf32>
    %123 = vector.broadcast %122 : vector<128x1xf32> to vector<128x32xf32>
    %124 = arith.mulf %119, %123 : vector<128x32xf32>
    %125 = vector.broadcast %4 : vector<1x32xf32> to vector<128x32xf32>
    %126 = arith.mulf %124, %125 : vector<128x32xf32>
    %127 = vector.broadcast %5 : vector<1x32xf32> to vector<128x32xf32>
    %128 = arith.addf %126, %127 : vector<128x32xf32>
    %129 = arith.truncf %128 : vector<128x32xf32> to vector<128x32xbf16>
    %c0_28 = arith.constant 0 : index
    %c0_29 = arith.constant 0 : index
    %130 = vector.load %arg6[%c0_28, %c0_29] : memref<32x128xbf16, #tpu.memory_space<vmem>>, vector<32x128xbf16>
    %cst_30 = arith.constant dense<0.000000e+00> : vector<128x128xf32>
    %131 = tpu.matmul %129, %130, %cst_30 {dimension_numbers = #tpu.dot_dimension_numbers<[1], [0], [0], [1], [0, 0, 1, 1], [], []>} : vector<128x32xbf16>, vector<32x128xbf16>, vector<128x128xf32> -> vector<128x128xf32>
    %132 = vector.broadcast %8 : vector<1x128xf32> to vector<128x128xf32>
    %133 = arith.addf %131, %132 : vector<128x128xf32>
    %cst_31 = arith.constant 5.000000e-01 : f32
    %134 = vector.broadcast %cst_31 : f32 to vector<128x128xf32>
    %135 = arith.mulf %134, %133 : vector<128x128xf32>
    %cst_32 = arith.constant 0.707106769 : f32
    %136 = vector.broadcast %cst_32 : f32 to vector<128x128xf32>
    %137 = arith.mulf %133, %136 : vector<128x128xf32>
    %138 = math.erf %137 : vector<128x128xf32>
    %cst_33 = arith.constant 1.000000e+00 : f32
    %139 = vector.broadcast %cst_33 : f32 to vector<128x128xf32>
    %140 = arith.addf %139, %138 : vector<128x128xf32>
    %141 = arith.mulf %135, %140 : vector<128x128xf32>
    %142 = arith.truncf %141 : vector<128x128xf32> to vector<128x128xbf16>
    %c0_34 = arith.constant 0 : index
    %c0_35 = arith.constant 0 : index
    %143 = vector.load %arg7[%c0_34, %c0_35] : memref<128x32xbf16, #tpu.memory_space<vmem>>, vector<128x32xbf16>
    %cst_36 = arith.constant dense<0.000000e+00> : vector<128x32xf32>
    %144 = tpu.matmul %142, %143, %cst_36 {dimension_numbers = #tpu.dot_dimension_numbers<[1], [0], [0], [1], [0, 0, 1, 1], [], []>} : vector<128x128xbf16>, vector<128x32xbf16>, vector<128x32xf32> -> vector<128x32xf32>
    %145 = vector.broadcast %7 : vector<1x32xf32> to vector<128x32xf32>
    %146 = arith.addf %144, %145 : vector<128x32xf32>
    %147 = arith.addf %106, %146 : vector<128x32xf32>
    %c0_37 = arith.constant 0 : index
    %c0_38 = arith.constant 0 : index
    %148 = vector.load %arg9[%c0_37, %c0_38] : memref<128x32xf32, #tpu.memory_space<vmem>>, vector<128x32xf32>
    tpu.vector_store %arg9[%c0_37, %c0_38], %147 {strides = array<i32>} : memref<128x32xf32, #tpu.memory_space<vmem>>, vector<128x32xf32>,
    return
  }
  func.func @transform_0(%arg0: i32) -> (i32, i32) {
    %c0_i32 = arith.constant 0 : i32
    %c0_i32_0 = arith.constant 0 : i32
    %c0_i32_1 = arith.constant 0 : i32
    return %c0_i32, %c0_i32_0 : i32, i32
  }
  func.func @transform_1(%arg0: i32) -> (i32, i32) {
    %c0_i32 = arith.constant 0 : i32
    %c0_i32_0 = arith.constant 0 : i32
    %c0_i32_1 = arith.constant 0 : i32
    return %c0_i32, %c0_i32_0 : i32, i32
  }
  func.func @transform_2(%arg0: i32) -> (i32, i32) {
    %c0_i32 = arith.constant 0 : i32
    %c0_i32_0 = arith.constant 0 : i32
    %c0_i32_1 = arith.constant 0 : i32
    return %c0_i32, %c0_i32_0 : i32, i32
  }
  func.func @transform_3(%arg0: i32) -> (i32, i32) {
    %c0_i32 = arith.constant 0 : i32
    %c0_i32_0 = arith.constant 0 : i32
    %c0_i32_1 = arith.constant 0 : i32
    return %c0_i32, %c0_i32_0 : i32, i32
  }
  func.func @transform_4(%arg0: i32) -> (i32, i32) {
    %c0_i32 = arith.constant 0 : i32
    %c0_i32_0 = arith.constant 0 : i32
    %c0_i32_1 = arith.constant 0 : i32
    return %c0_i32, %c0_i32_0 : i32, i32
  }
  func.func @transform_5(%arg0: i32) -> (i32, i32) {
    %c0_i32 = arith.constant 0 : i32
    %c0_i32_0 = arith.constant 0 : i32
    %c0_i32_1 = arith.constant 0 : i32
    return %c0_i32, %c0_i32_0 : i32, i32
  }
  func.func @transform_6(%arg0: i32) -> (i32, i32) {
    %c0_i32 = arith.constant 0 : i32
    %c0_i32_0 = arith.constant 0 : i32
    %c0_i32_1 = arith.constant 0 : i32
    return %c0_i32, %c0_i32_0 : i32, i32
  }
  func.func @transform_7(%arg0: i32) -> (i32, i32) {
    %c0_i32 = arith.constant 0 : i32
    %c0_i32_0 = arith.constant 0 : i32
    %c0_i32_1 = arith.constant 0 : i32
    return %c0_i32, %c0_i32_0 : i32, i32
  }
  func.func @transform_8(%arg0: i32) -> (i32, i32) {
    %c0_i32 = arith.constant 0 : i32
    %c0_i32_0 = arith.constant 0 : i32
    %c0_i32_1 = arith.constant 0 : i32
    return %c0_i32, %c0_i32_0 : i32, i32
  }
}

</mosaic_0001>

<llo_original>
// kernel: cmt_block_forward.1
$region0: #{cmt_block_forward.1}
  #allocation0 [shape = 'u32[]', space=smem, size = 0x4, offset = 0x4, fixed_abs, tag = 'smem constant byte address 0x4 - core index']
  #allocation1 [shape = 'u32[72,128]{1,0:T(1,128)}', space=vmem, size = 0x9000, scoped, tag = 'internal scratch']
  %s0 = inlined_call_operand.vmem [shape: f32[128,32], index: 0, kind: input, shape index: {}]
  %s1 = inlined_call_operand.vmem [shape: bf16[128,128], index: 1, kind: input, shape index: {}]
  %s2 = inlined_call_operand.vmem [shape: bf16[128,128], index: 2, kind: input, shape index: {}]
  %s3 = inlined_call_operand.vmem [shape: bf16[32,96], index: 3, kind: input, shape index: {}]
  %s4 = inlined_call_operand.vmem [shape: bf16[32,32], index: 4, kind: input, shape index: {}]
  %s5 = inlined_call_operand.vmem [shape: bf16[32,128], index: 5, kind: input, shape index: {}]
  %s6 = inlined_call_operand.vmem [shape: bf16[128,32], index: 6, kind: input, shape index: {}]
  %s7 = inlined_call_operand.vmem [shape: f32[8,128], index: 7, kind: input, shape index: {}]
  %s8 = inlined_call_operand.vmem [shape: f32[128,32], index: 8, kind: output, shape index: {}]
  %s9 = sld [smem:[#allocation0]]
  $region42: #{cmt_block_forward.1} parent=0
    _
  %s11 = ssub.s32 1, %s9
  %s12 = scalar_select 0, %s11, %s9
  // Predicated region
  $region2: #{cmt_block_forward.1} parent=0 // pred_check
    _
  $region3: #{cmt_block_forward.1} parent=0 // pred_check_branch
    %14 = sbr.rel (0) target = $region5
  $region4: #{cmt_block_forward.1} parent=0 // pred_region
    _
  $region5: #{cmt_block_forward.1} parent=0 // pred_fallthru
    _
  // Predicated region
  $region6: #{cmt_block_forward.1} parent=0 // pred_check
    _
  $region7: #{cmt_block_forward.1} parent=0 // pred_check_branch
    %16 = sbr.rel (0) target = $region9
  $region8: #{cmt_block_forward.1} parent=0 // pred_region
    _
  $region9: #{cmt_block_forward.1} parent=0 // pred_fallthru
    _
  // Predicated region
  $region10: #{cmt_block_forward.1} parent=0 // pred_check
    _
  $region11: #{cmt_block_forward.1} parent=0 // pred_check_branch
    %18 = sbr.rel (0) target = $region13
  $region12: #{cmt_block_forward.1} parent=0 // pred_region
    _
  $region13: #{cmt_block_forward.1} parent=0 // pred_fallthru
    _
  // Predicated region
  $region14: #{cmt_block_forward.1} parent=0 // pred_check
    _
  $region15: #{cmt_block_forward.1} parent=0 // pred_check_branch
    %20 = sbr.rel (0) target = $region17
  $region16: #{cmt_block_forward.1} parent=0 // pred_region
    _
  $region17: #{cmt_block_forward.1} parent=0 // pred_fallthru
    _
  // Predicated region
  $region18: #{cmt_block_forward.1} parent=0 // pred_check
    _
  $region19: #{cmt_block_forward.1} parent=0 // pred_check_branch
    %22 = sbr.rel (0) target = $region21
  $region20: #{cmt_block_forward.1} parent=0 // pred_region
    _
  $region21: #{cmt_block_forward.1} parent=0 // pred_fallthru
    _
  // Predicated region
  $region22: #{cmt_block_forward.1} parent=0 // pred_check
    _
  $region23: #{cmt_block_forward.1} parent=0 // pred_check_branch
    %24 = sbr.rel (0) target = $region25
  $region24: #{cmt_block_forward.1} parent=0 // pred_region
    _
  $region25: #{cmt_block_forward.1} parent=0 // pred_fallthru
    _
  // Predicated region
  $region26: #{cmt_block_forward.1} parent=0 // pred_check
    _
  $region27: #{cmt_block_forward.1} parent=0 // pred_check_branch
    %26 = sbr.rel (0) target = $region29
  $region28: #{cmt_block_forward.1} parent=0 // pred_region
    _
  $region29: #{cmt_block_forward.1} parent=0 // pred_fallthru
    _
  // Predicated region
  $region30: #{cmt_block_forward.1} parent=0 // pred_check
    _
  $region31: #{cmt_block_forward.1} parent=0 // pred_check_branch
    %28 = sbr.rel (0) target = $region33
  $region32: #{cmt_block_forward.1} parent=0 // pred_region
    _
  $region33: #{cmt_block_forward.1} parent=0 // pred_fallthru
    _
  %v30 = vld [vmem:[%s0] sm:$0xff]
  %v31 = vld [vmem:[%s0 + $0x8] sm:$0xff]
  %v32 = vld [vmem:[%s0 + $0x10] sm:$0xff]
  %v33 = vld [vmem:[%s0 + $0x18] sm:$0xff]
  %v34 = vld [vmem:[%s0 + $0x20] sm:$0xff]
  %v35 = vld [vmem:[%s0 + $0x28] sm:$0xff]
  %v36 = vld [vmem:[%s0 + $0x30] sm:$0xff]
  %v37 = vld [vmem:[%s0 + $0x38] sm:$0xff]
  %v38 = vld [vmem:[%s0 + $0x40] sm:$0xff]
  %v39 = vld [vmem:[%s0 + $0x48] sm:$0xff]
  %v40 = vld [vmem:[%s0 + $0x50] sm:$0xff]
  %v41 = vld [vmem:[%s0 + $0x58] sm:$0xff]
  %v42 = vld [vmem:[%s0 + $0x60] sm:$0xff]
  %v43 = vld [vmem:[%s0 + $0x68] sm:$0xff]
  %v44 = vld [vmem:[%s0 + $0x70] sm:$0xff]
  %v45 = vld [vmem:[%s0 + $0x78] sm:$0xff]
  %v46 = vld [vmem:[%s7] sm:$0xff]
  %vm47 = vcmask 261120
  %v48 = vsel %vm47, %v30, 0.0
  %49 = vadd.xlane.f32.xlu0 %v48
  %v50 = vpop.xlane.xlu0 %49
  %v51 = vsel %vm47, %v31, 0.0
  %52 = vadd.xlane.f32.xlu0 %v51
  %v53 = vpop.xlane.xlu0 %52
  %v54 = vsel %vm47, %v32, 0.0
  %55 = vadd.xlane.f32.xlu0 %v54
  %v56 = vpop.xlane.xlu0 %55
  %v57 = vsel %vm47, %v33, 0.0
  %58 = vadd.xlane.f32.xlu0 %v57
  %v59 = vpop.xlane.xlu0 %58
  %v60 = vsel %vm47, %v34, 0.0
  %61 = vadd.xlane.f32.xlu0 %v60
  %v62 = vpop.xlane.xlu0 %61
  %v63 = vsel %vm47, %v35, 0.0
  %64 = vadd.xlane.f32.xlu0 %v63
  %v65 = vpop.xlane.xlu0 %64
  %v66 = vsel %vm47, %v36, 0.0
  %67 = vadd.xlane.f32.xlu0 %v66
  %v68 = vpop.xlane.xlu0 %67
  %v69 = vsel %vm47, %v37, 0.0
  %70 = vadd.xlane.f32.xlu0 %v69
  %v71 = vpop.xlane.xlu0 %70
  %v72 = vsel %vm47, %v38, 0.0
  %73 = vadd.xlane.f32.xlu0 %v72
  %v74 = vpop.xlane.xlu0 %73
  %v75 = vsel %vm47, %v39, 0.0
  %76 = vadd.xlane.f32.xlu0 %v75
  %v77 = vpop.xlane.xlu0 %76
  %v78 = vsel %vm47, %v40, 0.0
  %79 = vadd.xlane.f32.xlu0 %v78
  %v80 = vpop.xlane.xlu0 %79
  %v81 = vsel %vm47, %v41, 0.0
  %82 = vadd.xlane.f32.xlu0 %v81
  %v83 = vpop.xlane.xlu0 %82
  %v84 = vsel %vm47, %v42, 0.0
  %85 = vadd.xlane.f32.xlu0 %v84
  %v86 = vpop.xlane.xlu0 %85
  %v87 = vsel %vm47, %v43, 0.0
  %88 = vadd.xlane.f32.xlu0 %v87
  %v89 = vpop.xlane.xlu0 %88
  %v90 = vsel %vm47, %v44, 0.0
  %91 = vadd.xlane.f32.xlu0 %v90
  %v92 = vpop.xlane.xlu0 %91
  %v93 = vsel %vm47, %v45, 0.0
  %94 = vadd.xlane.f32.xlu0 %v93
  %v95 = vpop.xlane.xlu0 %94
  %v96 = vrcp.pop 32.0
  %v97 = vmul.f32 32.0, %v96
  %v98 = vsub.f32 1.0, %v97
  %v99 = vmul.f32 %v96, %v98
  %v100 = vadd.f32 %v96, %v99
  %vm101 = vweird.f32 %v96
  %v102 = vsel %vm101, %v96, %v100
  %v103 = vmul.f32 %v50, %v102
  %v104 = vmul.f32 %v53, %v102
  %v105 = vmul.f32 %v56, %v102
  %v106 = vmul.f32 %v59, %v102
  %v107 = vmul.f32 %v62, %v102
  %v108 = vmul.f32 %v65, %v102
  %v109 = vmul.f32 %v68, %v102
  %v110 = vmul.f32 %v71, %v102
  %v111 = vmul.f32 %v74, %v102
  %v112 = vmul.f32 %v77, %v102
  %v113 = vmul.f32 %v80, %v102
  %v114 = vmul.f32 %v83, %v102
  %v115 = vmul.f32 %v86, %v102
  %v116 = vmul.f32 %v89, %v102
  %v117 = vmul.f32 %v92, %v102
  %v118 = vmul.f32 %v95, %v102
  %v119 = vsub.f32 %v30, %v103
  %v120 = vsub.f32 %v31, %v104
  %v121 = vsub.f32 %v32, %v105
  %v122 = vsub.f32 %v33, %v106
  %v123 = vsub.f32 %v34, %v107
  %v124 = vsub.f32 %v35, %v108
  %v125 = vsub.f32 %v36, %v109
  %v126 = vsub.f32 %v37, %v110
  %v127 = vsub.f32 %v38, %v111
  %v128 = vsub.f32 %v39, %v112
  %v129 = vsub.f32 %v40, %v113
  %v130 = vsub.f32 %v41, %v114
  %v131 = vsub.f32 %v42, %v115
  %v132 = vsub.f32 %v43, %v116
  %v133 = vsub.f32 %v44, %v117
  %v134 = vsub.f32 %v45, %v118
  %v135 = vmul.f32 %v119, %v119
  %v136 = vmul.f32 %v120, %v120
  %v137 = vmul.f32 %v121, %v121
  %v138 = vmul.f32 %v122, %v122
  %v139 = vmul.f32 %v123, %v123
  %v140 = vmul.f32 %v124, %v124
  %v141 = vmul.f32 %v125, %v125
  %v142 = vmul.f32 %v126, %v126
  %v143 = vmul.f32 %v127, %v127
  %v144 = vmul.f32 %v128, %v128
  %v145 = vmul.f32 %v129, %v129
  %v146 = vmul.f32 %v130, %v130
  %v147 = vmul.f32 %v131, %v131
  %v148 = vmul.f32 %v132, %v132
  %v149 = vmul.f32 %v133, %v133
  %v150 = vmul.f32 %v134, %v134
  %v151 = vsel %vm47, %v135, 0.0
  %152 = vadd.xlane.f32.xlu0 %v151
  %v153 = vpop.xlane.xlu0 %152
  %v154 = vsel %vm47, %v136, 0.0
  %155 = vadd.xlane.f32.xlu0 %v154
  %v156 = vpop.xlane.xlu0 %155
  %v157 = vsel %vm47, %v137, 0.0
  %158 = vadd.xlane.f32.xlu0 %v157
  %v159 = vpop.xlane.xlu0 %158
  %v160 = vsel %vm47, %v138, 0.0
  %161 = vadd.xlane.f32.xlu0 %v160
  %v162 = vpop.xlane.xlu0 %161
  %v163 = vsel %vm47, %v139, 0.0
  %164 = vadd.xlane.f32.xlu0 %v163
  %v165 = vpop.xlane.xlu0 %164
  %v166 = vsel %vm47, %v140, 0.0
  %167 = vadd.xlane.f32.xlu0 %v166
  %v168 = vpop.xlane.xlu0 %167
  %v169 = vsel %vm47, %v141, 0.0
  %170 = vadd.xlane.f32.xlu0 %v169
  %v171 = vpop.xlane.xlu0 %170
  %v172 = vsel %vm47, %v142, 0.0
  %173 = vadd.xlane.f32.xlu0 %v172
  %v174 = vpop.xlane.xlu0 %173
  %v175 = vsel %vm47, %v143, 0.0
  %176 = vadd.xlane.f32.xlu0 %v175
  %v177 = vpop.xlane.xlu0 %176
  %v178 = vsel %vm47, %v144, 0.0
  %179 = vadd.xlane.f32.xlu0 %v178
  %v180 = vpop.xlane.xlu0 %179
  %v181 = vsel %vm47, %v145, 0.0
  %182 = vadd.xlane.f32.xlu0 %v181
  %v183 = vpop.xlane.xlu0 %182
  %v184 = vsel %vm47, %v146, 0.0
  %185 = vadd.xlane.f32.xlu0 %v184
  %v186 = vpop.xlane.xlu0 %185
  %v187 = vsel %vm47, %v147, 0.0
  %188 = vadd.xlane.f32.xlu0 %v187
  %v189 = vpop.xlane.xlu0 %188
  %v190 = vsel %vm47, %v148, 0.0
  %191 = vadd.xlane.f32.xlu0 %v190
  %v192 = vpop.xlane.xlu0 %191
  %v193 = vsel %vm47, %v149, 0.0
  %194 = vadd.xlane.f32.xlu0 %v193
  %v195 = vpop.xlane.xlu0 %194
  %v196 = vsel %vm47, %v150, 0.0
  %197 = vadd.xlane.f32.xlu0 %v196
  %v198 = vpop.xlane.xlu0 %197
  %v199 = vmul.f32 %v153, %v102
  %v200 = vmul.f32 %v156, %v102
  %v201 = vmul.f32 %v159, %v102
  %v202 = vmul.f32 %v162, %v102
  %v203 = vmul.f32 %v165, %v102
  %v204 = vmul.f32 %v168, %v102
  %v205 = vmul.f32 %v171, %v102
  %v206 = vmul.f32 %v174, %v102
  %v207 = vmul.f32 %v177, %v102
  %v208 = vmul.f32 %v180, %v102
  %v209 = vmul.f32 %v183, %v102
  %v210 = vmul.f32 %v186, %v102
  %v211 = vmul.f32 %v189, %v102
  %v212 = vmul.f32 %v192, %v102
  %v213 = vmul.f32 %v195, %v102
  %v214 = vmul.f32 %v198, %v102
  %v215 = vadd.f32 %v199, 1e-05
  %v216 = vadd.f32 %v200, 1e-05
  %v217 = vadd.f32 %v201, 1e-05
  %v218 = vadd.f32 %v202, 1e-05
  %v219 = vadd.f32 %v203, 1e-05
  %v220 = vadd.f32 %v204, 1e-05
  %v221 = vadd.f32 %v205, 1e-05
  %v222 = vadd.f32 %v206, 1e-05
  %v223 = vadd.f32 %v207, 1e-05
  %v224 = vadd.f32 %v208, 1e-05
  %v225 = vadd.f32 %v209, 1e-05
  %v226 = vadd.f32 %v210, 1e-05
  %v227 = vadd.f32 %v211, 1e-05
  %v228 = vadd.f32 %v212, 1e-05
  %v229 = vadd.f32 %v213, 1e-05
  %v230 = vadd.f32 %v214, 1e-05
  %v231 = vrsqrt.pop %v215
  %v232 = vmul.f32 %v231, %v215
  %v233 = vmul.f32 %v232, %v231
  %v234 = vmul.f32 0.5, %v233
  %v235 = vsub.f32 1.5, %v234
  %v236 = vmul.f32 %v231, %v235
  %vm237 = vweird.f32 %v215
  %vm238 = vweird.f32 %v231
  %vm239 = vmor %vm237, %vm238
  %v240 = vsel %vm239, %v231, %v236
  %v241 = vrsqrt.pop %v216
  %v242 = vmul.f32 %v241, %v216
  %v243 = vmul.f32 %v242, %v241
  %v244 = vmul.f32 0.5, %v243
  %v245 = vsub.f32 1.5, %v244
  %v246 = vmul.f32 %v241, %v245
  %vm247 = vweird.f32 %v216
  %vm248 = vweird.f32 %v241
  %vm249 = vmor %vm247, %vm248
  %v250 = vsel %vm249, %v241, %v246
  %v251 = vrsqrt.pop %v217
  %v252 = vmul.f32 %v251, %v217
  %v253 = vmul.f32 %v252, %v251
  %v254 = vmul.f32 0.5, %v253
  %v255 = vsub.f32 1.5, %v254
  %v256 = vmul.f32 %v251, %v255
  %vm257 = vweird.f32 %v217
  %vm258 = vweird.f32 %v251
  %vm259 = vmor %vm257, %vm258
  %v260 = vsel %vm259, %v251, %v256
  %v261 = vrsqrt.pop %v218
  %v262 = vmul.f32 %v261, %v218
  %v263 = vmul.f32 %v262, %v261
  %v264 = vmul.f32 0.5, %v263
  %v265 = vsub.f32 1.5, %v264
  %v266 = vmul.f32 %v261, %v265
  %vm267 = vweird.f32 %v218
  %vm268 = vweird.f32 %v261
  %vm269 = vmor %vm267, %vm268
  %v270 = vsel %vm269, %v261, %v266
  %v271 = vrsqrt.pop %v219
  %v272 = vmul.f32 %v271, %v219
  %v273 = vmul.f32 %v272, %v271
  %v274 = vmul.f32 0.5, %v273
  %v275 = vsub.f32 1.5, %v274
  %v276 = vmul.f32 %v271, %v275
  %vm277 = vweird.f32 %v219
  %vm278 = vweird.f32 %v271
  %vm279 = vmor %vm277, %vm278
  %v280 = vsel %vm279, %v271, %v276
  %v281 = vrsqrt.pop %v220
  %v282 = vmul.f32 %v281, %v220
  %v283 = vmul.f32 %v282, %v281
  %v284 = vmul.f32 0.5, %v283
  %v285 = vsub.f32 1.5, %v284
  %v286 = vmul.f32 %v281, %v285
  %vm287 = vweird.f32 %v220
  %vm288 = vweird.f32 %v281
  %vm289 = vmor %vm287, %vm288
  %v290 = vsel %vm289, %v281, %v286
  %v291 = vrsqrt.pop %v221
  %v292 = vmul.f32 %v291, %v221
  %v293 = vmul.f32 %v292, %v291
  %v294 = vmul.f32 0.5, %v293
  %v295 = vsub.f32 1.5, %v294
  %v296 = vmul.f32 %v291, %v295
  %vm297 = vweird.f32 %v221
  %vm298 = vweird.f32 %v291
  %vm299 = vmor %vm297, %vm298
  %v300 = vsel %vm299, %v291, %v296
  %v301 = vrsqrt.pop %v222
  %v302 = vmul.f32 %v301, %v222
  %v303 = vmul.f32 %v302, %v301
  %v304 = vmul.f32 0.5, %v303
  %v305 = vsub.f32 1.5, %v304
  %v306 = vmul.f32 %v301, %v305
  %vm307 = vweird.f32 %v222
  %vm308 = vweird.f32 %v301
  %vm309 = vmor %vm307, %vm308
  %v310 = vsel %vm309, %v301, %v306
  %v311 = vrsqrt.pop %v223
  %v312 = vmul.f32 %v311, %v223
  %v313 = vmul.f32 %v312, %v311
  %v314 = vmul.f32 0.5, %v313
  %v315 = vsub.f32 1.5, %v314
  %v316 = vmul.f32 %v311, %v315
  %vm317 = vweird.f32 %v223
  %vm318 = vweird.f32 %v311
  %vm319 = vmor %vm317, %vm318
  %v320 = vsel %vm319, %v311, %v316
  %v321 = vrsqrt.pop %v224
  %v322 = vmul.f32 %v321, %v224
  %v323 = vmul.f32 %v322, %v321
  %v324 = vmul.f32 0.5, %v323
  %v325 = vsub.f32 1.5, %v324
  %v326 = vmul.f32 %v321, %v325
  %vm327 = vweird.f32 %v224
  %vm328 = vweird.f32 %v321
  %vm329 = vmor %vm327, %vm328
  %v330 = vsel %vm329, %v321, %v326
  %v331 = vrsqrt.pop %v225
  %v332 = vmul.f32 %v331, %v225
  %v333 = vmul.f32 %v332, %v331
  %v334 = vmul.f32 0.5, %v333
  %v335 = vsub.f32 1.5, %v334
  %v336 = vmul.f32 %v331, %v335
  %vm337 = vweird.f32 %v225
  %vm338 = vweird.f32 %v331
  %vm339 = vmor %vm337, %vm338
  %v340 = vsel %vm339, %v331, %v336
  %v341 = vrsqrt.pop %v226
  %v342 = vmul.f32 %v341, %v226
  %v343 = vmul.f32 %v342, %v341
  %v344 = vmul.f32 0.5, %v343
  %v345 = vsub.f32 1.5, %v344
  %v346 = vmul.f32 %v341, %v345
  %vm347 = vweird.f32 %v226
  %vm348 = vweird.f32 %v341
  %vm349 = vmor %vm347, %vm348
  %v350 = vsel %vm349, %v341, %v346
  %v351 = vrsqrt.pop %v227
  %v352 = vmul.f32 %v351, %v227
  %v353 = vmul.f32 %v352, %v351
  %v354 = vmul.f32 0.5, %v353
  %v355 = vsub.f32 1.5, %v354
  %v356 = vmul.f32 %v351, %v355
  %vm357 = vweird.f32 %v227
  %vm358 = vweird.f32 %v351
  %vm359 = vmor %vm357, %vm358
  %v360 = vsel %vm359, %v351, %v356
  %v361 = vrsqrt.pop %v228
  %v362 = vmul.f32 %v361, %v228
  %v363 = vmul.f32 %v362, %v361
  %v364 = vmul.f32 0.5, %v363
  %v365 = vsub.f32 1.5, %v364
  %v366 = vmul.f32 %v361, %v365
  %vm367 = vweird.f32 %v228
  %vm368 = vweird.f32 %v361
  %vm369 = vmor %vm367, %vm368
  %v370 = vsel %vm369, %v361, %v366
  %v371 = vrsqrt.pop %v229
  %v372 = vmul.f32 %v371, %v229
  %v373 = vmul.f32 %v372, %v371
  %v374 = vmul.f32 0.5, %v373
  %v375 = vsub.f32 1.5, %v374
  %v376 = vmul.f32 %v371, %v375
  %vm377 = vweird.f32 %v229
  %vm378 = vweird.f32 %v371
  %vm379 = vmor %vm377, %vm378
  %v380 = vsel %vm379, %v371, %v376
  %v381 = vrsqrt.pop %v230
  %v382 = vmul.f32 %v381, %v230
  %v383 = vmul.f32 %v382, %v381
  %v384 = vmul.f32 0.5, %v383
  %v385 = vsub.f32 1.5, %v384
  %v386 = vmul.f32 %v381, %v385
  %vm387 = vweird.f32 %v230
  %vm388 = vweird.f32 %v381
  %vm389 = vmor %vm387, %vm388
  %v390 = vsel %vm389, %v381, %v386
  %v391 = vmul.f32 %v119, %v240
  %v392 = vmul.f32 %v120, %v250
  %v393 = vmul.f32 %v121, %v260
  %v394 = vmul.f32 %v122, %v270
  %v395 = vmul.f32 %v123, %v280
  %v396 = vmul.f32 %v124, %v290
  %v397 = vmul.f32 %v125, %v300
  %v398 = vmul.f32 %v126, %v310
  %v399 = vmul.f32 %v127, %v320
  %v400 = vmul.f32 %v128, %v330
  %v401 = vmul.f32 %v129, %v340
  %v402 = vmul.f32 %v130, %v350
  %v403 = vmul.f32 %v131, %v360
  %v404 = vmul.f32 %v132, %v370
  %v405 = vmul.f32 %v133, %v380
  %v406 = vmul.f32 %v134, %v390
  %v407 = vperm.slane %v46, 0
  %v408 = vmul.f32 %v391, %v407
  %v409 = vmul.f32 %v392, %v407
  %v410 = vmul.f32 %v393, %v407
  %v411 = vmul.f32 %v394, %v407
  %v412 = vmul.f32 %v395, %v407
  %v413 = vmul.f32 %v396, %v407
  %v414 = vmul.f32 %v397, %v407
  %v415 = vmul.f32 %v398, %v407
  %v416 = vmul.f32 %v399, %v407
  %v417 = vmul.f32 %v400, %v407
  %v418 = vmul.f32 %v401, %v407
  %v419 = vmul.f32 %v402, %v407
  %v420 = vmul.f32 %v403, %v407
  %v421 = vmul.f32 %v404, %v407
  %v422 = vmul.f32 %v405, %v407
  %v423 = vmul.f32 %v406, %v407
  %v424 = vperm.slane %v46, 1
  %v425 = vadd.f32 %v408, %v424
  %v426 = vadd.f32 %v409, %v424
  %v427 = vadd.f32 %v410, %v424
  %v428 = vadd.f32 %v411, %v424
  %v429 = vadd.f32 %v412, %v424
  %v430 = vadd.f32 %v413, %v424
  %v431 = vadd.f32 %v414, %v424
  %v432 = vadd.f32 %v415, %v424
  %v433 = vadd.f32 %v416, %v424
  %v434 = vadd.f32 %v417, %v424
  %v435 = vadd.f32 %v418, %v424
  %v436 = vadd.f32 %v419, %v424
  %v437 = vadd.f32 %v420, %v424
  %v438 = vadd.f32 %v421, %v424
  %v439 = vadd.f32 %v422, %v424
  %v440 = vadd.f32 %v423, %v424
  %v441 = vpack.c.bf16 %v426, %v425
  %v442 = vpack.c.bf16 %v428, %v427
  %v443 = vpack.c.bf16 %v430, %v429
  %v444 = vpack.c.bf16 %v432, %v431
  %v445 = vpack.c.bf16 %v434, %v433
  %v446 = vpack.c.bf16 %v436, %v435
  %v447 = vpack.c.bf16 %v438, %v437
  %v448 = vpack.c.bf16 %v440, %v439
  %v449 = vld [vmem:[%s1] sm:$0xf]
  %v450 = vld [vmem:[%s1 + $0x4] sm:$0xf]
  %v451 = vld [vmem:[%s1 + $0x8] sm:$0xf]
  %v452 = vld [vmem:[%s1 + $0xc] sm:$0xf]
  %v453 = vld [vmem:[%s1 + $0x10] sm:$0xf]
  %v454 = vld [vmem:[%s1 + $0x14] sm:$0xf]
  %v455 = vld [vmem:[%s1 + $0x18] sm:$0xf]
  %v456 = vld [vmem:[%s1 + $0x1c] sm:$0xf]
  %v457 = vld [vmem:[%s1 + $0x20] sm:$0xf]
  %v458 = vld [vmem:[%s1 + $0x24] sm:$0xf]
  %v459 = vld [vmem:[%s1 + $0x28] sm:$0xf]
  %v460 = vld [vmem:[%s1 + $0x2c] sm:$0xf]
  %v461 = vld [vmem:[%s1 + $0x30] sm:$0xf]
  %v462 = vld [vmem:[%s1 + $0x34] sm:$0xf]
  %v463 = vld [vmem:[%s1 + $0x38] sm:$0xf]
  %v464 = vld [vmem:[%s1 + $0x3c] sm:$0xf]
  %v481 = vunpack.c.l.b16 %v449
  %v482 = vunpack.c.l.b16 %v450
  %v483 = vunpack.c.l.b16 %v451
  %v484 = vunpack.c.l.b16 %v452
  %v485 = vunpack.c.l.b16 %v453
  %v486 = vunpack.c.l.b16 %v454
  %v487 = vunpack.c.l.b16 %v455
  %v488 = vunpack.c.l.b16 %v456
  %v489 = vunpack.c.l.b16 %v457
  %v490 = vunpack.c.l.b16 %v458
  %v491 = vunpack.c.l.b16 %v459
  %v492 = vunpack.c.l.b16 %v460
  %v493 = vunpack.c.l.b16 %v461
  %v494 = vunpack.c.l.b16 %v462
  %v495 = vunpack.c.l.b16 %v463
  %v496 = vunpack.c.l.b16 %v464
  %v497 = vpack.c.b16 %v482, %v481
  %v498 = vpack.c.b16 %v484, %v483
  %v499 = vpack.c.b16 %v486, %v485
  %v500 = vpack.c.b16 %v488, %v487
  %v501 = vpack.c.b16 %v490, %v489
  %v502 = vpack.c.b16 %v492, %v491
  %v503 = vpack.c.b16 %v494, %v493
  %v504 = vpack.c.b16 %v496, %v495
  %513 = vmatpush.bf16.msra.mxu0 %v448
  %514 = vmatpush.bf16.msra.mxu0 %v447
  %515 = vmatpush.bf16.msra.mxu0 %v446
  %516 = vmatpush.bf16.msra.mxu0 %v445
  %517 = vmatpush.bf16.msra.mxu0 %v444
  %518 = vmatpush.bf16.msra.mxu0 %v443
  %519 = vmatpush.bf16.msra.mxu0 %v442
  %520 = vmatpush.bf16.msra.mxu0 %v441
  %521 = vmatmul.bf16.gmra.mxu0 %v497
  %v522 = vpop.f32.mrf.mxu0
  %v523 = vadd.f32 0.0, %v522
  %v524 = vpop.f32.mrf.mxu0
  %v525 = vadd.f32 0.0, %v524
  %526 = vmatmul.bf16.gmra.mxu0 %v498
  %v527 = vpop.f32.mrf.mxu0
  %v528 = vadd.f32 0.0, %v527
  %v529 = vpop.f32.mrf.mxu0
  %v530 = vadd.f32 0.0, %v529
  %531 = vmatmul.bf16.gmra.mxu0 %v499
  %v532 = vpop.f32.mrf.mxu0
  %v533 = vadd.f32 0.0, %v532
  %v534 = vpop.f32.mrf.mxu0
  %v535 = vadd.f32 0.0, %v534
  %536 = vmatmul.bf16.gmra.mxu0 %v500
  %v537 = vpop.f32.mrf.mxu0
  %v538 = vadd.f32 0.0, %v537
  %v539 = vpop.f32.mrf.mxu0
  %v540 = vadd.f32 0.0, %v539
  %541 = vmatmul.bf16.gmra.mxu0 %v501
  %v542 = vpop.f32.mrf.mxu0
  %v543 = vadd.f32 0.0, %v542
  %v544 = vpop.f32.mrf.mxu0
  %v545 = vadd.f32 0.0, %v544
  %546 = vmatmul.bf16.gmra.mxu0 %v502
  %v547 = vpop.f32.mrf.mxu0
  %v548 = vadd.f32 0.0, %v547
  %v549 = vpop.f32.mrf.mxu0
  %v550 = vadd.f32 0.0, %v549
  %551 = vmatmul.bf16.gmra.mxu0 %v503
  %v552 = vpop.f32.mrf.mxu0
  %v553 = vadd.f32 0.0, %v552
  %v554 = vpop.f32.mrf.mxu0
  %v555 = vadd.f32 0.0, %v554
  %556 = vmatmul.bf16.gmra.mxu0 %v504
  %v557 = vpop.f32.mrf.mxu0
  %v558 = vadd.f32 0.0, %v557
  %v559 = vpop.f32.mrf.mxu0
  %v560 = vadd.f32 0.0, %v559
  %561 = vdwg.mxu0
  %v562 = vpack.c.bf16 %v525, %v523
  %v563 = vpack.c.bf16 %v530, %v528
  %v564 = vpack.c.bf16 %v535, %v533
  %v565 = vpack.c.bf16 %v540, %v538
  %v566 = vpack.c.bf16 %v545, %v543
  %v567 = vpack.c.bf16 %v550, %v548
  %v568 = vpack.c.bf16 %v555, %v553
  %v569 = vpack.c.bf16 %v560, %v558
  %v570 = vld [vmem:[%s3] sm:$0xf]
  %v571 = vld [vmem:[%s3 + $0x4] sm:$0xf]
  %v572 = vld [vmem:[%s3 + $0x8] sm:$0xf]
  %v573 = vld [vmem:[%s3 + $0xc] sm:$0xf]
  %v578 = vunpack.c.l.b16 %v570
  %v579 = vunpack.c.l.b16 %v571
  %v580 = vunpack.c.l.b16 %v572
  %v581 = vunpack.c.l.b16 %v573
  %v582 = vpack.c.b16 %v579, %v578
  %v583 = vpack.c.b16 %v581, %v580
  %v587 = vsel %vm47, %v562, 0
  %v590 = vsel %vm47, %v563, 0
  %v593 = vsel %vm47, %v564, 0
  %v596 = vsel %vm47, %v565, 0
  %v599 = vsel %vm47, %v566, 0
  %v602 = vsel %vm47, %v567, 0
  %v605 = vsel %vm47, %v568, 0
  %v608 = vsel %vm47, %v569, 0
  %610 = vmatpush.bf16.msra.mxu0 0
  %611 = vmatpush.bf16.msra.mxu0 0
  %612 = vmatpush.bf16.msra.mxu0 0
  %613 = vmatpush.bf16.msra.mxu0 0
  %614 = vmatpush.bf16.msra.mxu0 0
  %615 = vmatpush.bf16.msra.mxu0 0
  %616 = vmatpush.bf16.msra.mxu0 %v583
  %617 = vmatpush.bf16.msra.mxu0 %v582
  %618 = vmatmul.bf16.gmra.mxu0 %v587
  %v619 = vpop.f32.mrf.mxu0
  %v620 = vadd.f32 0.0, %v619
  %v621 = vpop.f32.mrf.mxu0
  %v622 = vadd.f32 0.0, %v621
  %623 = vmatmul.bf16.gmra.mxu0 %v590
  %v624 = vpop.f32.mrf.mxu0
  %v625 = vadd.f32 0.0, %v624
  %v626 = vpop.f32.mrf.mxu0
  %v627 = vadd.f32 0.0, %v626
  %628 = vmatmul.bf16.gmra.mxu0 %v593
  %v629 = vpop.f32.mrf.mxu0
  %v630 = vadd.f32 0.0, %v629
  %v631 = vpop.f32.mrf.mxu0
  %v632 = vadd.f32 0.0, %v631
  %633 = vmatmul.bf16.gmra.mxu0 %v596
  %v634 = vpop.f32.mrf.mxu0
  %v635 = vadd.f32 0.0, %v634
  %v636 = vpop.f32.mrf.mxu0
  %v637 = vadd.f32 0.0, %v636
  %638 = vmatmul.bf16.gmra.mxu0 %v599
  %v639 = vpop.f32.mrf.mxu0
  %v640 = vadd.f32 0.0, %v639
  %v641 = vpop.f32.mrf.mxu0
  %v642 = vadd.f32 0.0, %v641
  %643 = vmatmul.bf16.gmra.mxu0 %v602
  %v644 = vpop.f32.mrf.mxu0
  %v645 = vadd.f32 0.0, %v644
  %v646 = vpop.f32.mrf.mxu0
  %v647 = vadd.f32 0.0, %v646
  %648 = vmatmul.bf16.gmra.mxu0 %v605
  %v649 = vpop.f32.mrf.mxu0
  %v650 = vadd.f32 0.0, %v649
  %v651 = vpop.f32.mrf.mxu0
  %v652 = vadd.f32 0.0, %v651
  %653 = vmatmul.bf16.gmra.mxu0 %v608
  %v654 = vpop.f32.mrf.mxu0
  %v655 = vadd.f32 0.0, %v654
  %v656 = vpop.f32.mrf.mxu0
  %v657 = vadd.f32 0.0, %v656
  %658 = vdwg.mxu0
  %675 = vrot.lane.b32.xlu0 %v620, 120
  %v676 = vpop.permute.xlu0 %675
  %677 = vrot.lane.b32.xlu0 %v622, 120
  %v678 = vpop.permute.xlu0 %677
  %679 = vrot.lane.b32.xlu0 %v625, 120
  %v680 = vpop.permute.xlu0 %679
  %681 = vrot.lane.b32.xlu0 %v627, 120
  %v682 = vpop.permute.xlu0 %681
  %683 = vrot.lane.b32.xlu0 %v630, 120
  %v684 = vpop.permute.xlu0 %683
  %685 = vrot.lane.b32.xlu0 %v632, 120
  %v686 = vpop.permute.xlu0 %685
  %687 = vrot.lane.b32.xlu0 %v635, 120
  %v688 = vpop.permute.xlu0 %687
  %689 = vrot.lane.b32.xlu0 %v637, 120
  %v690 = vpop.permute.xlu0 %689
  %691 = vrot.lane.b32.xlu0 %v640, 120
  %v692 = vpop.permute.xlu0 %691
  %693 = vrot.lane.b32.xlu0 %v642, 120
  %v694 = vpop.permute.xlu0 %693
  %695 = vrot.lane.b32.xlu0 %v645, 120
  %v696 = vpop.permute.xlu0 %695
  %697 = vrot.lane.b32.xlu0 %v647, 120
  %v698 = vpop.permute.xlu0 %697
  %699 = vrot.lane.b32.xlu0 %v650, 120
  %v700 = vpop.permute.xlu0 %699
  %701 = vrot.lane.b32.xlu0 %v652, 120
  %v702 = vpop.permute.xlu0 %701
  %703 = vrot.lane.b32.xlu0 %v655, 120
  %v704 = vpop.permute.xlu0 %703
  %705 = vrot.lane.b32.xlu0 %v657, 120
  %v706 = vpop.permute.xlu0 %705
  %723 = vrot.lane.b32.xlu0 %v620, 112
  %v724 = vpop.permute.xlu0 %723
  %725 = vrot.lane.b32.xlu0 %v622, 112
  %v726 = vpop.permute.xlu0 %725
  %727 = vrot.lane.b32.xlu0 %v625, 112
  %v728 = vpop.permute.xlu0 %727
  %729 = vrot.lane.b32.xlu0 %v627, 112
  %v730 = vpop.permute.xlu0 %729
  %731 = vrot.lane.b32.xlu0 %v630, 112
  %v732 = vpop.permute.xlu0 %731
  %733 = vrot.lane.b32.xlu0 %v632, 112
  %v734 = vpop.permute.xlu0 %733
  %735 = vrot.lane.b32.xlu0 %v635, 112
  %v736 = vpop.permute.xlu0 %735
  %737 = vrot.lane.b32.xlu0 %v637, 112
  %v738 = vpop.permute.xlu0 %737
  %739 = vrot.lane.b32.xlu0 %v640, 112
  %v740 = vpop.permute.xlu0 %739
  %741 = vrot.lane.b32.xlu0 %v642, 112
  %v742 = vpop.permute.xlu0 %741
  %743 = vrot.lane.b32.xlu0 %v645, 112
  %v744 = vpop.permute.xlu0 %743
  %745 = vrot.lane.b32.xlu0 %v647, 112
  %v746 = vpop.permute.xlu0 %745
  %747 = vrot.lane.b32.xlu0 %v650, 112
  %v748 = vpop.permute.xlu0 %747
  %749 = vrot.lane.b32.xlu0 %v652, 112
  %v750 = vpop.permute.xlu0 %749
  %751 = vrot.lane.b32.xlu0 %v655, 112
  %v752 = vpop.permute.xlu0 %751
  %753 = vrot.lane.b32.xlu0 %v657, 112
  %v754 = vpop.permute.xlu0 %753
  %771 = vrot.lane.b32.xlu0 %v620, 104
  %v772 = vpop.permute.xlu0 %771
  %773 = vrot.lane.b32.xlu0 %v622, 104
  %v774 = vpop.permute.xlu0 %773
  %775 = vrot.lane.b32.xlu0 %v625, 104
  %v776 = vpop.permute.xlu0 %775
  %777 = vrot.lane.b32.xlu0 %v627, 104
  %v778 = vpop.permute.xlu0 %777
  %779 = vrot.lane.b32.xlu0 %v630, 104
  %v780 = vpop.permute.xlu0 %779
  %781 = vrot.lane.b32.xlu0 %v632, 104
  %v782 = vpop.permute.xlu0 %781
  %783 = vrot.lane.b32.xlu0 %v635, 104
  %v784 = vpop.permute.xlu0 %783
  %785 = vrot.lane.b32.xlu0 %v637, 104
  %v786 = vpop.permute.xlu0 %785
  %787 = vrot.lane.b32.xlu0 %v640, 104
  %v788 = vpop.permute.xlu0 %787
  %789 = vrot.lane.b32.xlu0 %v642, 104
  %v790 = vpop.permute.xlu0 %789
  %791 = vrot.lane.b32.xlu0 %v645, 104
  %v792 = vpop.permute.xlu0 %791
  %793 = vrot.lane.b32.xlu0 %v647, 104
  %v794 = vpop.permute.xlu0 %793
  %795 = vrot.lane.b32.xlu0 %v650, 104
  %v796 = vpop.permute.xlu0 %795
  %797 = vrot.lane.b32.xlu0 %v652, 104
  %v798 = vpop.permute.xlu0 %797
  %799 = vrot.lane.b32.xlu0 %v655, 104
  %v800 = vpop.permute.xlu0 %799
  %801 = vrot.lane.b32.xlu0 %v657, 104
  %v802 = vpop.permute.xlu0 %801
  %v819 = vpack.c.bf16 %v620, %v620
  %v820 = vpack.c.bf16 %v622, %v622
  %v821 = vpack.c.bf16 %v625, %v625
  %v822 = vpack.c.bf16 %v627, %v627
  %v823 = vpack.c.bf16 %v630, %v630
  %v824 = vpack.c.bf16 %v632, %v632
  %v825 = vpack.c.bf16 %v635, %v635
  %v826 = vpack.c.bf16 %v637, %v637
  %v827 = vpack.c.bf16 %v640, %v640
  %v828 = vpack.c.bf16 %v642, %v642
  %v829 = vpack.c.bf16 %v645, %v645
  %v830 = vpack.c.bf16 %v647, %v647
  %v831 = vpack.c.bf16 %v650, %v650
  %v832 = vpack.c.bf16 %v652, %v652
  %v833 = vpack.c.bf16 %v655, %v655
  %v834 = vpack.c.bf16 %v657, %v657
  %v835 = vpack.c.bf16 %v676, %v676
  %v836 = vpack.c.bf16 %v678, %v678
  %v837 = vpack.c.bf16 %v680, %v680
  %v838 = vpack.c.bf16 %v682, %v682
  %v839 = vpack.c.bf16 %v684, %v684
  %v840 = vpack.c.bf16 %v686, %v686
  %v841 = vpack.c.bf16 %v688, %v688
  %v842 = vpack.c.bf16 %v690, %v690
  %v843 = vpack.c.bf16 %v692, %v692
  %v844 = vpack.c.bf16 %v694, %v694
  %v845 = vpack.c.bf16 %v696, %v696
  %v846 = vpack.c.bf16 %v698, %v698
  %v847 = vpack.c.bf16 %v700, %v700
  %v848 = vpack.c.bf16 %v702, %v702
  %v849 = vpack.c.bf16 %v704, %v704
  %v850 = vpack.c.bf16 %v706, %v706
  %v851 = vpack.c.bf16 %v724, %v724
  %v852 = vpack.c.bf16 %v726, %v726
  %v853 = vpack.c.bf16 %v728, %v728
  %v854 = vpack.c.bf16 %v730, %v730
  %v855 = vpack.c.bf16 %v732, %v732
  %v856 = vpack.c.bf16 %v734, %v734
  %v857 = vpack.c.bf16 %v736, %v736
  %v858 = vpack.c.bf16 %v738, %v738
  %v859 = vpack.c.bf16 %v740, %v740
  %v860 = vpack.c.bf16 %v742, %v742
  %v861 = vpack.c.bf16 %v744, %v744
  %v862 = vpack.c.bf16 %v746, %v746
  %v863 = vpack.c.bf16 %v748, %v748
  %v864 = vpack.c.bf16 %v750, %v750
  %v865 = vpack.c.bf16 %v752, %v752
  %v866 = vpack.c.bf16 %v754, %v754
  %v867 = vpack.c.bf16 %v772, %v772
  %v868 = vpack.c.bf16 %v774, %v774
  %v869 = vpack.c.bf16 %v776, %v776
  %v870 = vpack.c.bf16 %v778, %v778
  %v871 = vpack.c.bf16 %v780, %v780
  %v872 = vpack.c.bf16 %v782, %v782
  %v873 = vpack.c.bf16 %v784, %v784
  %v874 = vpack.c.bf16 %v786, %v786
  %v875 = vpack.c.bf16 %v788, %v788
  %v876 = vpack.c.bf16 %v790, %v790
  %v877 = vpack.c.bf16 %v792, %v792
  %v878 = vpack.c.bf16 %v794, %v794
  %v879 = vpack.c.bf16 %v796, %v796
  %v880 = vpack.c.bf16 %v798, %v798
  %v881 = vpack.c.bf16 %v800, %v800
  %v882 = vpack.c.bf16 %v802, %v802
  %v885 = vunpack.c.l.b16 %v819
  %v886 = vunpack.c.l.b16 %v820
  %v887 = vpack.c.b16 %v886, %v885
  %888 = vrot.lane.b32.xlu0 %v887, 96
  %v889 = vpop.permute.xlu0 %888
  %vm890 = vcmask 64512
  %v892 = vsel %vm890, %v887, 0
  %v895 = vsel %vm890, %v889, 0
  %897 = vmatpush.bf16.xpose.msra.mxu0 0
  %898 = vmatpush.bf16.xpose.msra.mxu0 0
  %899 = vmatpush.bf16.xpose.msra.mxu0 0
  %900 = vmatpush.bf16.xpose.msra.mxu0 0
  %901 = vmatpush.bf16.xpose.msra.mxu0 0
  %902 = vmatpush.bf16.xpose.msra.mxu0 0
  %903 = vmatpush.bf16.xpose.msra.mxu0 0
  %904 = vmatpush.bf16.xpose.msra.mxu0 %v895
  %905 = vmatmul.bf16.gmra.mxu0 %v892
  %v906 = vpop.f32.mrf.mxu0
  %v907 = vadd.f32 0.0, %v906
  %v908 = vpop.f32.mrf.mxu0
  %v909 = vadd.f32 0.0, %v908
  %910 = vdwg.mxu0
  %v913 = vunpack.c.l.b16 %v821
  %v914 = vunpack.c.l.b16 %v822
  %v915 = vpack.c.b16 %v914, %v913
  %916 = vrot.lane.b32.xlu0 %v915, 96
  %v917 = vpop.permute.xlu0 %916
  %v919 = vsel %vm890, %v915, 0
  %v922 = vsel %vm890, %v917, 0
  %924 = vmatpush.bf16.xpose.msra.mxu0 0
  %925 = vmatpush.bf16.xpose.msra.mxu0 0
  %926 = vmatpush.bf16.xpose.msra.mxu0 0
  %927 = vmatpush.bf16.xpose.msra.mxu0 0
  %928 = vmatpush.bf16.xpose.msra.mxu0 0
  %929 = vmatpush.bf16.xpose.msra.mxu0 0
  %930 = vmatpush.bf16.xpose.msra.mxu0 0
  %931 = vmatpush.bf16.xpose.msra.mxu0 %v922
  %932 = vmatmul.bf16.gmra.mxu0 %v919
  %v933 = vpop.f32.mrf.mxu0
  %v934 = vadd.f32 0.0, %v933
  %v935 = vpop.f32.mrf.mxu0
  %v936 = vadd.f32 0.0, %v935
  %937 = vdwg.mxu0
  %v940 = vunpack.c.l.b16 %v823
  %v941 = vunpack.c.l.b16 %v824
  %v942 = vpack.c.b16 %v941, %v940
  %943 = vrot.lane.b32.xlu0 %v942, 96
  %v944 = vpop.permute.xlu0 %943
  %v946 = vsel %vm890, %v942, 0
  %v949 = vsel %vm890, %v944, 0
  %951 = vmatpush.bf16.xpose.msra.mxu0 0
  %952 = vmatpush.bf16.xpose.msra.mxu0 0
  %953 = vmatpush.bf16.xpose.msra.mxu0 0
  %954 = vmatpush.bf16.xpose.msra.mxu0 0
  %955 = vmatpush.bf16.xpose.msra.mxu0 0
  %956 = vmatpush.bf16.xpose.msra.mxu0 0
  %957 = vmatpush.bf16.xpose.msra.mxu0 0
  %958 = vmatpush.bf16.xpose.msra.mxu0 %v949
  %959 = vmatmul.bf16.gmra.mxu0 %v946
  %v960 = vpop.f32.mrf.mxu0
  %v961 = vadd.f32 0.0, %v960
  %v962 = vpop.f32.mrf.mxu0
  %v963 = vadd.f32 0.0, %v962
  %964 = vdwg.mxu0
  %v967 = vunpack.c.l.b16 %v825
  %v968 = vunpack.c.l.b16 %v826
  %v969 = vpack.c.b16 %v968, %v967
  %970 = vrot.lane.b32.xlu0 %v969, 96
  %v971 = vpop.permute.xlu0 %970
  %v973 = vsel %vm890, %v969, 0
  %v976 = vsel %vm890, %v971, 0
  %978 = vmatpush.bf16.xpose.msra.mxu0 0
  %979 = vmatpush.bf16.xpose.msra.mxu0 0
  %980 = vmatpush.bf16.xpose.msra.mxu0 0
  %981 = vmatpush.bf16.xpose.msra.mxu0 0
  %982 = vmatpush.bf16.xpose.msra.mxu0 0
  %983 = vmatpush.bf16.xpose.msra.mxu0 0
  %984 = vmatpush.bf16.xpose.msra.mxu0 0
  %985 = vmatpush.bf16.xpose.msra.mxu0 %v976
  %986 = vmatmul.bf16.gmra.mxu0 %v973
  %v987 = vpop.f32.mrf.mxu0
  %v988 = vadd.f32 0.0, %v987
  %v989 = vpop.f32.mrf.mxu0
  %v990 = vadd.f32 0.0, %v989
  %991 = vdwg.mxu0
  %v994 = vunpack.c.l.b16 %v827
  %v995 = vunpack.c.l.b16 %v828
  %v996 = vpack.c.b16 %v995, %v994
  %997 = vrot.lane.b32.xlu0 %v996, 96
  %v998 = vpop.permute.xlu0 %997
  %v1000 = vsel %vm890, %v996, 0
  %v1003 = vsel %vm890, %v998, 0
  %1005 = vmatpush.bf16.xpose.msra.mxu0 0
  %1006 = vmatpush.bf16.xpose.msra.mxu0 0
  %1007 = vmatpush.bf16.xpose.msra.mxu0 0
  %1008 = vmatpush.bf16.xpose.msra.mxu0 0
  %1009 = vmatpush.bf16.xpose.msra.mxu0 0
  %1010 = vmatpush.bf16.xpose.msra.mxu0 0
  %1011 = vmatpush.bf16.xpose.msra.mxu0 0
  %1012 = vmatpush.bf16.xpose.msra.mxu0 %v1003
  %1013 = vmatmul.bf16.gmra.mxu0 %v1000
  %v1014 = vpop.f32.mrf.mxu0
  %v1015 = vadd.f32 0.0, %v1014
  %v1016 = vpop.f32.mrf.mxu0
  %v1017 = vadd.f32 0.0, %v1016
  %1018 = vdwg.mxu0
  %v1021 = vunpack.c.l.b16 %v829
  %v1022 = vunpack.c.l.b16 %v830
  %v1023 = vpack.c.b16 %v1022, %v1021
  %1024 = vrot.lane.b32.xlu0 %v1023, 96
  %v1025 = vpop.permute.xlu0 %1024
  %v1027 = vsel %vm890, %v1023, 0
  %v1030 = vsel %vm890, %v1025, 0
  %1032 = vmatpush.bf16.xpose.msra.mxu0 0
  %1033 = vmatpush.bf16.xpose.msra.mxu0 0
  %1034 = vmatpush.bf16.xpose.msra.mxu0 0
  %1035 = vmatpush.bf16.xpose.msra.mxu0 0
  %1036 = vmatpush.bf16.xpose.msra.mxu0 0
  %1037 = vmatpush.bf16.xpose.msra.mxu0 0
  %1038 = vmatpush.bf16.xpose.msra.mxu0 0
  %1039 = vmatpush.bf16.xpose.msra.mxu0 %v1030
  %1040 = vmatmul.bf16.gmra.mxu0 %v1027
  %v1041 = vpop.f32.mrf.mxu0
  %v1042 = vadd.f32 0.0, %v1041
  %v1043 = vpop.f32.mrf.mxu0
  %v1044 = vadd.f32 0.0, %v1043
  %1045 = vdwg.mxu0
  %v1048 = vunpack.c.l.b16 %v831
  %v1049 = vunpack.c.l.b16 %v832
  %v1050 = vpack.c.b16 %v1049, %v1048
  %1051 = vrot.lane.b32.xlu0 %v1050, 96
  %v1052 = vpop.permute.xlu0 %1051
  %v1054 = vsel %vm890, %v1050, 0
  %v1057 = vsel %vm890, %v1052, 0
  %1059 = vmatpush.bf16.xpose.msra.mxu0 0
  %1060 = vmatpush.bf16.xpose.msra.mxu0 0
  %1061 = vmatpush.bf16.xpose.msra.mxu0 0
  %1062 = vmatpush.bf16.xpose.msra.mxu0 0
  %1063 = vmatpush.bf16.xpose.msra.mxu0 0
  %1064 = vmatpush.bf16.xpose.msra.mxu0 0
  %1065 = vmatpush.bf16.xpose.msra.mxu0 0
  %1066 = vmatpush.bf16.xpose.msra.mxu0 %v1057
  %1067 = vmatmul.bf16.gmra.mxu0 %v1054
  %v1068 = vpop.f32.mrf.mxu0
  %v1069 = vadd.f32 0.0, %v1068
  %v1070 = vpop.f32.mrf.mxu0
  %v1071 = vadd.f32 0.0, %v1070
  %1072 = vdwg.mxu0
  %v1075 = vunpack.c.l.b16 %v833
  %v1076 = vunpack.c.l.b16 %v834
  %v1077 = vpack.c.b16 %v1076, %v1075
  %1078 = vrot.lane.b32.xlu0 %v1077, 96
  %v1079 = vpop.permute.xlu0 %1078
  %v1081 = vsel %vm890, %v1077, 0
  %v1084 = vsel %vm890, %v1079, 0
  %1086 = vmatpush.bf16.xpose.msra.mxu0 0
  %1087 = vmatpush.bf16.xpose.msra.mxu0 0
  %1088 = vmatpush.bf16.xpose.msra.mxu0 0
  %1089 = vmatpush.bf16.xpose.msra.mxu0 0
  %1090 = vmatpush.bf16.xpose.msra.mxu0 0
  %1091 = vmatpush.bf16.xpose.msra.mxu0 0
  %1092 = vmatpush.bf16.xpose.msra.mxu0 0
  %1093 = vmatpush.bf16.xpose.msra.mxu0 %v1084
  %1094 = vmatmul.bf16.gmra.mxu0 %v1081
  %v1095 = vpop.f32.mrf.mxu0
  %v1096 = vadd.f32 0.0, %v1095
  %v1097 = vpop.f32.mrf.mxu0
  %v1098 = vadd.f32 0.0, %v1097
  %1099 = vdwg.mxu0
  %v1102 = vunpack.c.l.b16 %v835
  %v1103 = vunpack.c.l.b16 %v836
  %v1104 = vpack.c.b16 %v1103, %v1102
  %1105 = vrot.lane.b32.xlu0 %v1104, 96
  %v1106 = vpop.permute.xlu0 %1105
  %v1108 = vsel %vm890, %v1104, 0
  %v1111 = vsel %vm890, %v1106, 0
  %1113 = vmatpush.bf16.xpose.msra.mxu0 0
  %1114 = vmatpush.bf16.xpose.msra.mxu0 0
  %1115 = vmatpush.bf16.xpose.msra.mxu0 0
  %1116 = vmatpush.bf16.xpose.msra.mxu0 0
  %1117 = vmatpush.bf16.xpose.msra.mxu0 0
  %1118 = vmatpush.bf16.xpose.msra.mxu0 0
  %1119 = vmatpush.bf16.xpose.msra.mxu0 0
  %1120 = vmatpush.bf16.xpose.msra.mxu0 %v1111
  %1121 = vmatmul.bf16.gmra.mxu0 %v1108
  %v1122 = vpop.f32.mrf.mxu0
  %v1123 = vadd.f32 0.0, %v1122
  %v1124 = vpop.f32.mrf.mxu0
  %v1125 = vadd.f32 0.0, %v1124
  %1126 = vdwg.mxu0
  %v1129 = vunpack.c.l.b16 %v837
  %v1130 = vunpack.c.l.b16 %v838
  %v1131 = vpack.c.b16 %v1130, %v1129
  %1132 = vrot.lane.b32.xlu0 %v1131, 96
  %v1133 = vpop.permute.xlu0 %1132
  %v1135 = vsel %vm890, %v1131, 0
  %v1138 = vsel %vm890, %v1133, 0
  %1140 = vmatpush.bf16.xpose.msra.mxu0 0
  %1141 = vmatpush.bf16.xpose.msra.mxu0 0
  %1142 = vmatpush.bf16.xpose.msra.mxu0 0
  %1143 = vmatpush.bf16.xpose.msra.mxu0 0
  %1144 = vmatpush.bf16.xpose.msra.mxu0 0
  %1145 = vmatpush.bf16.xpose.msra.mxu0 0
  %1146 = vmatpush.bf16.xpose.msra.mxu0 0
  %1147 = vmatpush.bf16.xpose.msra.mxu0 %v1138
  %1148 = vmatmul.bf16.gmra.mxu0 %v1135
  %v1149 = vpop.f32.mrf.mxu0
  %v1150 = vadd.f32 0.0, %v1149
  %v1151 = vpop.f32.mrf.mxu0
  %v1152 = vadd.f32 0.0, %v1151
  %1153 = vdwg.mxu0
  %v1156 = vunpack.c.l.b16 %v839
  %v1157 = vunpack.c.l.b16 %v840
  %v1158 = vpack.c.b16 %v1157, %v1156
  %1159 = vrot.lane.b32.xlu0 %v1158, 96
  %v1160 = vpop.permute.xlu0 %1159
  %v1162 = vsel %vm890, %v1158, 0
  %v1165 = vsel %vm890, %v1160, 0
  %1167 = vmatpush.bf16.xpose.msra.mxu0 0
  %1168 = vmatpush.bf16.xpose.msra.mxu0 0
  %1169 = vmatpush.bf16.xpose.msra.mxu0 0
  %1170 = vmatpush.bf16.xpose.msra.mxu0 0
  %1171 = vmatpush.bf16.xpose.msra.mxu0 0
  %1172 = vmatpush.bf16.xpose.msra.mxu0 0
  %1173 = vmatpush.bf16.xpose.msra.mxu0 0
  %1174 = vmatpush.bf16.xpose.msra.mxu0 %v1165
  %1175 = vmatmul.bf16.gmra.mxu0 %v1162
  %v1176 = vpop.f32.mrf.mxu0
  %v1177 = vadd.f32 0.0, %v1176
  %v1178 = vpop.f32.mrf.mxu0
  %v1179 = vadd.f32 0.0, %v1178
  %1180 = vdwg.mxu0
  %v1183 = vunpack.c.l.b16 %v841
  %v1184 = vunpack.c.l.b16 %v842
  %v1185 = vpack.c.b16 %v1184, %v1183
  %1186 = vrot.lane.b32.xlu0 %v1185, 96
  %v1187 = vpop.permute.xlu0 %1186
  %v1189 = vsel %vm890, %v1185, 0
  %v1192 = vsel %vm890, %v1187, 0
  %1194 = vmatpush.bf16.xpose.msra.mxu0 0
  %1195 = vmatpush.bf16.xpose.msra.mxu0 0
  %1196 = vmatpush.bf16.xpose.msra.mxu0 0
  %1197 = vmatpush.bf16.xpose.msra.mxu0 0
  %1198 = vmatpush.bf16.xpose.msra.mxu0 0
  %1199 = vmatpush.bf16.xpose.msra.mxu0 0
  %1200 = vmatpush.bf16.xpose.msra.mxu0 0
  %1201 = vmatpush.bf16.xpose.msra.mxu0 %v1192
  %1202 = vmatmul.bf16.gmra.mxu0 %v1189
  %v1203 = vpop.f32.mrf.mxu0
  %v1204 = vadd.f32 0.0, %v1203
  %v1205 = vpop.f32.mrf.mxu0
  %v1206 = vadd.f32 0.0, %v1205
  %1207 = vdwg.mxu0
  %v1210 = vunpack.c.l.b16 %v843
  %v1211 = vunpack.c.l.b16 %v844
  %v1212 = vpack.c.b16 %v1211, %v1210
  %1213 = vrot.lane.b32.xlu0 %v1212, 96
  %v1214 = vpop.permute.xlu0 %1213
  %v1216 = vsel %vm890, %v1212, 0
  %v1219 = vsel %vm890, %v1214, 0
  %1221 = vmatpush.bf16.xpose.msra.mxu0 0
  %1222 = vmatpush.bf16.xpose.msra.mxu0 0
  %1223 = vmatpush.bf16.xpose.msra.mxu0 0
  %1224 = vmatpush.bf16.xpose.msra.mxu0 0
  %1225 = vmatpush.bf16.xpose.msra.mxu0 0
  %1226 = vmatpush.bf16.xpose.msra.mxu0 0
  %1227 = vmatpush.bf16.xpose.msra.mxu0 0
  %1228 = vmatpush.bf16.xpose.msra.mxu0 %v1219
  %1229 = vmatmul.bf16.gmra.mxu0 %v1216
  %v1230 = vpop.f32.mrf.mxu0
  %v1231 = vadd.f32 0.0, %v1230
  %v1232 = vpop.f32.mrf.mxu0
  %v1233 = vadd.f32 0.0, %v1232
  %1234 = vdwg.mxu0
  %v1237 = vunpack.c.l.b16 %v845
  %v1238 = vunpack.c.l.b16 %v846
  %v1239 = vpack.c.b16 %v1238, %v1237
  %1240 = vrot.lane.b32.xlu0 %v1239, 96
  %v1241 = vpop.permute.xlu0 %1240
  %v1243 = vsel %vm890, %v1239, 0
  %v1246 = vsel %vm890, %v1241, 0
  %1248 = vmatpush.bf16.xpose.msra.mxu0 0
  %1249 = vmatpush.bf16.xpose.msra.mxu0 0
  %1250 = vmatpush.bf16.xpose.msra.mxu0 0
  %1251 = vmatpush.bf16.xpose.msra.mxu0 0
  %1252 = vmatpush.bf16.xpose.msra.mxu0 0
  %1253 = vmatpush.bf16.xpose.msra.mxu0 0
  %1254 = vmatpush.bf16.xpose.msra.mxu0 0
  %1255 = vmatpush.bf16.xpose.msra.mxu0 %v1246
  %1256 = vmatmul.bf16.gmra.mxu0 %v1243
  %v1257 = vpop.f32.mrf.mxu0
  %v1258 = vadd.f32 0.0, %v1257
  %v1259 = vpop.f32.mrf.mxu0
  %v1260 = vadd.f32 0.0, %v1259
  %1261 = vdwg.mxu0
  %v1264 = vunpack.c.l.b16 %v847
  %v1265 = vunpack.c.l.b16 %v848
  %v1266 = vpack.c.b16 %v1265, %v1264
  %1267 = vrot.lane.b32.xlu0 %v1266, 96
  %v1268 = vpop.permute.xlu0 %1267
  %v1270 = vsel %vm890, %v1266, 0
  %v1273 = vsel %vm890, %v1268, 0
  %1275 = vmatpush.bf16.xpose.msra.mxu0 0
  %1276 = vmatpush.bf16.xpose.msra.mxu0 0
  %1277 = vmatpush.bf16.xpose.msra.mxu0 0
  %1278 = vmatpush.bf16.xpose.msra.mxu0 0
  %1279 = vmatpush.bf16.xpose.msra.mxu0 0
  %1280 = vmatpush.bf16.xpose.msra.mxu0 0
  %1281 = vmatpush.bf16.xpose.msra.mxu0 0
  %1282 = vmatpush.bf16.xpose.msra.mxu0 %v1273
  %1283 = vmatmul.bf16.gmra.mxu0 %v1270
  %v1284 = vpop.f32.mrf.mxu0
  %v1285 = vadd.f32 0.0, %v1284
  %v1286 = vpop.f32.mrf.mxu0
  %v1287 = vadd.f32 0.0, %v1286
  %1288 = vdwg.mxu0
  %v1291 = vunpack.c.l.b16 %v849
  %v1292 = vunpack.c.l.b16 %v850
  %v1293 = vpack.c.b16 %v1292, %v1291
  %1294 = vrot.lane.b32.xlu0 %v1293, 96
  %v1295 = vpop.permute.xlu0 %1294
  %v1297 = vsel %vm890, %v1293, 0
  %v1300 = vsel %vm890, %v1295, 0
  %1302 = vmatpush.bf16.xpose.msra.mxu0 0
  %1303 = vmatpush.bf16.xpose.msra.mxu0 0
  %1304 = vmatpush.bf16.xpose.msra.mxu0 0
  %1305 = vmatpush.bf16.xpose.msra.mxu0 0
  %1306 = vmatpush.bf16.xpose.msra.mxu0 0
  %1307 = vmatpush.bf16.xpose.msra.mxu0 0
  %1308 = vmatpush.bf16.xpose.msra.mxu0 0
  %1309 = vmatpush.bf16.xpose.msra.mxu0 %v1300
  %1310 = vmatmul.bf16.gmra.mxu0 %v1297
  %v1311 = vpop.f32.mrf.mxu0
  %v1312 = vadd.f32 0.0, %v1311
  %v1313 = vpop.f32.mrf.mxu0
  %v1314 = vadd.f32 0.0, %v1313
  %1315 = vdwg.mxu0
  %v1318 = vunpack.c.l.b16 %v851
  %v1319 = vunpack.c.l.b16 %v852
  %v1320 = vpack.c.b16 %v1319, %v1318
  %1321 = vrot.lane.b32.xlu0 %v1320, 96
  %v1322 = vpop.permute.xlu0 %1321
  %v1324 = vsel %vm890, %v1320, 0
  %v1327 = vsel %vm890, %v1322, 0
  %1329 = vmatpush.bf16.xpose.msra.mxu0 0
  %1330 = vmatpush.bf16.xpose.msra.mxu0 0
  %1331 = vmatpush.bf16.xpose.msra.mxu0 0
  %1332 = vmatpush.bf16.xpose.msra.mxu0 0
  %1333 = vmatpush.bf16.xpose.msra.mxu0 0
  %1334 = vmatpush.bf16.xpose.msra.mxu0 0
  %1335 = vmatpush.bf16.xpose.msra.mxu0 0
  %1336 = vmatpush.bf16.xpose.msra.mxu0 %v1327
  %1337 = vmatmul.bf16.gmra.mxu0 %v1324
  %v1338 = vpop.f32.mrf.mxu0
  %v1339 = vadd.f32 0.0, %v1338
  %v1340 = vpop.f32.mrf.mxu0
  %v1341 = vadd.f32 0.0, %v1340
  %1342 = vdwg.mxu0
  %v1345 = vunpack.c.l.b16 %v853
  %v1346 = vunpack.c.l.b16 %v854
  %v1347 = vpack.c.b16 %v1346, %v1345
  %1348 = vrot.lane.b32.xlu0 %v1347, 96
  %v1349 = vpop.permute.xlu0 %1348
  %v1351 = vsel %vm890, %v1347, 0
  %v1354 = vsel %vm890, %v1349, 0
  %1356 = vmatpush.bf16.xpose.msra.mxu0 0
  %1357 = vmatpush.bf16.xpose.msra.mxu0 0
  %1358 = vmatpush.bf16.xpose.msra.mxu0 0
  %1359 = vmatpush.bf16.xpose.msra.mxu0 0
  %1360 = vmatpush.bf16.xpose.msra.mxu0 0
  %1361 = vmatpush.bf16.xpose.msra.mxu0 0
  %1362 = vmatpush.bf16.xpose.msra.mxu0 0
  %1363 = vmatpush.bf16.xpose.msra.mxu0 %v1354
  %1364 = vmatmul.bf16.gmra.mxu0 %v1351
  %v1365 = vpop.f32.mrf.mxu0
  %v1366 = vadd.f32 0.0, %v1365
  %v1367 = vpop.f32.mrf.mxu0
  %v1368 = vadd.f32 0.0, %v1367
  %1369 = vdwg.mxu0
  %v1372 = vunpack.c.l.b16 %v855
  %v1373 = vunpack.c.l.b16 %v856
  %v1374 = vpack.c.b16 %v1373, %v1372
  %1375 = vrot.lane.b32.xlu0 %v1374, 96
  %v1376 = vpop.permute.xlu0 %1375
  %v1378 = vsel %vm890, %v1374, 0
  %v1381 = vsel %vm890, %v1376, 0
  %1383 = vmatpush.bf16.xpose.msra.mxu0 0
  %1384 = vmatpush.bf16.xpose.msra.mxu0 0
  %1385 = vmatpush.bf16.xpose.msra.mxu0 0
  %1386 = vmatpush.bf16.xpose.msra.mxu0 0
  %1387 = vmatpush.bf16.xpose.msra.mxu0 0
  %1388 = vmatpush.bf16.xpose.msra.mxu0 0
  %1389 = vmatpush.bf16.xpose.msra.mxu0 0
  %1390 = vmatpush.bf16.xpose.msra.mxu0 %v1381
  %1391 = vmatmul.bf16.gmra.mxu0 %v1378
  %v1392 = vpop.f32.mrf.mxu0
  %v1393 = vadd.f32 0.0, %v1392
  %v1394 = vpop.f32.mrf.mxu0
  %v1395 = vadd.f32 0.0, %v1394
  %1396 = vdwg.mxu0
  %v1399 = vunpack.c.l.b16 %v857
  %v1400 = vunpack.c.l.b16 %v858
  %v1401 = vpack.c.b16 %v1400, %v1399
  %1402 = vrot.lane.b32.xlu0 %v1401, 96
  %v1403 = vpop.permute.xlu0 %1402
  %v1405 = vsel %vm890, %v1401, 0
  %v1408 = vsel %vm890, %v1403, 0
  %1410 = vmatpush.bf16.xpose.msra.mxu0 0
  %1411 = vmatpush.bf16.xpose.msra.mxu0 0
  %1412 = vmatpush.bf16.xpose.msra.mxu0 0
  %1413 = vmatpush.bf16.xpose.msra.mxu0 0
  %1414 = vmatpush.bf16.xpose.msra.mxu0 0
  %1415 = vmatpush.bf16.xpose.msra.mxu0 0
  %1416 = vmatpush.bf16.xpose.msra.mxu0 0
  %1417 = vmatpush.bf16.xpose.msra.mxu0 %v1408
  %1418 = vmatmul.bf16.gmra.mxu0 %v1405
  %v1419 = vpop.f32.mrf.mxu0
  %v1420 = vadd.f32 0.0, %v1419
  %v1421 = vpop.f32.mrf.mxu0
  %v1422 = vadd.f32 0.0, %v1421
  %1423 = vdwg.mxu0
  %v1426 = vunpack.c.l.b16 %v859
  %v1427 = vunpack.c.l.b16 %v860
  %v1428 = vpack.c.b16 %v1427, %v1426
  %1429 = vrot.lane.b32.xlu0 %v1428, 96
  %v1430 = vpop.permute.xlu0 %1429
  %v1432 = vsel %vm890, %v1428, 0
  %v1435 = vsel %vm890, %v1430, 0
  %1437 = vmatpush.bf16.xpose.msra.mxu0 0
  %1438 = vmatpush.bf16.xpose.msra.mxu0 0
  %1439 = vmatpush.bf16.xpose.msra.mxu0 0
  %1440 = vmatpush.bf16.xpose.msra.mxu0 0
  %1441 = vmatpush.bf16.xpose.msra.mxu0 0
  %1442 = vmatpush.bf16.xpose.msra.mxu0 0
  %1443 = vmatpush.bf16.xpose.msra.mxu0 0
  %1444 = vmatpush.bf16.xpose.msra.mxu0 %v1435
  %1445 = vmatmul.bf16.gmra.mxu0 %v1432
  %v1446 = vpop.f32.mrf.mxu0
  %v1447 = vadd.f32 0.0, %v1446
  %v1448 = vpop.f32.mrf.mxu0
  %v1449 = vadd.f32 0.0, %v1448
  %1450 = vdwg.mxu0
  %v1453 = vunpack.c.l.b16 %v861
  %v1454 = vunpack.c.l.b16 %v862
  %v1455 = vpack.c.b16 %v1454, %v1453
  %1456 = vrot.lane.b32.xlu0 %v1455, 96
  %v1457 = vpop.permute.xlu0 %1456
  %v1459 = vsel %vm890, %v1455, 0
  %v1462 = vsel %vm890, %v1457, 0
  %1464 = vmatpush.bf16.xpose.msra.mxu0 0
  %1465 = vmatpush.bf16.xpose.msra.mxu0 0
  %1466 = vmatpush.bf16.xpose.msra.mxu0 0
  %1467 = vmatpush.bf16.xpose.msra.mxu0 0
  %1468 = vmatpush.bf16.xpose.msra.mxu0 0
  %1469 = vmatpush.bf16.xpose.msra.mxu0 0
  %1470 = vmatpush.bf16.xpose.msra.mxu0 0
  %1471 = vmatpush.bf16.xpose.msra.mxu0 %v1462
  %1472 = vmatmul.bf16.gmra.mxu0 %v1459
  %v1473 = vpop.f32.mrf.mxu0
  %v1474 = vadd.f32 0.0, %v1473
  %v1475 = vpop.f32.mrf.mxu0
  %v1476 = vadd.f32 0.0, %v1475
  %1477 = vdwg.mxu0
  %v1480 = vunpack.c.l.b16 %v863
  %v1481 = vunpack.c.l.b16 %v864
  %v1482 = vpack.c.b16 %v1481, %v1480
  %1483 = vrot.lane.b32.xlu0 %v1482, 96
  %v1484 = vpop.permute.xlu0 %1483
  %v1486 = vsel %vm890, %v1482, 0
  %v1489 = vsel %vm890, %v1484, 0
  %1491 = vmatpush.bf16.xpose.msra.mxu0 0
  %1492 = vmatpush.bf16.xpose.msra.mxu0 0
  %1493 = vmatpush.bf16.xpose.msra.mxu0 0
  %1494 = vmatpush.bf16.xpose.msra.mxu0 0
  %1495 = vmatpush.bf16.xpose.msra.mxu0 0
  %1496 = vmatpush.bf16.xpose.msra.mxu0 0
  %1497 = vmatpush.bf16.xpose.msra.mxu0 0
  %1498 = vmatpush.bf16.xpose.msra.mxu0 %v1489
  %1499 = vmatmul.bf16.gmra.mxu0 %v1486
  %v1500 = vpop.f32.mrf.mxu0
  %v1501 = vadd.f32 0.0, %v1500
  %v1502 = vpop.f32.mrf.mxu0
  %v1503 = vadd.f32 0.0, %v1502
  %1504 = vdwg.mxu0
  %v1507 = vunpack.c.l.b16 %v865
  %v1508 = vunpack.c.l.b16 %v866
  %v1509 = vpack.c.b16 %v1508, %v1507
  %1510 = vrot.lane.b32.xlu0 %v1509, 96
  %v1511 = vpop.permute.xlu0 %1510
  %v1513 = vsel %vm890, %v1509, 0
  %v1516 = vsel %vm890, %v1511, 0
  %1518 = vmatpush.bf16.xpose.msra.mxu0 0
  %1519 = vmatpush.bf16.xpose.msra.mxu0 0
  %1520 = vmatpush.bf16.xpose.msra.mxu0 0
  %1521 = vmatpush.bf16.xpose.msra.mxu0 0
  %1522 = vmatpush.bf16.xpose.msra.mxu0 0
  %1523 = vmatpush.bf16.xpose.msra.mxu0 0
  %1524 = vmatpush.bf16.xpose.msra.mxu0 0
  %1525 = vmatpush.bf16.xpose.msra.mxu0 %v1516
  %1526 = vmatmul.bf16.gmra.mxu0 %v1513
  %v1527 = vpop.f32.mrf.mxu0
  %v1528 = vadd.f32 0.0, %v1527
  %v1529 = vpop.f32.mrf.mxu0
  %v1530 = vadd.f32 0.0, %v1529
  %1531 = vdwg.mxu0
  %v1534 = vunpack.c.l.b16 %v867
  %v1535 = vunpack.c.l.b16 %v868
  %v1536 = vpack.c.b16 %v1535, %v1534
  %1537 = vrot.lane.b32.xlu0 %v1536, 96
  %v1538 = vpop.permute.xlu0 %1537
  %v1540 = vsel %vm890, %v1536, 0
  %v1543 = vsel %vm890, %v1538, 0
  %1545 = vmatpush.bf16.xpose.msra.mxu0 0
  %1546 = vmatpush.bf16.xpose.msra.mxu0 0
  %1547 = vmatpush.bf16.xpose.msra.mxu0 0
  %1548 = vmatpush.bf16.xpose.msra.mxu0 0
  %1549 = vmatpush.bf16.xpose.msra.mxu0 0
  %1550 = vmatpush.bf16.xpose.msra.mxu0 0
  %1551 = vmatpush.bf16.xpose.msra.mxu0 0
  %1552 = vmatpush.bf16.xpose.msra.mxu0 %v1543
  %1553 = vmatmul.bf16.gmra.mxu0 %v1540
  %v1554 = vpop.f32.mrf.mxu0
  %v1555 = vadd.f32 0.0, %v1554
  %v1556 = vpop.f32.mrf.mxu0
  %v1557 = vadd.f32 0.0, %v1556
  %1558 = vdwg.mxu0
  %v1561 = vunpack.c.l.b16 %v869
  %v1562 = vunpack.c.l.b16 %v870
  %v1563 = vpack.c.b16 %v1562, %v1561
  %1564 = vrot.lane.b32.xlu0 %v1563, 96
  %v1565 = vpop.permute.xlu0 %1564
  %v1567 = vsel %vm890, %v1563, 0
  %v1570 = vsel %vm890, %v1565, 0
  %1572 = vmatpush.bf16.xpose.msra.mxu0 0
  %1573 = vmatpush.bf16.xpose.msra.mxu0 0
  %1574 = vmatpush.bf16.xpose.msra.mxu0 0
  %1575 = vmatpush.bf16.xpose.msra.mxu0 0
  %1576 = vmatpush.bf16.xpose.msra.mxu0 0
  %1577 = vmatpush.bf16.xpose.msra.mxu0 0
  %1578 = vmatpush.bf16.xpose.msra.mxu0 0
  %1579 = vmatpush.bf16.xpose.msra.mxu0 %v1570
  %1580 = vmatmul.bf16.gmra.mxu0 %v1567
  %v1581 = vpop.f32.mrf.mxu0
  %v1582 = vadd.f32 0.0, %v1581
  %v1583 = vpop.f32.mrf.mxu0
  %v1584 = vadd.f32 0.0, %v1583
  %1585 = vdwg.mxu0
  %v1588 = vunpack.c.l.b16 %v871
  %v1589 = vunpack.c.l.b16 %v872
  %v1590 = vpack.c.b16 %v1589, %v1588
  %1591 = vrot.lane.b32.xlu0 %v1590, 96
  %v1592 = vpop.permute.xlu0 %1591
  %v1594 = vsel %vm890, %v1590, 0
  %v1597 = vsel %vm890, %v1592, 0
  %1599 = vmatpush.bf16.xpose.msra.mxu0 0
  %1600 = vmatpush.bf16.xpose.msra.mxu0 0
  %1601 = vmatpush.bf16.xpose.msra.mxu0 0
  %1602 = vmatpush.bf16.xpose.msra.mxu0 0
  %1603 = vmatpush.bf16.xpose.msra.mxu0 0
  %1604 = vmatpush.bf16.xpose.msra.mxu0 0
  %1605 = vmatpush.bf16.xpose.msra.mxu0 0
  %1606 = vmatpush.bf16.xpose.msra.mxu0 %v1597
  %1607 = vmatmul.bf16.gmra.mxu0 %v1594
  %v1608 = vpop.f32.mrf.mxu0
  %v1609 = vadd.f32 0.0, %v1608
  %v1610 = vpop.f32.mrf.mxu0
  %v1611 = vadd.f32 0.0, %v1610
  %1612 = vdwg.mxu0
  %v1615 = vunpack.c.l.b16 %v873
  %v1616 = vunpack.c.l.b16 %v874
  %v1617 = vpack.c.b16 %v1616, %v1615
  %1618 = vrot.lane.b32.xlu0 %v1617, 96
  %v1619 = vpop.permute.xlu0 %1618
  %v1621 = vsel %vm890, %v1617, 0
  %v1624 = vsel %vm890, %v1619, 0
  %1626 = vmatpush.bf16.xpose.msra.mxu0 0
  %1627 = vmatpush.bf16.xpose.msra.mxu0 0
  %1628 = vmatpush.bf16.xpose.msra.mxu0 0
  %1629 = vmatpush.bf16.xpose.msra.mxu0 0
  %1630 = vmatpush.bf16.xpose.msra.mxu0 0
  %1631 = vmatpush.bf16.xpose.msra.mxu0 0
  %1632 = vmatpush.bf16.xpose.msra.mxu0 0
  %1633 = vmatpush.bf16.xpose.msra.mxu0 %v1624
  %1634 = vmatmul.bf16.gmra.mxu0 %v1621
  %v1635 = vpop.f32.mrf.mxu0
  %v1636 = vadd.f32 0.0, %v1635
  %v1637 = vpop.f32.mrf.mxu0
  %v1638 = vadd.f32 0.0, %v1637
  %1639 = vdwg.mxu0
  %v1642 = vunpack.c.l.b16 %v875
  %v1643 = vunpack.c.l.b16 %v876
  %v1644 = vpack.c.b16 %v1643, %v1642
  %1645 = vrot.lane.b32.xlu0 %v1644, 96
  %v1646 = vpop.permute.xlu0 %1645
  %v1648 = vsel %vm890, %v1644, 0
  %v1651 = vsel %vm890, %v1646, 0
  %1653 = vmatpush.bf16.xpose.msra.mxu0 0
  %1654 = vmatpush.bf16.xpose.msra.mxu0 0
  %1655 = vmatpush.bf16.xpose.msra.mxu0 0
  %1656 = vmatpush.bf16.xpose.msra.mxu0 0
  %1657 = vmatpush.bf16.xpose.msra.mxu0 0
  %1658 = vmatpush.bf16.xpose.msra.mxu0 0
  %1659 = vmatpush.bf16.xpose.msra.mxu0 0
  %1660 = vmatpush.bf16.xpose.msra.mxu0 %v1651
  %1661 = vmatmul.bf16.gmra.mxu0 %v1648
  %v1662 = vpop.f32.mrf.mxu0
  %v1663 = vadd.f32 0.0, %v1662
  %v1664 = vpop.f32.mrf.mxu0
  %v1665 = vadd.f32 0.0, %v1664
  %1666 = vdwg.mxu0
  %v1669 = vunpack.c.l.b16 %v877
  %v1670 = vunpack.c.l.b16 %v878
  %v1671 = vpack.c.b16 %v1670, %v1669
  %1672 = vrot.lane.b32.xlu0 %v1671, 96
  %v1673 = vpop.permute.xlu0 %1672
  %v1675 = vsel %vm890, %v1671, 0
  %v1678 = vsel %vm890, %v1673, 0
  %1680 = vmatpush.bf16.xpose.msra.mxu0 0
  %1681 = vmatpush.bf16.xpose.msra.mxu0 0
  %1682 = vmatpush.bf16.xpose.msra.mxu0 0
  %1683 = vmatpush.bf16.xpose.msra.mxu0 0
  %1684 = vmatpush.bf16.xpose.msra.mxu0 0
  %1685 = vmatpush.bf16.xpose.msra.mxu0 0
  %1686 = vmatpush.bf16.xpose.msra.mxu0 0
  %1687 = vmatpush.bf16.xpose.msra.mxu0 %v1678
  %1688 = vmatmul.bf16.gmra.mxu0 %v1675
  %v1689 = vpop.f32.mrf.mxu0
  %v1690 = vadd.f32 0.0, %v1689
  %v1691 = vpop.f32.mrf.mxu0
  %v1692 = vadd.f32 0.0, %v1691
  %1693 = vdwg.mxu0
  %v1696 = vunpack.c.l.b16 %v879
  %v1697 = vunpack.c.l.b16 %v880
  %v1698 = vpack.c.b16 %v1697, %v1696
  %1699 = vrot.lane.b32.xlu0 %v1698, 96
  %v1700 = vpop.permute.xlu0 %1699
  %v1702 = vsel %vm890, %v1698, 0
  %v1705 = vsel %vm890, %v1700, 0
  %1707 = vmatpush.bf16.xpose.msra.mxu0 0
  %1708 = vmatpush.bf16.xpose.msra.mxu0 0
  %1709 = vmatpush.bf16.xpose.msra.mxu0 0
  %1710 = vmatpush.bf16.xpose.msra.mxu0 0
  %1711 = vmatpush.bf16.xpose.msra.mxu0 0
  %1712 = vmatpush.bf16.xpose.msra.mxu0 0
  %1713 = vmatpush.bf16.xpose.msra.mxu0 0
  %1714 = vmatpush.bf16.xpose.msra.mxu0 %v1705
  %1715 = vmatmul.bf16.gmra.mxu0 %v1702
  %v1716 = vpop.f32.mrf.mxu0
  %v1717 = vadd.f32 0.0, %v1716
  %v1718 = vpop.f32.mrf.mxu0
  %v1719 = vadd.f32 0.0, %v1718
  %1720 = vdwg.mxu0
  %v1723 = vunpack.c.l.b16 %v881
  %v1724 = vunpack.c.l.b16 %v882
  %v1725 = vpack.c.b16 %v1724, %v1723
  %1726 = vrot.lane.b32.xlu0 %v1725, 96
  %v1727 = vpop.permute.xlu0 %1726
  %v1729 = vsel %vm890, %v1725, 0
  %v1732 = vsel %vm890, %v1727, 0
  %1734 = vmatpush.bf16.xpose.msra.mxu0 0
  %1735 = vmatpush.bf16.xpose.msra.mxu0 0
  %1736 = vmatpush.bf16.xpose.msra.mxu0 0
  %1737 = vmatpush.bf16.xpose.msra.mxu0 0
  %1738 = vmatpush.bf16.xpose.msra.mxu0 0
  %1739 = vmatpush.bf16.xpose.msra.mxu0 0
  %1740 = vmatpush.bf16.xpose.msra.mxu0 0
  %1741 = vmatpush.bf16.xpose.msra.mxu0 %v1732
  %1742 = vmatmul.bf16.gmra.mxu0 %v1729
  %v1743 = vpop.f32.mrf.mxu0
  %v1744 = vadd.f32 0.0, %v1743
  %v1745 = vpop.f32.mrf.mxu0
  %v1746 = vadd.f32 0.0, %v1745
  %1747 = vdwg.mxu0
  %vm1748 = vcmask 130048
  %v1749 = vsel %vm1748, %v907, -inf
  %1750 = vmax.xlane.f32.xlu0 %v1749
  %v1751 = vpop.xlane.xlu0 %1750
  %v1752 = vsel %vm1748, %v909, -inf
  %1753 = vmax.xlane.f32.xlu0 %v1752
  %v1754 = vpop.xlane.xlu0 %1753
  %v1755 = vsel %vm1748, %v934, -inf
  %1756 = vmax.xlane.f32.xlu0 %v1755
  %v1757 = vpop.xlane.xlu0 %1756
  %v1758 = vsel %vm1748, %v936, -inf
  %1759 = vmax.xlane.f32.xlu0 %v1758
  %v1760 = vpop.xlane.xlu0 %1759
  %v1761 = vsel %vm1748, %v961, -inf
  %1762 = vmax.xlane.f32.xlu0 %v1761
  %v1763 = vpop.xlane.xlu0 %1762
  %v1764 = vsel %vm1748, %v963, -inf
  %1765 = vmax.xlane.f32.xlu0 %v1764
  %v1766 = vpop.xlane.xlu0 %1765
  %v1767 = vsel %vm1748, %v988, -inf
  %1768 = vmax.xlane.f32.xlu0 %v1767
  %v1769 = vpop.xlane.xlu0 %1768
  %v1770 = vsel %vm1748, %v990, -inf
  %1771 = vmax.xlane.f32.xlu0 %v1770
  %v1772 = vpop.xlane.xlu0 %1771
  %v1773 = vsel %vm1748, %v1015, -inf
  %1774 = vmax.xlane.f32.xlu0 %v1773
  %v1775 = vpop.xlane.xlu0 %1774
  %v1776 = vsel %vm1748, %v1017, -inf
  %1777 = vmax.xlane.f32.xlu0 %v1776
  %v1778 = vpop.xlane.xlu0 %1777
  %v1779 = vsel %vm1748, %v1042, -inf
  %1780 = vmax.xlane.f32.xlu0 %v1779
  %v1781 = vpop.xlane.xlu0 %1780
  %v1782 = vsel %vm1748, %v1044, -inf
  %1783 = vmax.xlane.f32.xlu0 %v1782
  %v1784 = vpop.xlane.xlu0 %1783
  %v1785 = vsel %vm1748, %v1069, -inf
  %1786 = vmax.xlane.f32.xlu0 %v1785
  %v1787 = vpop.xlane.xlu0 %1786
  %v1788 = vsel %vm1748, %v1071, -inf
  %1789 = vmax.xlane.f32.xlu0 %v1788
  %v1790 = vpop.xlane.xlu0 %1789
  %v1791 = vsel %vm1748, %v1096, -inf
  %1792 = vmax.xlane.f32.xlu0 %v1791
  %v1793 = vpop.xlane.xlu0 %1792
  %v1794 = vsel %vm1748, %v1098, -inf
  %1795 = vmax.xlane.f32.xlu0 %v1794
  %v1796 = vpop.xlane.xlu0 %1795
  %v1797 = vsel %vm1748, %v1123, -inf
  %1798 = vmax.xlane.f32.xlu0 %v1797
  %v1799 = vpop.xlane.xlu0 %1798
  %v1800 = vsel %vm1748, %v1125, -inf
  %1801 = vmax.xlane.f32.xlu0 %v1800
  %v1802 = vpop.xlane.xlu0 %1801
  %v1803 = vsel %vm1748, %v1150, -inf
  %1804 = vmax.xlane.f32.xlu0 %v1803
  %v1805 = vpop.xlane.xlu0 %1804
  %v1806 = vsel %vm1748, %v1152, -inf
  %1807 = vmax.xlane.f32.xlu0 %v1806
  %v1808 = vpop.xlane.xlu0 %1807
  %v1809 = vsel %vm1748, %v1177, -inf
  %1810 = vmax.xlane.f32.xlu0 %v1809
  %v1811 = vpop.xlane.xlu0 %1810
  %v1812 = vsel %vm1748, %v1179, -inf
  %1813 = vmax.xlane.f32.xlu0 %v1812
  %v1814 = vpop.xlane.xlu0 %1813
  %v1815 = vsel %vm1748, %v1204, -inf
  %1816 = vmax.xlane.f32.xlu0 %v1815
  %v1817 = vpop.xlane.xlu0 %1816
  %v1818 = vsel %vm1748, %v1206, -inf
  %1819 = vmax.xlane.f32.xlu0 %v1818
  %v1820 = vpop.xlane.xlu0 %1819
  %v1821 = vsel %vm1748, %v1231, -inf
  %1822 = vmax.xlane.f32.xlu0 %v1821
  %v1823 = vpop.xlane.xlu0 %1822
  %v1824 = vsel %vm1748, %v1233, -inf
  %1825 = vmax.xlane.f32.xlu0 %v1824
  %v1826 = vpop.xlane.xlu0 %1825
  %v1827 = vsel %vm1748, %v1258, -inf
  %1828 = vmax.xlane.f32.xlu0 %v1827
  %v1829 = vpop.xlane.xlu0 %1828
  %v1830 = vsel %vm1748, %v1260, -inf
  %1831 = vmax.xlane.f32.xlu0 %v1830
  %v1832 = vpop.xlane.xlu0 %1831
  %v1833 = vsel %vm1748, %v1285, -inf
  %1834 = vmax.xlane.f32.xlu0 %v1833
  %v1835 = vpop.xlane.xlu0 %1834
  %v1836 = vsel %vm1748, %v1287, -inf
  %1837 = vmax.xlane.f32.xlu0 %v1836
  %v1838 = vpop.xlane.xlu0 %1837
  %v1839 = vsel %vm1748, %v1312, -inf
  %1840 = vmax.xlane.f32.xlu0 %v1839
  %v1841 = vpop.xlane.xlu0 %1840
  %v1842 = vsel %vm1748, %v1314, -inf
  %1843 = vmax.xlane.f32.xlu0 %v1842
  %v1844 = vpop.xlane.xlu0 %1843
  %v1845 = vsel %vm1748, %v1339, -inf
  %1846 = vmax.xlane.f32.xlu0 %v1845
  %v1847 = vpop.xlane.xlu0 %1846
  %v1848 = vsel %vm1748, %v1341, -inf
  %1849 = vmax.xlane.f32.xlu0 %v1848
  %v1850 = vpop.xlane.xlu0 %1849
  %v1851 = vsel %vm1748, %v1366, -inf
  %1852 = vmax.xlane.f32.xlu0 %v1851
  %v1853 = vpop.xlane.xlu0 %1852
  %v1854 = vsel %vm1748, %v1368, -inf
  %1855 = vmax.xlane.f32.xlu0 %v1854
  %v1856 = vpop.xlane.xlu0 %1855
  %v1857 = vsel %vm1748, %v1393, -inf
  %1858 = vmax.xlane.f32.xlu0 %v1857
  %v1859 = vpop.xlane.xlu0 %1858
  %v1860 = vsel %vm1748, %v1395, -inf
  %1861 = vmax.xlane.f32.xlu0 %v1860
  %v1862 = vpop.xlane.xlu0 %1861
  %v1863 = vsel %vm1748, %v1420, -inf
  %1864 = vmax.xlane.f32.xlu0 %v1863
  %v1865 = vpop.xlane.xlu0 %1864
  %v1866 = vsel %vm1748, %v1422, -inf
  %1867 = vmax.xlane.f32.xlu0 %v1866
  %v1868 = vpop.xlane.xlu0 %1867
  %v1869 = vsel %vm1748, %v1447, -inf
  %1870 = vmax.xlane.f32.xlu0 %v1869
  %v1871 = vpop.xlane.xlu0 %1870
  %v1872 = vsel %vm1748, %v1449, -inf
  %1873 = vmax.xlane.f32.xlu0 %v1872
  %v1874 = vpop.xlane.xlu0 %1873
  %v1875 = vsel %vm1748, %v1474, -inf
  %1876 = vmax.xlane.f32.xlu0 %v1875
  %v1877 = vpop.xlane.xlu0 %1876
  %v1878 = vsel %vm1748, %v1476, -inf
  %1879 = vmax.xlane.f32.xlu0 %v1878
  %v1880 = vpop.xlane.xlu0 %1879
  %v1881 = vsel %vm1748, %v1501, -inf
  %1882 = vmax.xlane.f32.xlu0 %v1881
  %v1883 = vpop.xlane.xlu0 %1882
  %v1884 = vsel %vm1748, %v1503, -inf
  %1885 = vmax.xlane.f32.xlu0 %v1884
  %v1886 = vpop.xlane.xlu0 %1885
  %v1887 = vsel %vm1748, %v1528, -inf
  %1888 = vmax.xlane.f32.xlu0 %v1887
  %v1889 = vpop.xlane.xlu0 %1888
  %v1890 = vsel %vm1748, %v1530, -inf
  %1891 = vmax.xlane.f32.xlu0 %v1890
  %v1892 = vpop.xlane.xlu0 %1891
  %v1893 = vsel %vm1748, %v1555, -inf
  %1894 = vmax.xlane.f32.xlu0 %v1893
  %v1895 = vpop.xlane.xlu0 %1894
  %v1896 = vsel %vm1748, %v1557, -inf
  %1897 = vmax.xlane.f32.xlu0 %v1896
  %v1898 = vpop.xlane.xlu0 %1897
  %v1899 = vsel %vm1748, %v1582, -inf
  %1900 = vmax.xlane.f32.xlu0 %v1899
  %v1901 = vpop.xlane.xlu0 %1900
  %v1902 = vsel %vm1748, %v1584, -inf
  %1903 = vmax.xlane.f32.xlu0 %v1902
  %v1904 = vpop.xlane.xlu0 %1903
  %v1905 = vsel %vm1748, %v1609, -inf
  %1906 = vmax.xlane.f32.xlu0 %v1905
  %v1907 = vpop.xlane.xlu0 %1906
  %v1908 = vsel %vm1748, %v1611, -inf
  %1909 = vmax.xlane.f32.xlu0 %v1908
  %v1910 = vpop.xlane.xlu0 %1909
  %v1911 = vsel %vm1748, %v1636, -inf
  %1912 = vmax.xlane.f32.xlu0 %v1911
  %v1913 = vpop.xlane.xlu0 %1912
  %v1914 = vsel %vm1748, %v1638, -inf
  %1915 = vmax.xlane.f32.xlu0 %v1914
  %v1916 = vpop.xlane.xlu0 %1915
  %v1917 = vsel %vm1748, %v1663, -inf
  %1918 = vmax.xlane.f32.xlu0 %v1917
  %v1919 = vpop.xlane.xlu0 %1918
  %v1920 = vsel %vm1748, %v1665, -inf
  %1921 = vmax.xlane.f32.xlu0 %v1920
  %v1922 = vpop.xlane.xlu0 %1921
  %v1923 = vsel %vm1748, %v1690, -inf
  %1924 = vmax.xlane.f32.xlu0 %v1923
  %v1925 = vpop.xlane.xlu0 %1924
  %v1926 = vsel %vm1748, %v1692, -inf
  %1927 = vmax.xlane.f32.xlu0 %v1926
  %v1928 = vpop.xlane.xlu0 %1927
  %v1929 = vsel %vm1748, %v1717, -inf
  %1930 = vmax.xlane.f32.xlu0 %v1929
  %v1931 = vpop.xlane.xlu0 %1930
  %v1932 = vsel %vm1748, %v1719, -inf
  %1933 = vmax.xlane.f32.xlu0 %v1932
  %v1934 = vpop.xlane.xlu0 %1933
  %v1935 = vsel %vm1748, %v1744, -inf
  %1936 = vmax.xlane.f32.xlu0 %v1935
  %v1937 = vpop.xlane.xlu0 %1936
  %v1938 = vsel %vm1748, %v1746, -inf
  %1939 = vmax.xlane.f32.xlu0 %v1938
  %v1940 = vpop.xlane.xlu0 %1939
  %v1941 = vsub.f32 %v907, %v1751
  %v1942 = vsub.f32 %v909, %v1754
  %v1943 = vsub.f32 %v934, %v1757
  %v1944 = vsub.f32 %v936, %v1760
  %v1945 = vsub.f32 %v961, %v1763
  %v1946 = vsub.f32 %v963, %v1766
  %v1947 = vsub.f32 %v988, %v1769
  %v1948 = vsub.f32 %v990, %v1772
  %v1949 = vsub.f32 %v1015, %v1775
  %v1950 = vsub.f32 %v1017, %v1778
  %v1951 = vsub.f32 %v1042, %v1781
  %v1952 = vsub.f32 %v1044, %v1784
  %v1953 = vsub.f32 %v1069, %v1787
  %v1954 = vsub.f32 %v1071, %v1790
  %v1955 = vsub.f32 %v1096, %v1793
  %v1956 = vsub.f32 %v1098, %v1796
  %v1957 = vsub.f32 %v1123, %v1799
  %v1958 = vsub.f32 %v1125, %v1802
  %v1959 = vsub.f32 %v1150, %v1805
  %v1960 = vsub.f32 %v1152, %v1808
  %v1961 = vsub.f32 %v1177, %v1811
  %v1962 = vsub.f32 %v1179, %v1814
  %v1963 = vsub.f32 %v1204, %v1817
  %v1964 = vsub.f32 %v1206, %v1820
  %v1965 = vsub.f32 %v1231, %v1823
  %v1966 = vsub.f32 %v1233, %v1826
  %v1967 = vsub.f32 %v1258, %v1829
  %v1968 = vsub.f32 %v1260, %v1832
  %v1969 = vsub.f32 %v1285, %v1835
  %v1970 = vsub.f32 %v1287, %v1838
  %v1971 = vsub.f32 %v1312, %v1841
  %v1972 = vsub.f32 %v1314, %v1844
  %v1973 = vsub.f32 %v1339, %v1847
  %v1974 = vsub.f32 %v1341, %v1850
  %v1975 = vsub.f32 %v1366, %v1853
  %v1976 = vsub.f32 %v1368, %v1856
  %v1977 = vsub.f32 %v1393, %v1859
  %v1978 = vsub.f32 %v1395, %v1862
  %v1979 = vsub.f32 %v1420, %v1865
  %v1980 = vsub.f32 %v1422, %v1868
  %v1981 = vsub.f32 %v1447, %v1871
  %v1982 = vsub.f32 %v1449, %v1874
  %v1983 = vsub.f32 %v1474, %v1877
  %v1984 = vsub.f32 %v1476, %v1880
  %v1985 = vsub.f32 %v1501, %v1883
  %v1986 = vsub.f32 %v1503, %v1886
  %v1987 = vsub.f32 %v1528, %v1889
  %v1988 = vsub.f32 %v1530, %v1892
  %v1989 = vsub.f32 %v1555, %v1895
  %v1990 = vsub.f32 %v1557, %v1898
  %v1991 = vsub.f32 %v1582, %v1901
  %v1992 = vsub.f32 %v1584, %v1904
  %v1993 = vsub.f32 %v1609, %v1907
  %v1994 = vsub.f32 %v1611, %v1910
  %v1995 = vsub.f32 %v1636, %v1913
  %v1996 = vsub.f32 %v1638, %v1916
  %v1997 = vsub.f32 %v1663, %v1919
  %v1998 = vsub.f32 %v1665, %v1922
  %v1999 = vsub.f32 %v1690, %v1925
  %v2000 = vsub.f32 %v1692, %v1928
  %v2001 = vsub.f32 %v1717, %v1931
  %v2002 = vsub.f32 %v1719, %v1934
  %v2003 = vsub.f32 %v1744, %v1937
  %v2004 = vsub.f32 %v1746, %v1940
  %v2005 = vmul.f32 %v1941, 1.442695
  %v2006 = vpow.pop %v2005
  %v2007 = vmul.f32 %v1942, 1.442695
  %v2008 = vpow.pop %v2007
  %v2009 = vmul.f32 %v1943, 1.442695
  %v2010 = vpow.pop %v2009
  %v2011 = vmul.f32 %v1944, 1.442695
  %v2012 = vpow.pop %v2011
  %v2013 = vmul.f32 %v1945, 1.442695
  %v2014 = vpow.pop %v2013
  %v2015 = vmul.f32 %v1946, 1.442695
  %v2016 = vpow.pop %v2015
  %v2017 = vmul.f32 %v1947, 1.442695
  %v2018 = vpow.pop %v2017
  %v2019 = vmul.f32 %v1948, 1.442695
  %v2020 = vpow.pop %v2019
  %v2021 = vmul.f32 %v1949, 1.442695
  %v2022 = vpow.pop %v2021
  %v2023 = vmul.f32 %v1950, 1.442695
  %v2024 = vpow.pop %v2023
  %v2025 = vmul.f32 %v1951, 1.442695
  %v2026 = vpow.pop %v2025
  %v2027 = vmul.f32 %v1952, 1.442695
  %v2028 = vpow.pop %v2027
  %v2029 = vmul.f32 %v1953, 1.442695
  %v2030 = vpow.pop %v2029
  %v2031 = vmul.f32 %v1954, 1.442695
  %v2032 = vpow.pop %v2031
  %v2033 = vmul.f32 %v1955, 1.442695
  %v2034 = vpow.pop %v2033
  %v2035 = vmul.f32 %v1956, 1.442695
  %v2036 = vpow.pop %v2035
  %v2037 = vmul.f32 %v1957, 1.442695
  %v2038 = vpow.pop %v2037
  %v2039 = vmul.f32 %v1958, 1.442695
  %v2040 = vpow.pop %v2039
  %v2041 = vmul.f32 %v1959, 1.442695
  %v2042 = vpow.pop %v2041
  %v2043 = vmul.f32 %v1960, 1.442695
  %v2044 = vpow.pop %v2043
  %v2045 = vmul.f32 %v1961, 1.442695
  %v2046 = vpow.pop %v2045
  %v2047 = vmul.f32 %v1962, 1.442695
  %v2048 = vpow.pop %v2047
  %v2049 = vmul.f32 %v1963, 1.442695
  %v2050 = vpow.pop %v2049
  %v2051 = vmul.f32 %v1964, 1.442695
  %v2052 = vpow.pop %v2051
  %v2053 = vmul.f32 %v1965, 1.442695
  %v2054 = vpow.pop %v2053
  %v2055 = vmul.f32 %v1966, 1.442695
  %v2056 = vpow.pop %v2055
  %v2057 = vmul.f32 %v1967, 1.442695
  %v2058 = vpow.pop %v2057
  %v2059 = vmul.f32 %v1968, 1.442695
  %v2060 = vpow.pop %v2059
  %v2061 = vmul.f32 %v1969, 1.442695
  %v2062 = vpow.pop %v2061
  %v2063 = vmul.f32 %v1970, 1.442695
  %v2064 = vpow.pop %v2063
  %v2065 = vmul.f32 %v1971, 1.442695
  %v2066 = vpow.pop %v2065
  %v2067 = vmul.f32 %v1972, 1.442695
  %v2068 = vpow.pop %v2067
  %v2069 = vmul.f32 %v1973, 1.442695
  %v2070 = vpow.pop %v2069
  %v2071 = vmul.f32 %v1974, 1.442695
  %v2072 = vpow.pop %v2071
  %v2073 = vmul.f32 %v1975, 1.442695
  %v2074 = vpow.pop %v2073
  %v2075 = vmul.f32 %v1976, 1.442695
  %v2076 = vpow.pop %v2075
  %v2077 = vmul.f32 %v1977, 1.442695
  %v2078 = vpow.pop %v2077
  %v2079 = vmul.f32 %v1978, 1.442695
  %v2080 = vpow.pop %v2079
  %v2081 = vmul.f32 %v1979, 1.442695
  %v2082 = vpow.pop %v2081
  %v2083 = vmul.f32 %v1980, 1.442695
  %v2084 = vpow.pop %v2083
  %v2085 = vmul.f32 %v1981, 1.442695
  %v2086 = vpow.pop %v2085
  %v2087 = vmul.f32 %v1982, 1.442695
  %v2088 = vpow.pop %v2087
  %v2089 = vmul.f32 %v1983, 1.442695
  %v2090 = vpow.pop %v2089
  %v2091 = vmul.f32 %v1984, 1.442695
  %v2092 = vpow.pop %v2091
  %v2093 = vmul.f32 %v1985, 1.442695
  %v2094 = vpow.pop %v2093
  %v2095 = vmul.f32 %v1986, 1.442695
  %v2096 = vpow.pop %v2095
  %v2097 = vmul.f32 %v1987, 1.442695
  %v2098 = vpow.pop %v2097
  %v2099 = vmul.f32 %v1988, 1.442695
  %v2100 = vpow.pop %v2099
  %v2101 = vmul.f32 %v1989, 1.442695
  %v2102 = vpow.pop %v2101
  %v2103 = vmul.f32 %v1990, 1.442695
  %v2104 = vpow.pop %v2103
  %v2105 = vmul.f32 %v1991, 1.442695
  %v2106 = vpow.pop %v2105
  %v2107 = vmul.f32 %v1992, 1.442695
  %v2108 = vpow.pop %v2107
  %v2109 = vmul.f32 %v1993, 1.442695
  %v2110 = vpow.pop %v2109
  %v2111 = vmul.f32 %v1994, 1.442695
  %v2112 = vpow.pop %v2111
  %v2113 = vmul.f32 %v1995, 1.442695
  %v2114 = vpow.pop %v2113
  %v2115 = vmul.f32 %v1996, 1.442695
  %v2116 = vpow.pop %v2115
  %v2117 = vmul.f32 %v1997, 1.442695
  %v2118 = vpow.pop %v2117
  %v2119 = vmul.f32 %v1998, 1.442695
  %v2120 = vpow.pop %v2119
  %v2121 = vmul.f32 %v1999, 1.442695
  %v2122 = vpow.pop %v2121
  %v2123 = vmul.f32 %v2000, 1.442695
  %v2124 = vpow.pop %v2123
  %v2125 = vmul.f32 %v2001, 1.442695
  %v2126 = vpow.pop %v2125
  %v2127 = vmul.f32 %v2002, 1.442695
  %v2128 = vpow.pop %v2127
  %v2129 = vmul.f32 %v2003, 1.442695
  %v2130 = vpow.pop %v2129
  %v2131 = vmul.f32 %v2004, 1.442695
  %v2132 = vpow.pop %v2131
  %v2133 = vsel %vm1748, %v2006, 0.0
  %2134 = vadd.xlane.f32.xlu0 %v2133
  %v2135 = vpop.xlane.xlu0 %2134
  %v2136 = vsel %vm1748, %v2008, 0.0
  %2137 = vadd.xlane.f32.xlu0 %v2136
  %v2138 = vpop.xlane.xlu0 %2137
  %v2139 = vsel %vm1748, %v2010, 0.0
  %2140 = vadd.xlane.f32.xlu0 %v2139
  %v2141 = vpop.xlane.xlu0 %2140
  %v2142 = vsel %vm1748, %v2012, 0.0
  %2143 = vadd.xlane.f32.xlu0 %v2142
  %v2144 = vpop.xlane.xlu0 %2143
  %v2145 = vsel %vm1748, %v2014, 0.0
  %2146 = vadd.xlane.f32.xlu0 %v2145
  %v2147 = vpop.xlane.xlu0 %2146
  %v2148 = vsel %vm1748, %v2016, 0.0
  %2149 = vadd.xlane.f32.xlu0 %v2148
  %v2150 = vpop.xlane.xlu0 %2149
  %v2151 = vsel %vm1748, %v2018, 0.0
  %2152 = vadd.xlane.f32.xlu0 %v2151
  %v2153 = vpop.xlane.xlu0 %2152
  %v2154 = vsel %vm1748, %v2020, 0.0
  %2155 = vadd.xlane.f32.xlu0 %v2154
  %v2156 = vpop.xlane.xlu0 %2155
  %v2157 = vsel %vm1748, %v2022, 0.0
  %2158 = vadd.xlane.f32.xlu0 %v2157
  %v2159 = vpop.xlane.xlu0 %2158
  %v2160 = vsel %vm1748, %v2024, 0.0
  %2161 = vadd.xlane.f32.xlu0 %v2160
  %v2162 = vpop.xlane.xlu0 %2161
  %v2163 = vsel %vm1748, %v2026, 0.0
  %2164 = vadd.xlane.f32.xlu0 %v2163
  %v2165 = vpop.xlane.xlu0 %2164
  %v2166 = vsel %vm1748, %v2028, 0.0
  %2167 = vadd.xlane.f32.xlu0 %v2166
  %v2168 = vpop.xlane.xlu0 %2167
  %v2169 = vsel %vm1748, %v2030, 0.0
  %2170 = vadd.xlane.f32.xlu0 %v2169
  %v2171 = vpop.xlane.xlu0 %2170
  %v2172 = vsel %vm1748, %v2032, 0.0
  %2173 = vadd.xlane.f32.xlu0 %v2172
  %v2174 = vpop.xlane.xlu0 %2173
  %v2175 = vsel %vm1748, %v2034, 0.0
  %2176 = vadd.xlane.f32.xlu0 %v2175
  %v2177 = vpop.xlane.xlu0 %2176
  %v2178 = vsel %vm1748, %v2036, 0.0
  %2179 = vadd.xlane.f32.xlu0 %v2178
  %v2180 = vpop.xlane.xlu0 %2179
  %v2181 = vsel %vm1748, %v2038, 0.0
  %2182 = vadd.xlane.f32.xlu0 %v2181
  %v2183 = vpop.xlane.xlu0 %2182
  %v2184 = vsel %vm1748, %v2040, 0.0
  %2185 = vadd.xlane.f32.xlu0 %v2184
  %v2186 = vpop.xlane.xlu0 %2185
  %v2187 = vsel %vm1748, %v2042, 0.0
  %2188 = vadd.xlane.f32.xlu0 %v2187
  %v2189 = vpop.xlane.xlu0 %2188
  %v2190 = vsel %vm1748, %v2044, 0.0
  %2191 = vadd.xlane.f32.xlu0 %v2190
  %v2192 = vpop.xlane.xlu0 %2191
  %v2193 = vsel %vm1748, %v2046, 0.0
  %2194 = vadd.xlane.f32.xlu0 %v2193
  %v2195 = vpop.xlane.xlu0 %2194
  %v2196 = vsel %vm1748, %v2048, 0.0
  %2197 = vadd.xlane.f32.xlu0 %v2196
  %v2198 = vpop.xlane.xlu0 %2197
  %v2199 = vsel %vm1748, %v2050, 0.0
  %2200 = vadd.xlane.f32.xlu0 %v2199
  %v2201 = vpop.xlane.xlu0 %2200
  %v2202 = vsel %vm1748, %v2052, 0.0
  %2203 = vadd.xlane.f32.xlu0 %v2202
  %v2204 = vpop.xlane.xlu0 %2203
  %v2205 = vsel %vm1748, %v2054, 0.0
  %2206 = vadd.xlane.f32.xlu0 %v2205
  %v2207 = vpop.xlane.xlu0 %2206
  %v2208 = vsel %vm1748, %v2056, 0.0
  %2209 = vadd.xlane.f32.xlu0 %v2208
  %v2210 = vpop.xlane.xlu0 %2209
  %v2211 = vsel %vm1748, %v2058, 0.0
  %2212 = vadd.xlane.f32.xlu0 %v2211
  %v2213 = vpop.xlane.xlu0 %2212
  %v2214 = vsel %vm1748, %v2060, 0.0
  %2215 = vadd.xlane.f32.xlu0 %v2214
  %v2216 = vpop.xlane.xlu0 %2215
  %v2217 = vsel %vm1748, %v2062, 0.0
  %2218 = vadd.xlane.f32.xlu0 %v2217
  %v2219 = vpop.xlane.xlu0 %2218
  %v2220 = vsel %vm1748, %v2064, 0.0
  %2221 = vadd.xlane.f32.xlu0 %v2220
  %v2222 = vpop.xlane.xlu0 %2221
  %v2223 = vsel %vm1748, %v2066, 0.0
  %2224 = vadd.xlane.f32.xlu0 %v2223
  %v2225 = vpop.xlane.xlu0 %2224
  %v2226 = vsel %vm1748, %v2068, 0.0
  %2227 = vadd.xlane.f32.xlu0 %v2226
  %v2228 = vpop.xlane.xlu0 %2227
  %v2229 = vsel %vm1748, %v2070, 0.0
  %2230 = vadd.xlane.f32.xlu0 %v2229
  %v2231 = vpop.xlane.xlu0 %2230
  %v2232 = vsel %vm1748, %v2072, 0.0
  %2233 = vadd.xlane.f32.xlu0 %v2232
  %v2234 = vpop.xlane.xlu0 %2233
  %v2235 = vsel %vm1748, %v2074, 0.0
  %2236 = vadd.xlane.f32.xlu0 %v2235
  %v2237 = vpop.xlane.xlu0 %2236
  %v2238 = vsel %vm1748, %v2076, 0.0
  %2239 = vadd.xlane.f32.xlu0 %v2238
  %v2240 = vpop.xlane.xlu0 %2239
  %v2241 = vsel %vm1748, %v2078, 0.0
  %2242 = vadd.xlane.f32.xlu0 %v2241
  %v2243 = vpop.xlane.xlu0 %2242
  %v2244 = vsel %vm1748, %v2080, 0.0
  %2245 = vadd.xlane.f32.xlu0 %v2244
  %v2246 = vpop.xlane.xlu0 %2245
  %v2247 = vsel %vm1748, %v2082, 0.0
  %2248 = vadd.xlane.f32.xlu0 %v2247
  %v2249 = vpop.xlane.xlu0 %2248
  %v2250 = vsel %vm1748, %v2084, 0.0
  %2251 = vadd.xlane.f32.xlu0 %v2250
  %v2252 = vpop.xlane.xlu0 %2251
  %v2253 = vsel %vm1748, %v2086, 0.0
  %2254 = vadd.xlane.f32.xlu0 %v2253
  %v2255 = vpop.xlane.xlu0 %2254
  %v2256 = vsel %vm1748, %v2088, 0.0
  %2257 = vadd.xlane.f32.xlu0 %v2256
  %v2258 = vpop.xlane.xlu0 %2257
  %v2259 = vsel %vm1748, %v2090, 0.0
  %2260 = vadd.xlane.f32.xlu0 %v2259
  %v2261 = vpop.xlane.xlu0 %2260
  %v2262 = vsel %vm1748, %v2092, 0.0
  %2263 = vadd.xlane.f32.xlu0 %v2262
  %v2264 = vpop.xlane.xlu0 %2263
  %v2265 = vsel %vm1748, %v2094, 0.0
  %2266 = vadd.xlane.f32.xlu0 %v2265
  %v2267 = vpop.xlane.xlu0 %2266
  %v2268 = vsel %vm1748, %v2096, 0.0
  %2269 = vadd.xlane.f32.xlu0 %v2268
  %v2270 = vpop.xlane.xlu0 %2269
  %v2271 = vsel %vm1748, %v2098, 0.0
  %2272 = vadd.xlane.f32.xlu0 %v2271
  %v2273 = vpop.xlane.xlu0 %2272
  %v2274 = vsel %vm1748, %v2100, 0.0
  %2275 = vadd.xlane.f32.xlu0 %v2274
  %v2276 = vpop.xlane.xlu0 %2275
  %v2277 = vsel %vm1748, %v2102, 0.0
  %2278 = vadd.xlane.f32.xlu0 %v2277
  %v2279 = vpop.xlane.xlu0 %2278
  %v2280 = vsel %vm1748, %v2104, 0.0
  %2281 = vadd.xlane.f32.xlu0 %v2280
  %v2282 = vpop.xlane.xlu0 %2281
  %v2283 = vsel %vm1748, %v2106, 0.0
  %2284 = vadd.xlane.f32.xlu0 %v2283
  %v2285 = vpop.xlane.xlu0 %2284
  %v2286 = vsel %vm1748, %v2108, 0.0
  %2287 = vadd.xlane.f32.xlu0 %v2286
  %v2288 = vpop.xlane.xlu0 %2287
  %v2289 = vsel %vm1748, %v2110, 0.0
  %2290 = vadd.xlane.f32.xlu0 %v2289
  %v2291 = vpop.xlane.xlu0 %2290
  %v2292 = vsel %vm1748, %v2112, 0.0
  %2293 = vadd.xlane.f32.xlu0 %v2292
  %v2294 = vpop.xlane.xlu0 %2293
  %v2295 = vsel %vm1748, %v2114, 0.0
  %2296 = vadd.xlane.f32.xlu0 %v2295
  %v2297 = vpop.xlane.xlu0 %2296
  %v2298 = vsel %vm1748, %v2116, 0.0
  %2299 = vadd.xlane.f32.xlu0 %v2298
  %v2300 = vpop.xlane.xlu0 %2299
  %v2301 = vsel %vm1748, %v2118, 0.0
  %2302 = vadd.xlane.f32.xlu0 %v2301
  %v2303 = vpop.xlane.xlu0 %2302
  %v2304 = vsel %vm1748, %v2120, 0.0
  %2305 = vadd.xlane.f32.xlu0 %v2304
  %v2306 = vpop.xlane.xlu0 %2305
  %v2307 = vsel %vm1748, %v2122, 0.0
  %2308 = vadd.xlane.f32.xlu0 %v2307
  %v2309 = vpop.xlane.xlu0 %2308
  %v2310 = vsel %vm1748, %v2124, 0.0
  %2311 = vadd.xlane.f32.xlu0 %v2310
  %v2312 = vpop.xlane.xlu0 %2311
  %v2313 = vsel %vm1748, %v2126, 0.0
  %2314 = vadd.xlane.f32.xlu0 %v2313
  %v2315 = vpop.xlane.xlu0 %2314
  %v2316 = vsel %vm1748, %v2128, 0.0
  %2317 = vadd.xlane.f32.xlu0 %v2316
  %v2318 = vpop.xlane.xlu0 %2317
  %v2319 = vsel %vm1748, %v2130, 0.0
  %2320 = vadd.xlane.f32.xlu0 %v2319
  %v2321 = vpop.xlane.xlu0 %2320
  %v2322 = vsel %vm1748, %v2132, 0.0
  %2323 = vadd.xlane.f32.xlu0 %v2322
  %v2324 = vpop.xlane.xlu0 %2323
  %v2325 = vrcp.pop %v2135
  %v2326 = vrcp.pop %v2138
  %v2327 = vrcp.pop %v2141
  %v2328 = vrcp.pop %v2144
  %v2329 = vrcp.pop %v2147
  %v2330 = vrcp.pop %v2150
  %v2331 = vrcp.pop %v2153
  %v2332 = vrcp.pop %v2156
  %v2333 = vrcp.pop %v2159
  %v2334 = vrcp.pop %v2162
  %v2335 = vrcp.pop %v2165
  %v2336 = vrcp.pop %v2168
  %v2337 = vrcp.pop %v2171
  %v2338 = vrcp.pop %v2174
  %v2339 = vrcp.pop %v2177
  %v2340 = vrcp.pop %v2180
  %v2341 = vrcp.pop %v2183
  %v2342 = vrcp.pop %v2186
  %v2343 = vrcp.pop %v2189
  %v2344 = vrcp.pop %v2192
  %v2345 = vrcp.pop %v2195
  %v2346 = vrcp.pop %v2198
  %v2347 = vrcp.pop %v2201
  %v2348 = vrcp.pop %v2204
  %v2349 = vrcp.pop %v2207
  %v2350 = vrcp.pop %v2210
  %v2351 = vrcp.pop %v2213
  %v2352 = vrcp.pop %v2216
  %v2353 = vrcp.pop %v2219
  %v2354 = vrcp.pop %v2222
  %v2355 = vrcp.pop %v2225
  %v2356 = vrcp.pop %v2228
  %v2357 = vrcp.pop %v2231
  %v2358 = vrcp.pop %v2234
  %v2359 = vrcp.pop %v2237
  %v2360 = vrcp.pop %v2240
  %v2361 = vrcp.pop %v2243
  %v2362 = vrcp.pop %v2246
  %v2363 = vrcp.pop %v2249
  %v2364 = vrcp.pop %v2252
  %v2365 = vrcp.pop %v2255
  %v2366 = vrcp.pop %v2258
  %v2367 = vrcp.pop %v2261
  %v2368 = vrcp.pop %v2264
  %v2369 = vrcp.pop %v2267
  %v2370 = vrcp.pop %v2270
  %v2371 = vrcp.pop %v2273
  %v2372 = vrcp.pop %v2276
  %v2373 = vrcp.pop %v2279
  %v2374 = vrcp.pop %v2282
  %v2375 = vrcp.pop %v2285
  %v2376 = vrcp.pop %v2288
  %v2377 = vrcp.pop %v2291
  %v2378 = vrcp.pop %v2294
  %v2379 = vrcp.pop %v2297
  %v2380 = vrcp.pop %v2300
  %v2381 = vrcp.pop %v2303
  %v2382 = vrcp.pop %v2306
  %v2383 = vrcp.pop %v2309
  %v2384 = vrcp.pop %v2312
  %v2385 = vrcp.pop %v2315
  %v2386 = vrcp.pop %v2318
  %v2387 = vrcp.pop %v2321
  %v2388 = vrcp.pop %v2324
  %v2389 = vmul.f32 %v2006, %v2325
  %v2390 = vmul.f32 %v2008, %v2326
  %v2391 = vmul.f32 %v2010, %v2327
  %v2392 = vmul.f32 %v2012, %v2328
  %v2393 = vmul.f32 %v2014, %v2329
  %v2394 = vmul.f32 %v2016, %v2330
  %v2395 = vmul.f32 %v2018, %v2331
  %v2396 = vmul.f32 %v2020, %v2332
  %v2397 = vmul.f32 %v2022, %v2333
  %v2398 = vmul.f32 %v2024, %v2334
  %v2399 = vmul.f32 %v2026, %v2335
  %v2400 = vmul.f32 %v2028, %v2336
  %v2401 = vmul.f32 %v2030, %v2337
  %v2402 = vmul.f32 %v2032, %v2338
  %v2403 = vmul.f32 %v2034, %v2339
  %v2404 = vmul.f32 %v2036, %v2340
  %v2405 = vmul.f32 %v2038, %v2341
  %v2406 = vmul.f32 %v2040, %v2342
  %v2407 = vmul.f32 %v2042, %v2343
  %v2408 = vmul.f32 %v2044, %v2344
  %v2409 = vmul.f32 %v2046, %v2345
  %v2410 = vmul.f32 %v2048, %v2346
  %v2411 = vmul.f32 %v2050, %v2347
  %v2412 = vmul.f32 %v2052, %v2348
  %v2413 = vmul.f32 %v2054, %v2349
  %v2414 = vmul.f32 %v2056, %v2350
  %v2415 = vmul.f32 %v2058, %v2351
  %v2416 = vmul.f32 %v2060, %v2352
  %v2417 = vmul.f32 %v2062, %v2353
  %v2418 = vmul.f32 %v2064, %v2354
  %v2419 = vmul.f32 %v2066, %v2355
  %v2420 = vmul.f32 %v2068, %v2356
  %v2421 = vmul.f32 %v2070, %v2357
  %v2422 = vmul.f32 %v2072, %v2358
  %v2423 = vmul.f32 %v2074, %v2359
  %v2424 = vmul.f32 %v2076, %v2360
  %v2425 = vmul.f32 %v2078, %v2361
  %v2426 = vmul.f32 %v2080, %v2362
  %v2427 = vmul.f32 %v2082, %v2363
  %v2428 = vmul.f32 %v2084, %v2364
  %v2429 = vmul.f32 %v2086, %v2365
  %v2430 = vmul.f32 %v2088, %v2366
  %v2431 = vmul.f32 %v2090, %v2367
  %v2432 = vmul.f32 %v2092, %v2368
  %v2433 = vmul.f32 %v2094, %v2369
  %v2434 = vmul.f32 %v2096, %v2370
  %v2435 = vmul.f32 %v2098, %v2371
  %v2436 = vmul.f32 %v2100, %v2372
  %v2437 = vmul.f32 %v2102, %v2373
  %v2438 = vmul.f32 %v2104, %v2374
  %v2439 = vmul.f32 %v2106, %v2375
  %v2440 = vmul.f32 %v2108, %v2376
  %v2441 = vmul.f32 %v2110, %v2377
  %v2442 = vmul.f32 %v2112, %v2378
  %v2443 = vmul.f32 %v2114, %v2379
  %v2444 = vmul.f32 %v2116, %v2380
  %v2445 = vmul.f32 %v2118, %v2381
  %v2446 = vmul.f32 %v2120, %v2382
  %v2447 = vmul.f32 %v2122, %v2383
  %v2448 = vmul.f32 %v2124, %v2384
  %v2449 = vmul.f32 %v2126, %v2385
  %v2450 = vmul.f32 %v2128, %v2386
  %v2451 = vmul.f32 %v2130, %v2387
  %v2452 = vmul.f32 %v2132, %v2388
  %v2453 = vpack.c.bf16 %v2389, %v2389
  %v2454 = vpack.c.bf16 %v2390, %v2390
  %v2455 = vpack.c.bf16 %v2391, %v2391
  %v2456 = vpack.c.bf16 %v2392, %v2392
  %v2457 = vpack.c.bf16 %v2393, %v2393
  %v2458 = vpack.c.bf16 %v2394, %v2394
  %v2459 = vpack.c.bf16 %v2395, %v2395
  %v2460 = vpack.c.bf16 %v2396, %v2396
  %v2461 = vpack.c.bf16 %v2397, %v2397
  %v2462 = vpack.c.bf16 %v2398, %v2398
  %v2463 = vpack.c.bf16 %v2399, %v2399
  %v2464 = vpack.c.bf16 %v2400, %v2400
  %v2465 = vpack.c.bf16 %v2401, %v2401
  %v2466 = vpack.c.bf16 %v2402, %v2402
  %v2467 = vpack.c.bf16 %v2403, %v2403
  %v2468 = vpack.c.bf16 %v2404, %v2404
  %v2469 = vpack.c.bf16 %v2405, %v2405
  %v2470 = vpack.c.bf16 %v2406, %v2406
  %v2471 = vpack.c.bf16 %v2407, %v2407
  %v2472 = vpack.c.bf16 %v2408, %v2408
  %v2473 = vpack.c.bf16 %v2409, %v2409
  %v2474 = vpack.c.bf16 %v2410, %v2410
  %v2475 = vpack.c.bf16 %v2411, %v2411
  %v2476 = vpack.c.bf16 %v2412, %v2412
  %v2477 = vpack.c.bf16 %v2413, %v2413
  %v2478 = vpack.c.bf16 %v2414, %v2414
  %v2479 = vpack.c.bf16 %v2415, %v2415
  %v2480 = vpack.c.bf16 %v2416, %v2416
  %v2481 = vpack.c.bf16 %v2417, %v2417
  %v2482 = vpack.c.bf16 %v2418, %v2418
  %v2483 = vpack.c.bf16 %v2419, %v2419
  %v2484 = vpack.c.bf16 %v2420, %v2420
  %v2485 = vpack.c.bf16 %v2421, %v2421
  %v2486 = vpack.c.bf16 %v2422, %v2422
  %v2487 = vpack.c.bf16 %v2423, %v2423
  %v2488 = vpack.c.bf16 %v2424, %v2424
  %v2489 = vpack.c.bf16 %v2425, %v2425
  %v2490 = vpack.c.bf16 %v2426, %v2426
  %v2491 = vpack.c.bf16 %v2427, %v2427
  %v2492 = vpack.c.bf16 %v2428, %v2428
  %v2493 = vpack.c.bf16 %v2429, %v2429
  %v2494 = vpack.c.bf16 %v2430, %v2430
  %v2495 = vpack.c.bf16 %v2431, %v2431
  %v2496 = vpack.c.bf16 %v2432, %v2432
  %v2497 = vpack.c.bf16 %v2433, %v2433
  %v2498 = vpack.c.bf16 %v2434, %v2434
  %v2499 = vpack.c.bf16 %v2435, %v2435
  %v2500 = vpack.c.bf16 %v2436, %v2436
  %v2501 = vpack.c.bf16 %v2437, %v2437
  %v2502 = vpack.c.bf16 %v2438, %v2438
  %v2503 = vpack.c.bf16 %v2439, %v2439
  %v2504 = vpack.c.bf16 %v2440, %v2440
  %v2505 = vpack.c.bf16 %v2441, %v2441
  %v2506 = vpack.c.bf16 %v2442, %v2442
  %v2507 = vpack.c.bf16 %v2443, %v2443
  %v2508 = vpack.c.bf16 %v2444, %v2444
  %v2509 = vpack.c.bf16 %v2445, %v2445
  %v2510 = vpack.c.bf16 %v2446, %v2446
  %v2511 = vpack.c.bf16 %v2447, %v2447
  %v2512 = vpack.c.bf16 %v2448, %v2448
  %v2513 = vpack.c.bf16 %v2449, %v2449
  %v2514 = vpack.c.bf16 %v2450, %v2450
  %v2515 = vpack.c.bf16 %v2451, %v2451
  %v2516 = vpack.c.bf16 %v2452, %v2452
  %v2519 = vunpack.c.l.b16 %v2453
  %v2520 = vunpack.c.l.b16 %v2454
  %v2521 = vpack.c.b16 %v2520, %v2519
  %2522 = vrot.lane.b32.xlu0 %v887, 64
  %v2523 = vpop.permute.xlu0 %2522
  %v2526 = vsel %vm1748, %v2521, 0
  %2528 = vmatpush.bf16.msra.mxu0 0
  %2529 = vmatpush.bf16.msra.mxu0 0
  %2530 = vmatpush.bf16.msra.mxu0 0
  %2531 = vmatpush.bf16.msra.mxu0 0
  %2532 = vmatpush.bf16.msra.mxu0 0
  %2533 = vmatpush.bf16.msra.mxu0 0
  %2534 = vmatpush.bf16.msra.mxu0 0
  %2535 = vmatpush.bf16.msra.mxu0 %v2523
  %2536 = vmatmul.bf16.gmra.mxu0 %v2526
  %v2537 = vpop.f32.mrf.mxu0
  %v2538 = vadd.f32 0.0, %v2537
  %v2539 = vpop.f32.mrf.mxu0
  %v2540 = vadd.f32 0.0, %v2539
  %2541 = vdwg.mxu0
  %v2544 = vunpack.c.l.b16 %v2455
  %v2545 = vunpack.c.l.b16 %v2456
  %v2546 = vpack.c.b16 %v2545, %v2544
  %2547 = vrot.lane.b32.xlu0 %v915, 64
  %v2548 = vpop.permute.xlu0 %2547
  %v2551 = vsel %vm1748, %v2546, 0
  %2553 = vmatpush.bf16.msra.mxu0 0
  %2554 = vmatpush.bf16.msra.mxu0 0
  %2555 = vmatpush.bf16.msra.mxu0 0
  %2556 = vmatpush.bf16.msra.mxu0 0
  %2557 = vmatpush.bf16.msra.mxu0 0
  %2558 = vmatpush.bf16.msra.mxu0 0
  %2559 = vmatpush.bf16.msra.mxu0 0
  %2560 = vmatpush.bf16.msra.mxu0 %v2548
  %2561 = vmatmul.bf16.gmra.mxu0 %v2551
  %v2562 = vpop.f32.mrf.mxu0
  %v2563 = vadd.f32 0.0, %v2562
  %v2564 = vpop.f32.mrf.mxu0
  %v2565 = vadd.f32 0.0, %v2564
  %2566 = vdwg.mxu0
  %v2569 = vunpack.c.l.b16 %v2457
  %v2570 = vunpack.c.l.b16 %v2458
  %v2571 = vpack.c.b16 %v2570, %v2569
  %2572 = vrot.lane.b32.xlu0 %v942, 64
  %v2573 = vpop.permute.xlu0 %2572
  %v2576 = vsel %vm1748, %v2571, 0
  %2578 = vmatpush.bf16.msra.mxu0 0
  %2579 = vmatpush.bf16.msra.mxu0 0
  %2580 = vmatpush.bf16.msra.mxu0 0
  %2581 = vmatpush.bf16.msra.mxu0 0
  %2582 = vmatpush.bf16.msra.mxu0 0
  %2583 = vmatpush.bf16.msra.mxu0 0
  %2584 = vmatpush.bf16.msra.mxu0 0
  %2585 = vmatpush.bf16.msra.mxu0 %v2573
  %2586 = vmatmul.bf16.gmra.mxu0 %v2576
  %v2587 = vpop.f32.mrf.mxu0
  %v2588 = vadd.f32 0.0, %v2587
  %v2589 = vpop.f32.mrf.mxu0
  %v2590 = vadd.f32 0.0, %v2589
  %2591 = vdwg.mxu0
  %v2594 = vunpack.c.l.b16 %v2459
  %v2595 = vunpack.c.l.b16 %v2460
  %v2596 = vpack.c.b16 %v2595, %v2594
  %2597 = vrot.lane.b32.xlu0 %v969, 64
  %v2598 = vpop.permute.xlu0 %2597
  %v2601 = vsel %vm1748, %v2596, 0
  %2603 = vmatpush.bf16.msra.mxu0 0
  %2604 = vmatpush.bf16.msra.mxu0 0
  %2605 = vmatpush.bf16.msra.mxu0 0
  %2606 = vmatpush.bf16.msra.mxu0 0
  %2607 = vmatpush.bf16.msra.mxu0 0
  %2608 = vmatpush.bf16.msra.mxu0 0
  %2609 = vmatpush.bf16.msra.mxu0 0
  %2610 = vmatpush.bf16.msra.mxu0 %v2598
  %2611 = vmatmul.bf16.gmra.mxu0 %v2601
  %v2612 = vpop.f32.mrf.mxu0
  %v2613 = vadd.f32 0.0, %v2612
  %v2614 = vpop.f32.mrf.mxu0
  %v2615 = vadd.f32 0.0, %v2614
  %2616 = vdwg.mxu0
  %v2619 = vunpack.c.l.b16 %v2461
  %v2620 = vunpack.c.l.b16 %v2462
  %v2621 = vpack.c.b16 %v2620, %v2619
  %2622 = vrot.lane.b32.xlu0 %v996, 64
  %v2623 = vpop.permute.xlu0 %2622
  %v2626 = vsel %vm1748, %v2621, 0
  %2628 = vmatpush.bf16.msra.mxu0 0
  %2629 = vmatpush.bf16.msra.mxu0 0
  %2630 = vmatpush.bf16.msra.mxu0 0
  %2631 = vmatpush.bf16.msra.mxu0 0
  %2632 = vmatpush.bf16.msra.mxu0 0
  %2633 = vmatpush.bf16.msra.mxu0 0
  %2634 = vmatpush.bf16.msra.mxu0 0
  %2635 = vmatpush.bf16.msra.mxu0 %v2623
  %2636 = vmatmul.bf16.gmra.mxu0 %v2626
  %v2637 = vpop.f32.mrf.mxu0
  %v2638 = vadd.f32 0.0, %v2637
  %v2639 = vpop.f32.mrf.mxu0
  %v2640 = vadd.f32 0.0, %v2639
  %2641 = vdwg.mxu0
  %v2644 = vunpack.c.l.b16 %v2463
  %v2645 = vunpack.c.l.b16 %v2464
  %v2646 = vpack.c.b16 %v2645, %v2644
  %2647 = vrot.lane.b32.xlu0 %v1023, 64
  %v2648 = vpop.permute.xlu0 %2647
  %v2651 = vsel %vm1748, %v2646, 0
  %2653 = vmatpush.bf16.msra.mxu0 0
  %2654 = vmatpush.bf16.msra.mxu0 0
  %2655 = vmatpush.bf16.msra.mxu0 0
  %2656 = vmatpush.bf16.msra.mxu0 0
  %2657 = vmatpush.bf16.msra.mxu0 0
  %2658 = vmatpush.bf16.msra.mxu0 0
  %2659 = vmatpush.bf16.msra.mxu0 0
  %2660 = vmatpush.bf16.msra.mxu0 %v2648
  %2661 = vmatmul.bf16.gmra.mxu0 %v2651
  %v2662 = vpop.f32.mrf.mxu0
  %v2663 = vadd.f32 0.0, %v2662
  %v2664 = vpop.f32.mrf.mxu0
  %v2665 = vadd.f32 0.0, %v2664
  %2666 = vdwg.mxu0
  %v2669 = vunpack.c.l.b16 %v2465
  %v2670 = vunpack.c.l.b16 %v2466
  %v2671 = vpack.c.b16 %v2670, %v2669
  %2672 = vrot.lane.b32.xlu0 %v1050, 64
  %v2673 = vpop.permute.xlu0 %2672
  %v2676 = vsel %vm1748, %v2671, 0
  %2678 = vmatpush.bf16.msra.mxu0 0
  %2679 = vmatpush.bf16.msra.mxu0 0
  %2680 = vmatpush.bf16.msra.mxu0 0
  %2681 = vmatpush.bf16.msra.mxu0 0
  %2682 = vmatpush.bf16.msra.mxu0 0
  %2683 = vmatpush.bf16.msra.mxu0 0
  %2684 = vmatpush.bf16.msra.mxu0 0
  %2685 = vmatpush.bf16.msra.mxu0 %v2673
  %2686 = vmatmul.bf16.gmra.mxu0 %v2676
  %v2687 = vpop.f32.mrf.mxu0
  %v2688 = vadd.f32 0.0, %v2687
  %v2689 = vpop.f32.mrf.mxu0
  %v2690 = vadd.f32 0.0, %v2689
  %2691 = vdwg.mxu0
  %v2694 = vunpack.c.l.b16 %v2467
  %v2695 = vunpack.c.l.b16 %v2468
  %v2696 = vpack.c.b16 %v2695, %v2694
  %2697 = vrot.lane.b32.xlu0 %v1077, 64
  %v2698 = vpop.permute.xlu0 %2697
  %v2701 = vsel %vm1748, %v2696, 0
  %2703 = vmatpush.bf16.msra.mxu0 0
  %2704 = vmatpush.bf16.msra.mxu0 0
  %2705 = vmatpush.bf16.msra.mxu0 0
  %2706 = vmatpush.bf16.msra.mxu0 0
  %2707 = vmatpush.bf16.msra.mxu0 0
  %2708 = vmatpush.bf16.msra.mxu0 0
  %2709 = vmatpush.bf16.msra.mxu0 0
  %2710 = vmatpush.bf16.msra.mxu0 %v2698
  %2711 = vmatmul.bf16.gmra.mxu0 %v2701
  %v2712 = vpop.f32.mrf.mxu0
  %v2713 = vadd.f32 0.0, %v2712
  %v2714 = vpop.f32.mrf.mxu0
  %v2715 = vadd.f32 0.0, %v2714
  %2716 = vdwg.mxu0
  %v2719 = vunpack.c.l.b16 %v2469
  %v2720 = vunpack.c.l.b16 %v2470
  %v2721 = vpack.c.b16 %v2720, %v2719
  %2722 = vrot.lane.b32.xlu0 %v1104, 64
  %v2723 = vpop.permute.xlu0 %2722
  %v2726 = vsel %vm1748, %v2721, 0
  %2728 = vmatpush.bf16.msra.mxu0 0
  %2729 = vmatpush.bf16.msra.mxu0 0
  %2730 = vmatpush.bf16.msra.mxu0 0
  %2731 = vmatpush.bf16.msra.mxu0 0
  %2732 = vmatpush.bf16.msra.mxu0 0
  %2733 = vmatpush.bf16.msra.mxu0 0
  %2734 = vmatpush.bf16.msra.mxu0 0
  %2735 = vmatpush.bf16.msra.mxu0 %v2723
  %2736 = vmatmul.bf16.gmra.mxu0 %v2726
  %v2737 = vpop.f32.mrf.mxu0
  %v2738 = vadd.f32 0.0, %v2737
  %v2739 = vpop.f32.mrf.mxu0
  %v2740 = vadd.f32 0.0, %v2739
  %2741 = vdwg.mxu0
  %v2744 = vunpack.c.l.b16 %v2471
  %v2745 = vunpack.c.l.b16 %v2472
  %v2746 = vpack.c.b16 %v2745, %v2744
  %2747 = vrot.lane.b32.xlu0 %v1131, 64
  %v2748 = vpop.permute.xlu0 %2747
  %v2751 = vsel %vm1748, %v2746, 0
  %2753 = vmatpush.bf16.msra.mxu0 0
  %2754 = vmatpush.bf16.msra.mxu0 0
  %2755 = vmatpush.bf16.msra.mxu0 0
  %2756 = vmatpush.bf16.msra.mxu0 0
  %2757 = vmatpush.bf16.msra.mxu0 0
  %2758 = vmatpush.bf16.msra.mxu0 0
  %2759 = vmatpush.bf16.msra.mxu0 0
  %2760 = vmatpush.bf16.msra.mxu0 %v2748
  %2761 = vmatmul.bf16.gmra.mxu0 %v2751
  %v2762 = vpop.f32.mrf.mxu0
  %v2763 = vadd.f32 0.0, %v2762
  %v2764 = vpop.f32.mrf.mxu0
  %v2765 = vadd.f32 0.0, %v2764
  %2766 = vdwg.mxu0
  %v2769 = vunpack.c.l.b16 %v2473
  %v2770 = vunpack.c.l.b16 %v2474
  %v2771 = vpack.c.b16 %v2770, %v2769
  %2772 = vrot.lane.b32.xlu0 %v1158, 64
  %v2773 = vpop.permute.xlu0 %2772
  %v2776 = vsel %vm1748, %v2771, 0
  %2778 = vmatpush.bf16.msra.mxu0 0
  %2779 = vmatpush.bf16.msra.mxu0 0
  %2780 = vmatpush.bf16.msra.mxu0 0
  %2781 = vmatpush.bf16.msra.mxu0 0
  %2782 = vmatpush.bf16.msra.mxu0 0
  %2783 = vmatpush.bf16.msra.mxu0 0
  %2784 = vmatpush.bf16.msra.mxu0 0
  %2785 = vmatpush.bf16.msra.mxu0 %v2773
  %2786 = vmatmul.bf16.gmra.mxu0 %v2776
  %v2787 = vpop.f32.mrf.mxu0
  %v2788 = vadd.f32 0.0, %v2787
  %v2789 = vpop.f32.mrf.mxu0
  %v2790 = vadd.f32 0.0, %v2789
  %2791 = vdwg.mxu0
  %v2794 = vunpack.c.l.b16 %v2475
  %v2795 = vunpack.c.l.b16 %v2476
  %v2796 = vpack.c.b16 %v2795, %v2794
  %2797 = vrot.lane.b32.xlu0 %v1185, 64
  %v2798 = vpop.permute.xlu0 %2797
  %v2801 = vsel %vm1748, %v2796, 0
  %2803 = vmatpush.bf16.msra.mxu0 0
  %2804 = vmatpush.bf16.msra.mxu0 0
  %2805 = vmatpush.bf16.msra.mxu0 0
  %2806 = vmatpush.bf16.msra.mxu0 0
  %2807 = vmatpush.bf16.msra.mxu0 0
  %2808 = vmatpush.bf16.msra.mxu0 0
  %2809 = vmatpush.bf16.msra.mxu0 0
  %2810 = vmatpush.bf16.msra.mxu0 %v2798
  %2811 = vmatmul.bf16.gmra.mxu0 %v2801
  %v2812 = vpop.f32.mrf.mxu0
  %v2813 = vadd.f32 0.0, %v2812
  %v2814 = vpop.f32.mrf.mxu0
  %v2815 = vadd.f32 0.0, %v2814
  %2816 = vdwg.mxu0
  %v2819 = vunpack.c.l.b16 %v2477
  %v2820 = vunpack.c.l.b16 %v2478
  %v2821 = vpack.c.b16 %v2820, %v2819
  %2822 = vrot.lane.b32.xlu0 %v1212, 64
  %v2823 = vpop.permute.xlu0 %2822
  %v2826 = vsel %vm1748, %v2821, 0
  %2828 = vmatpush.bf16.msra.mxu0 0
  %2829 = vmatpush.bf16.msra.mxu0 0
  %2830 = vmatpush.bf16.msra.mxu0 0
  %2831 = vmatpush.bf16.msra.mxu0 0
  %2832 = vmatpush.bf16.msra.mxu0 0
  %2833 = vmatpush.bf16.msra.mxu0 0
  %2834 = vmatpush.bf16.msra.mxu0 0
  %2835 = vmatpush.bf16.msra.mxu0 %v2823
  %2836 = vmatmul.bf16.gmra.mxu0 %v2826
  %v2837 = vpop.f32.mrf.mxu0
  %v2838 = vadd.f32 0.0, %v2837
  %v2839 = vpop.f32.mrf.mxu0
  %v2840 = vadd.f32 0.0, %v2839
  %2841 = vdwg.mxu0
  %v2844 = vunpack.c.l.b16 %v2479
  %v2845 = vunpack.c.l.b16 %v2480
  %v2846 = vpack.c.b16 %v2845, %v2844
  %2847 = vrot.lane.b32.xlu0 %v1239, 64
  %v2848 = vpop.permute.xlu0 %2847
  %v2851 = vsel %vm1748, %v2846, 0
  %2853 = vmatpush.bf16.msra.mxu0 0
  %2854 = vmatpush.bf16.msra.mxu0 0
  %2855 = vmatpush.bf16.msra.mxu0 0
  %2856 = vmatpush.bf16.msra.mxu0 0
  %2857 = vmatpush.bf16.msra.mxu0 0
  %2858 = vmatpush.bf16.msra.mxu0 0
  %2859 = vmatpush.bf16.msra.mxu0 0
  %2860 = vmatpush.bf16.msra.mxu0 %v2848
  %2861 = vmatmul.bf16.gmra.mxu0 %v2851
  %v2862 = vpop.f32.mrf.mxu0
  %v2863 = vadd.f32 0.0, %v2862
  %v2864 = vpop.f32.mrf.mxu0
  %v2865 = vadd.f32 0.0, %v2864
  %2866 = vdwg.mxu0
  %v2869 = vunpack.c.l.b16 %v2481
  %v2870 = vunpack.c.l.b16 %v2482
  %v2871 = vpack.c.b16 %v2870, %v2869
  %2872 = vrot.lane.b32.xlu0 %v1266, 64
  %v2873 = vpop.permute.xlu0 %2872
  %v2876 = vsel %vm1748, %v2871, 0
  %2878 = vmatpush.bf16.msra.mxu0 0
  %2879 = vmatpush.bf16.msra.mxu0 0
  %2880 = vmatpush.bf16.msra.mxu0 0
  %2881 = vmatpush.bf16.msra.mxu0 0
  %2882 = vmatpush.bf16.msra.mxu0 0
  %2883 = vmatpush.bf16.msra.mxu0 0
  %2884 = vmatpush.bf16.msra.mxu0 0
  %2885 = vmatpush.bf16.msra.mxu0 %v2873
  %2886 = vmatmul.bf16.gmra.mxu0 %v2876
  %v2887 = vpop.f32.mrf.mxu0
  %v2888 = vadd.f32 0.0, %v2887
  %v2889 = vpop.f32.mrf.mxu0
  %v2890 = vadd.f32 0.0, %v2889
  %2891 = vdwg.mxu0
  %v2894 = vunpack.c.l.b16 %v2483
  %v2895 = vunpack.c.l.b16 %v2484
  %v2896 = vpack.c.b16 %v2895, %v2894
  %2897 = vrot.lane.b32.xlu0 %v1293, 64
  %v2898 = vpop.permute.xlu0 %2897
  %v2901 = vsel %vm1748, %v2896, 0
  %2903 = vmatpush.bf16.msra.mxu0 0
  %2904 = vmatpush.bf16.msra.mxu0 0
  %2905 = vmatpush.bf16.msra.mxu0 0
  %2906 = vmatpush.bf16.msra.mxu0 0
  %2907 = vmatpush.bf16.msra.mxu0 0
  %2908 = vmatpush.bf16.msra.mxu0 0
  %2909 = vmatpush.bf16.msra.mxu0 0
  %2910 = vmatpush.bf16.msra.mxu0 %v2898
  %2911 = vmatmul.bf16.gmra.mxu0 %v2901
  %v2912 = vpop.f32.mrf.mxu0
  %v2913 = vadd.f32 0.0, %v2912
  %v2914 = vpop.f32.mrf.mxu0
  %v2915 = vadd.f32 0.0, %v2914
  %2916 = vdwg.mxu0
  %v2919 = vunpack.c.l.b16 %v2485
  %v2920 = vunpack.c.l.b16 %v2486
  %v2921 = vpack.c.b16 %v2920, %v2919
  %2922 = vrot.lane.b32.xlu0 %v1320, 64
  %v2923 = vpop.permute.xlu0 %2922
  %v2926 = vsel %vm1748, %v2921, 0
  %2928 = vmatpush.bf16.msra.mxu0 0
  %2929 = vmatpush.bf16.msra.mxu0 0
  %2930 = vmatpush.bf16.msra.mxu0 0
  %2931 = vmatpush.bf16.msra.mxu0 0
  %2932 = vmatpush.bf16.msra.mxu0 0
  %2933 = vmatpush.bf16.msra.mxu0 0
  %2934 = vmatpush.bf16.msra.mxu0 0
  %2935 = vmatpush.bf16.msra.mxu0 %v2923
  %2936 = vmatmul.bf16.gmra.mxu0 %v2926
  %v2937 = vpop.f32.mrf.mxu0
  %v2938 = vadd.f32 0.0, %v2937
  %v2939 = vpop.f32.mrf.mxu0
  %v2940 = vadd.f32 0.0, %v2939
  %2941 = vdwg.mxu0
  %v2944 = vunpack.c.l.b16 %v2487
  %v2945 = vunpack.c.l.b16 %v2488
  %v2946 = vpack.c.b16 %v2945, %v2944
  %2947 = vrot.lane.b32.xlu0 %v1347, 64
  %v2948 = vpop.permute.xlu0 %2947
  %v2951 = vsel %vm1748, %v2946, 0
  %2953 = vmatpush.bf16.msra.mxu0 0
  %2954 = vmatpush.bf16.msra.mxu0 0
  %2955 = vmatpush.bf16.msra.mxu0 0
  %2956 = vmatpush.bf16.msra.mxu0 0
  %2957 = vmatpush.bf16.msra.mxu0 0
  %2958 = vmatpush.bf16.msra.mxu0 0
  %2959 = vmatpush.bf16.msra.mxu0 0
  %2960 = vmatpush.bf16.msra.mxu0 %v2948
  %2961 = vmatmul.bf16.gmra.mxu0 %v2951
  %v2962 = vpop.f32.mrf.mxu0
  %v2963 = vadd.f32 0.0, %v2962
  %v2964 = vpop.f32.mrf.mxu0
  %v2965 = vadd.f32 0.0, %v2964
  %2966 = vdwg.mxu0
  %v2969 = vunpack.c.l.b16 %v2489
  %v2970 = vunpack.c.l.b16 %v2490
  %v2971 = vpack.c.b16 %v2970, %v2969
  %2972 = vrot.lane.b32.xlu0 %v1374, 64
  %v2973 = vpop.permute.xlu0 %2972
  %v2976 = vsel %vm1748, %v2971, 0
  %2978 = vmatpush.bf16.msra.mxu0 0
  %2979 = vmatpush.bf16.msra.mxu0 0
  %2980 = vmatpush.bf16.msra.mxu0 0
  %2981 = vmatpush.bf16.msra.mxu0 0
  %2982 = vmatpush.bf16.msra.mxu0 0
  %2983 = vmatpush.bf16.msra.mxu0 0
  %2984 = vmatpush.bf16.msra.mxu0 0
  %2985 = vmatpush.bf16.msra.mxu0 %v2973
  %2986 = vmatmul.bf16.gmra.mxu0 %v2976
  %v2987 = vpop.f32.mrf.mxu0
  %v2988 = vadd.f32 0.0, %v2987
  %v2989 = vpop.f32.mrf.mxu0
  %v2990 = vadd.f32 0.0, %v2989
  %2991 = vdwg.mxu0
  %v2994 = vunpack.c.l.b16 %v2491
  %v2995 = vunpack.c.l.b16 %v2492
  %v2996 = vpack.c.b16 %v2995, %v2994
  %2997 = vrot.lane.b32.xlu0 %v1401, 64
  %v2998 = vpop.permute.xlu0 %2997
  %v3001 = vsel %vm1748, %v2996, 0
  %3003 = vmatpush.bf16.msra.mxu0 0
  %3004 = vmatpush.bf16.msra.mxu0 0
  %3005 = vmatpush.bf16.msra.mxu0 0
  %3006 = vmatpush.bf16.msra.mxu0 0
  %3007 = vmatpush.bf16.msra.mxu0 0
  %3008 = vmatpush.bf16.msra.mxu0 0
  %3009 = vmatpush.bf16.msra.mxu0 0
  %3010 = vmatpush.bf16.msra.mxu0 %v2998
  %3011 = vmatmul.bf16.gmra.mxu0 %v3001
  %v3012 = vpop.f32.mrf.mxu0
  %v3013 = vadd.f32 0.0, %v3012
  %v3014 = vpop.f32.mrf.mxu0
  %v3015 = vadd.f32 0.0, %v3014
  %3016 = vdwg.mxu0
  %v3019 = vunpack.c.l.b16 %v2493
  %v3020 = vunpack.c.l.b16 %v2494
  %v3021 = vpack.c.b16 %v3020, %v3019
  %3022 = vrot.lane.b32.xlu0 %v1428, 64
  %v3023 = vpop.permute.xlu0 %3022
  %v3026 = vsel %vm1748, %v3021, 0
  %3028 = vmatpush.bf16.msra.mxu0 0
  %3029 = vmatpush.bf16.msra.mxu0 0
  %3030 = vmatpush.bf16.msra.mxu0 0
  %3031 = vmatpush.bf16.msra.mxu0 0
  %3032 = vmatpush.bf16.msra.mxu0 0
  %3033 = vmatpush.bf16.msra.mxu0 0
  %3034 = vmatpush.bf16.msra.mxu0 0
  %3035 = vmatpush.bf16.msra.mxu0 %v3023
  %3036 = vmatmul.bf16.gmra.mxu0 %v3026
  %v3037 = vpop.f32.mrf.mxu0
  %v3038 = vadd.f32 0.0, %v3037
  %v3039 = vpop.f32.mrf.mxu0
  %v3040 = vadd.f32 0.0, %v3039
  %3041 = vdwg.mxu0
  %v3044 = vunpack.c.l.b16 %v2495
  %v3045 = vunpack.c.l.b16 %v2496
  %v3046 = vpack.c.b16 %v3045, %v3044
  %3047 = vrot.lane.b32.xlu0 %v1455, 64
  %v3048 = vpop.permute.xlu0 %3047
  %v3051 = vsel %vm1748, %v3046, 0
  %3053 = vmatpush.bf16.msra.mxu0 0
  %3054 = vmatpush.bf16.msra.mxu0 0
  %3055 = vmatpush.bf16.msra.mxu0 0
  %3056 = vmatpush.bf16.msra.mxu0 0
  %3057 = vmatpush.bf16.msra.mxu0 0
  %3058 = vmatpush.bf16.msra.mxu0 0
  %3059 = vmatpush.bf16.msra.mxu0 0
  %3060 = vmatpush.bf16.msra.mxu0 %v3048
  %3061 = vmatmul.bf16.gmra.mxu0 %v3051
  %v3062 = vpop.f32.mrf.mxu0
  %v3063 = vadd.f32 0.0, %v3062
  %v3064 = vpop.f32.mrf.mxu0
  %v3065 = vadd.f32 0.0, %v3064
  %3066 = vdwg.mxu0
  %v3069 = vunpack.c.l.b16 %v2497
  %v3070 = vunpack.c.l.b16 %v2498
  %v3071 = vpack.c.b16 %v3070, %v3069
  %3072 = vrot.lane.b32.xlu0 %v1482, 64
  %v3073 = vpop.permute.xlu0 %3072
  %v3076 = vsel %vm1748, %v3071, 0
  %3078 = vmatpush.bf16.msra.mxu0 0
  %3079 = vmatpush.bf16.msra.mxu0 0
  %3080 = vmatpush.bf16.msra.mxu0 0
  %3081 = vmatpush.bf16.msra.mxu0 0
  %3082 = vmatpush.bf16.msra.mxu0 0
  %3083 = vmatpush.bf16.msra.mxu0 0
  %3084 = vmatpush.bf16.msra.mxu0 0
  %3085 = vmatpush.bf16.msra.mxu0 %v3073
  %3086 = vmatmul.bf16.gmra.mxu0 %v3076
  %v3087 = vpop.f32.mrf.mxu0
  %v3088 = vadd.f32 0.0, %v3087
  %v3089 = vpop.f32.mrf.mxu0
  %v3090 = vadd.f32 0.0, %v3089
  %3091 = vdwg.mxu0
  %v3094 = vunpack.c.l.b16 %v2499
  %v3095 = vunpack.c.l.b16 %v2500
  %v3096 = vpack.c.b16 %v3095, %v3094
  %3097 = vrot.lane.b32.xlu0 %v1509, 64
  %v3098 = vpop.permute.xlu0 %3097
  %v3101 = vsel %vm1748, %v3096, 0
  %3103 = vmatpush.bf16.msra.mxu0 0
  %3104 = vmatpush.bf16.msra.mxu0 0
  %3105 = vmatpush.bf16.msra.mxu0 0
  %3106 = vmatpush.bf16.msra.mxu0 0
  %3107 = vmatpush.bf16.msra.mxu0 0
  %3108 = vmatpush.bf16.msra.mxu0 0
  %3109 = vmatpush.bf16.msra.mxu0 0
  %3110 = vmatpush.bf16.msra.mxu0 %v3098
  %3111 = vmatmul.bf16.gmra.mxu0 %v3101
  %v3112 = vpop.f32.mrf.mxu0
  %v3113 = vadd.f32 0.0, %v3112
  %v3114 = vpop.f32.mrf.mxu0
  %v3115 = vadd.f32 0.0, %v3114
  %3116 = vdwg.mxu0
  %v3119 = vunpack.c.l.b16 %v2501
  %v3120 = vunpack.c.l.b16 %v2502
  %v3121 = vpack.c.b16 %v3120, %v3119
  %3122 = vrot.lane.b32.xlu0 %v1536, 64
  %v3123 = vpop.permute.xlu0 %3122
  %v3126 = vsel %vm1748, %v3121, 0
  %3128 = vmatpush.bf16.msra.mxu0 0
  %3129 = vmatpush.bf16.msra.mxu0 0
  %3130 = vmatpush.bf16.msra.mxu0 0
  %3131 = vmatpush.bf16.msra.mxu0 0
  %3132 = vmatpush.bf16.msra.mxu0 0
  %3133 = vmatpush.bf16.msra.mxu0 0
  %3134 = vmatpush.bf16.msra.mxu0 0
  %3135 = vmatpush.bf16.msra.mxu0 %v3123
  %3136 = vmatmul.bf16.gmra.mxu0 %v3126
  %v3137 = vpop.f32.mrf.mxu0
  %v3138 = vadd.f32 0.0, %v3137
  %v3139 = vpop.f32.mrf.mxu0
  %v3140 = vadd.f32 0.0, %v3139
  %3141 = vdwg.mxu0
  %v3144 = vunpack.c.l.b16 %v2503
  %v3145 = vunpack.c.l.b16 %v2504
  %v3146 = vpack.c.b16 %v3145, %v3144
  %3147 = vrot.lane.b32.xlu0 %v1563, 64
  %v3148 = vpop.permute.xlu0 %3147
  %v3151 = vsel %vm1748, %v3146, 0
  %3153 = vmatpush.bf16.msra.mxu0 0
  %3154 = vmatpush.bf16.msra.mxu0 0
  %3155 = vmatpush.bf16.msra.mxu0 0
  %3156 = vmatpush.bf16.msra.mxu0 0
  %3157 = vmatpush.bf16.msra.mxu0 0
  %3158 = vmatpush.bf16.msra.mxu0 0
  %3159 = vmatpush.bf16.msra.mxu0 0
  %3160 = vmatpush.bf16.msra.mxu0 %v3148
  %3161 = vmatmul.bf16.gmra.mxu0 %v3151
  %v3162 = vpop.f32.mrf.mxu0
  %v3163 = vadd.f32 0.0, %v3162
  %v3164 = vpop.f32.mrf.mxu0
  %v3165 = vadd.f32 0.0, %v3164
  %3166 = vdwg.mxu0
  %v3169 = vunpack.c.l.b16 %v2505
  %v3170 = vunpack.c.l.b16 %v2506
  %v3171 = vpack.c.b16 %v3170, %v3169
  %3172 = vrot.lane.b32.xlu0 %v1590, 64
  %v3173 = vpop.permute.xlu0 %3172
  %v3176 = vsel %vm1748, %v3171, 0
  %3178 = vmatpush.bf16.msra.mxu0 0
  %3179 = vmatpush.bf16.msra.mxu0 0
  %3180 = vmatpush.bf16.msra.mxu0 0
  %3181 = vmatpush.bf16.msra.mxu0 0
  %3182 = vmatpush.bf16.msra.mxu0 0
  %3183 = vmatpush.bf16.msra.mxu0 0
  %3184 = vmatpush.bf16.msra.mxu0 0
  %3185 = vmatpush.bf16.msra.mxu0 %v3173
  %3186 = vmatmul.bf16.gmra.mxu0 %v3176
  %v3187 = vpop.f32.mrf.mxu0
  %v3188 = vadd.f32 0.0, %v3187
  %v3189 = vpop.f32.mrf.mxu0
  %v3190 = vadd.f32 0.0, %v3189
  %3191 = vdwg.mxu0
  %v3194 = vunpack.c.l.b16 %v2507
  %v3195 = vunpack.c.l.b16 %v2508
  %v3196 = vpack.c.b16 %v3195, %v3194
  %3197 = vrot.lane.b32.xlu0 %v1617, 64
  %v3198 = vpop.permute.xlu0 %3197
  %v3201 = vsel %vm1748, %v3196, 0
  %3203 = vmatpush.bf16.msra.mxu0 0
  %3204 = vmatpush.bf16.msra.mxu0 0
  %3205 = vmatpush.bf16.msra.mxu0 0
  %3206 = vmatpush.bf16.msra.mxu0 0
  %3207 = vmatpush.bf16.msra.mxu0 0
  %3208 = vmatpush.bf16.msra.mxu0 0
  %3209 = vmatpush.bf16.msra.mxu0 0
  %3210 = vmatpush.bf16.msra.mxu0 %v3198
  %3211 = vmatmul.bf16.gmra.mxu0 %v3201
  %v3212 = vpop.f32.mrf.mxu0
  %v3213 = vadd.f32 0.0, %v3212
  %v3214 = vpop.f32.mrf.mxu0
  %v3215 = vadd.f32 0.0, %v3214
  %3216 = vdwg.mxu0
  %v3219 = vunpack.c.l.b16 %v2509
  %v3220 = vunpack.c.l.b16 %v2510
  %v3221 = vpack.c.b16 %v3220, %v3219
  %3222 = vrot.lane.b32.xlu0 %v1644, 64
  %v3223 = vpop.permute.xlu0 %3222
  %v3226 = vsel %vm1748, %v3221, 0
  %3228 = vmatpush.bf16.msra.mxu0 0
  %3229 = vmatpush.bf16.msra.mxu0 0
  %3230 = vmatpush.bf16.msra.mxu0 0
  %3231 = vmatpush.bf16.msra.mxu0 0
  %3232 = vmatpush.bf16.msra.mxu0 0
  %3233 = vmatpush.bf16.msra.mxu0 0
  %3234 = vmatpush.bf16.msra.mxu0 0
  %3235 = vmatpush.bf16.msra.mxu0 %v3223
  %3236 = vmatmul.bf16.gmra.mxu0 %v3226
  %v3237 = vpop.f32.mrf.mxu0
  %v3238 = vadd.f32 0.0, %v3237
  %v3239 = vpop.f32.mrf.mxu0
  %v3240 = vadd.f32 0.0, %v3239
  %3241 = vdwg.mxu0
  %v3244 = vunpack.c.l.b16 %v2511
  %v3245 = vunpack.c.l.b16 %v2512
  %v3246 = vpack.c.b16 %v3245, %v3244
  %3247 = vrot.lane.b32.xlu0 %v1671, 64
  %v3248 = vpop.permute.xlu0 %3247
  %v3251 = vsel %vm1748, %v3246, 0
  %3253 = vmatpush.bf16.msra.mxu0 0
  %3254 = vmatpush.bf16.msra.mxu0 0
  %3255 = vmatpush.bf16.msra.mxu0 0
  %3256 = vmatpush.bf16.msra.mxu0 0
  %3257 = vmatpush.bf16.msra.mxu0 0
  %3258 = vmatpush.bf16.msra.mxu0 0
  %3259 = vmatpush.bf16.msra.mxu0 0
  %3260 = vmatpush.bf16.msra.mxu0 %v3248
  %3261 = vmatmul.bf16.gmra.mxu0 %v3251
  %v3262 = vpop.f32.mrf.mxu0
  %v3263 = vadd.f32 0.0, %v3262
  %v3264 = vpop.f32.mrf.mxu0
  %v3265 = vadd.f32 0.0, %v3264
  %3266 = vdwg.mxu0
  %v3269 = vunpack.c.l.b16 %v2513
  %v3270 = vunpack.c.l.b16 %v2514
  %v3271 = vpack.c.b16 %v3270, %v3269
  %3272 = vrot.lane.b32.xlu0 %v1698, 64
  %v3273 = vpop.permute.xlu0 %3272
  %v3276 = vsel %vm1748, %v3271, 0
  %3278 = vmatpush.bf16.msra.mxu0 0
  %3279 = vmatpush.bf16.msra.mxu0 0
  %3280 = vmatpush.bf16.msra.mxu0 0
  %3281 = vmatpush.bf16.msra.mxu0 0
  %3282 = vmatpush.bf16.msra.mxu0 0
  %3283 = vmatpush.bf16.msra.mxu0 0
  %3284 = vmatpush.bf16.msra.mxu0 0
  %3285 = vmatpush.bf16.msra.mxu0 %v3273
  %3286 = vmatmul.bf16.gmra.mxu0 %v3276
  %v3287 = vpop.f32.mrf.mxu0
  %v3288 = vadd.f32 0.0, %v3287
  %v3289 = vpop.f32.mrf.mxu0
  %v3290 = vadd.f32 0.0, %v3289
  %3291 = vdwg.mxu0
  %v3294 = vunpack.c.l.b16 %v2515
  %v3295 = vunpack.c.l.b16 %v2516
  %v3296 = vpack.c.b16 %v3295, %v3294
  %3297 = vrot.lane.b32.xlu0 %v1725, 64
  %v3298 = vpop.permute.xlu0 %3297
  %v3301 = vsel %vm1748, %v3296, 0
  %3303 = vmatpush.bf16.msra.mxu0 0
  %3304 = vmatpush.bf16.msra.mxu0 0
  %3305 = vmatpush.bf16.msra.mxu0 0
  %3306 = vmatpush.bf16.msra.mxu0 0
  %3307 = vmatpush.bf16.msra.mxu0 0
  %3308 = vmatpush.bf16.msra.mxu0 0
  %3309 = vmatpush.bf16.msra.mxu0 0
  %3310 = vmatpush.bf16.msra.mxu0 %v3298
  %3311 = vmatmul.bf16.gmra.mxu0 %v3301
  %v3312 = vpop.f32.mrf.mxu0
  %v3313 = vadd.f32 0.0, %v3312
  %v3314 = vpop.f32.mrf.mxu0
  %v3315 = vadd.f32 0.0, %v3314
  %3316 = vdwg.mxu0
  %3333 = vrot.lane.b32.xlu0 %v2738, 8
  %v3334 = vpop.permute.xlu0 %3333
  %3335 = vrot.lane.b32.xlu0 %v2740, 8
  %v3336 = vpop.permute.xlu0 %3335
  %3337 = vrot.lane.b32.xlu0 %v2763, 8
  %v3338 = vpop.permute.xlu0 %3337
  %3339 = vrot.lane.b32.xlu0 %v2765, 8
  %v3340 = vpop.permute.xlu0 %3339
  %3341 = vrot.lane.b32.xlu0 %v2788, 8
  %v3342 = vpop.permute.xlu0 %3341
  %3343 = vrot.lane.b32.xlu0 %v2790, 8
  %v3344 = vpop.permute.xlu0 %3343
  %3345 = vrot.lane.b32.xlu0 %v2813, 8
  %v3346 = vpop.permute.xlu0 %3345
  %3347 = vrot.lane.b32.xlu0 %v2815, 8
  %v3348 = vpop.permute.xlu0 %3347
  %3349 = vrot.lane.b32.xlu0 %v2838, 8
  %v3350 = vpop.permute.xlu0 %3349
  %3351 = vrot.lane.b32.xlu0 %v2840, 8
  %v3352 = vpop.permute.xlu0 %3351
  %3353 = vrot.lane.b32.xlu0 %v2863, 8
  %v3354 = vpop.permute.xlu0 %3353
  %3355 = vrot.lane.b32.xlu0 %v2865, 8
  %v3356 = vpop.permute.xlu0 %3355
  %3357 = vrot.lane.b32.xlu0 %v2888, 8
  %v3358 = vpop.permute.xlu0 %3357
  %3359 = vrot.lane.b32.xlu0 %v2890, 8
  %v3360 = vpop.permute.xlu0 %3359
  %3361 = vrot.lane.b32.xlu0 %v2913, 8
  %v3362 = vpop.permute.xlu0 %3361
  %3363 = vrot.lane.b32.xlu0 %v2915, 8
  %v3364 = vpop.permute.xlu0 %3363
  %3397 = vrot.lane.b32.xlu0 %v2938, 16
  %v3398 = vpop.permute.xlu0 %3397
  %3399 = vrot.lane.b32.xlu0 %v2940, 16
  %v3400 = vpop.permute.xlu0 %3399
  %3401 = vrot.lane.b32.xlu0 %v2963, 16
  %v3402 = vpop.permute.xlu0 %3401
  %3403 = vrot.lane.b32.xlu0 %v2965, 16
  %v3404 = vpop.permute.xlu0 %3403
  %3405 = vrot.lane.b32.xlu0 %v2988, 16
  %v3406 = vpop.permute.xlu0 %3405
  %3407 = vrot.lane.b32.xlu0 %v2990, 16
  %v3408 = vpop.permute.xlu0 %3407
  %3409 = vrot.lane.b32.xlu0 %v3013, 16
  %v3410 = vpop.permute.xlu0 %3409
  %3411 = vrot.lane.b32.xlu0 %v3015, 16
  %v3412 = vpop.permute.xlu0 %3411
  %3413 = vrot.lane.b32.xlu0 %v3038, 16
  %v3414 = vpop.permute.xlu0 %3413
  %3415 = vrot.lane.b32.xlu0 %v3040, 16
  %v3416 = vpop.permute.xlu0 %3415
  %3417 = vrot.lane.b32.xlu0 %v3063, 16
  %v3418 = vpop.permute.xlu0 %3417
  %3419 = vrot.lane.b32.xlu0 %v3065, 16
  %v3420 = vpop.permute.xlu0 %3419
  %3421 = vrot.lane.b32.xlu0 %v3088, 16
  %v3422 = vpop.permute.xlu0 %3421
  %3423 = vrot.lane.b32.xlu0 %v3090, 16
  %v3424 = vpop.permute.xlu0 %3423
  %3425 = vrot.lane.b32.xlu0 %v3113, 16
  %v3426 = vpop.permute.xlu0 %3425
  %3427 = vrot.lane.b32.xlu0 %v3115, 16
  %v3428 = vpop.permute.xlu0 %3427
  %3461 = vrot.lane.b32.xlu0 %v3138, 24
  %v3462 = vpop.permute.xlu0 %3461
  %3463 = vrot.lane.b32.xlu0 %v3140, 24
  %v3464 = vpop.permute.xlu0 %3463
  %3465 = vrot.lane.b32.xlu0 %v3163, 24
  %v3466 = vpop.permute.xlu0 %3465
  %3467 = vrot.lane.b32.xlu0 %v3165, 24
  %v3468 = vpop.permute.xlu0 %3467
  %3469 = vrot.lane.b32.xlu0 %v3188, 24
  %v3470 = vpop.permute.xlu0 %3469
  %3471 = vrot.lane.b32.xlu0 %v3190, 24
  %v3472 = vpop.permute.xlu0 %3471
  %3473 = vrot.lane.b32.xlu0 %v3213, 24
  %v3474 = vpop.permute.xlu0 %3473
  %3475 = vrot.lane.b32.xlu0 %v3215, 24
  %v3476 = vpop.permute.xlu0 %3475
  %3477 = vrot.lane.b32.xlu0 %v3238, 24
  %v3478 = vpop.permute.xlu0 %3477
  %3479 = vrot.lane.b32.xlu0 %v3240, 24
  %v3480 = vpop.permute.xlu0 %3479
  %3481 = vrot.lane.b32.xlu0 %v3263, 24
  %v3482 = vpop.permute.xlu0 %3481
  %3483 = vrot.lane.b32.xlu0 %v3265, 24
  %v3484 = vpop.permute.xlu0 %3483
  %3485 = vrot.lane.b32.xlu0 %v3288, 24
  %v3486 = vpop.permute.xlu0 %3485
  %3487 = vrot.lane.b32.xlu0 %v3290, 24
  %v3488 = vpop.permute.xlu0 %3487
  %3489 = vrot.lane.b32.xlu0 %v3313, 24
  %v3490 = vpop.permute.xlu0 %3489
  %3491 = vrot.lane.b32.xlu0 %v3315, 24
  %v3492 = vpop.permute.xlu0 %3491
  %v3509 = vsel %vm890, %v2538, %v3334
  %v3510 = vsel %vm890, %v2540, %v3336
  %v3511 = vsel %vm890, %v2563, %v3338
  %v3512 = vsel %vm890, %v2565, %v3340
  %v3513 = vsel %vm890, %v2588, %v3342
  %v3514 = vsel %vm890, %v2590, %v3344
  %v3515 = vsel %vm890, %v2613, %v3346
  %v3516 = vsel %vm890, %v2615, %v3348
  %v3517 = vsel %vm890, %v2638, %v3350
  %v3518 = vsel %vm890, %v2640, %v3352
  %v3519 = vsel %vm890, %v2663, %v3354
  %v3520 = vsel %vm890, %v2665, %v3356
  %v3521 = vsel %vm890, %v2688, %v3358
  %v3522 = vsel %vm890, %v2690, %v3360
  %v3523 = vsel %vm890, %v2713, %v3362
  %v3524 = vsel %vm890, %v2715, %v3364
  %v3525 = vsel %vm1748, %v3509, %v3398
  %v3526 = vsel %vm1748, %v3510, %v3400
  %v3527 = vsel %vm1748, %v3511, %v3402
  %v3528 = vsel %vm1748, %v3512, %v3404
  %v3529 = vsel %vm1748, %v3513, %v3406
  %v3530 = vsel %vm1748, %v3514, %v3408
  %v3531 = vsel %vm1748, %v3515, %v3410
  %v3532 = vsel %vm1748, %v3516, %v3412
  %v3533 = vsel %vm1748, %v3517, %v3414
  %v3534 = vsel %vm1748, %v3518, %v3416
  %v3535 = vsel %vm1748, %v3519, %v3418
  %v3536 = vsel %vm1748, %v3520, %v3420
  %v3537 = vsel %vm1748, %v3521, %v3422
  %v3538 = vsel %vm1748, %v3522, %v3424
  %v3539 = vsel %vm1748, %v3523, %v3426
  %v3540 = vsel %vm1748, %v3524, %v3428
  %vm3541 = vcmask 195584
  %v3542 = vsel %vm3541, %v3525, %v3462
  %v3543 = vsel %vm3541, %v3526, %v3464
  %v3544 = vsel %vm3541, %v3527, %v3466
  %v3545 = vsel %vm3541, %v3528, %v3468
  %v3546 = vsel %vm3541, %v3529, %v3470
  %v3547 = vsel %vm3541, %v3530, %v3472
  %v3548 = vsel %vm3541, %v3531, %v3474
  %v3549 = vsel %vm3541, %v3532, %v3476
  %v3550 = vsel %vm3541, %v3533, %v3478
  %v3551 = vsel %vm3541, %v3534, %v3480
  %v3552 = vsel %vm3541, %v3535, %v3482
  %v3553 = vsel %vm3541, %v3536, %v3484
  %v3554 = vsel %vm3541, %v3537, %v3486
  %v3555 = vsel %vm3541, %v3538, %v3488
  %v3556 = vsel %vm3541, %v3539, %v3490
  %v3557 = vsel %vm3541, %v3540, %v3492
  %v3558 = vld [vmem:[%s2] sm:$0xf]
  %v3559 = vld [vmem:[%s2 + $0x4] sm:$0xf]
  %v3560 = vld [vmem:[%s2 + $0x8] sm:$0xf]
  %v3561 = vld [vmem:[%s2 + $0xc] sm:$0xf]
  %v3562 = vld [vmem:[%s2 + $0x10] sm:$0xf]
  %v3563 = vld [vmem:[%s2 + $0x14] sm:$0xf]
  %v3564 = vld [vmem:[%s2 + $0x18] sm:$0xf]
  %v3565 = vld [vmem:[%s2 + $0x1c] sm:$0xf]
  %v3566 = vld [vmem:[%s2 + $0x20] sm:$0xf]
  %v3567 = vld [vmem:[%s2 + $0x24] sm:$0xf]
  %v3568 = vld [vmem:[%s2 + $0x28] sm:$0xf]
  %v3569 = vld [vmem:[%s2 + $0x2c] sm:$0xf]
  %v3570 = vld [vmem:[%s2 + $0x30] sm:$0xf]
  %v3571 = vld [vmem:[%s2 + $0x34] sm:$0xf]
  %v3572 = vld [vmem:[%s2 + $0x38] sm:$0xf]
  %v3573 = vld [vmem:[%s2 + $0x3c] sm:$0xf]
  %v3574 = vpack.c.bf16 %v3543, %v3542
  %v3575 = vpack.c.bf16 %v3545, %v3544
  %v3576 = vpack.c.bf16 %v3547, %v3546
  %v3577 = vpack.c.bf16 %v3549, %v3548
  %v3578 = vpack.c.bf16 %v3551, %v3550
  %v3579 = vpack.c.bf16 %v3553, %v3552
  %v3580 = vpack.c.bf16 %v3555, %v3554
  %v3581 = vpack.c.bf16 %v3557, %v3556
  %v3598 = vunpack.c.l.b16 %v3558
  %v3599 = vunpack.c.l.b16 %v3559
  %v3600 = vunpack.c.l.b16 %v3560
  %v3601 = vunpack.c.l.b16 %v3561
  %v3602 = vunpack.c.l.b16 %v3562
  %v3603 = vunpack.c.l.b16 %v3563
  %v3604 = vunpack.c.l.b16 %v3564
  %v3605 = vunpack.c.l.b16 %v3565
  %v3606 = vunpack.c.l.b16 %v3566
  %v3607 = vunpack.c.l.b16 %v3567
  %v3608 = vunpack.c.l.b16 %v3568
  %v3609 = vunpack.c.l.b16 %v3569
  %v3610 = vunpack.c.l.b16 %v3570
  %v3611 = vunpack.c.l.b16 %v3571
  %v3612 = vunpack.c.l.b16 %v3572
  %v3613 = vunpack.c.l.b16 %v3573
  %v3614 = vpack.c.b16 %v3599, %v3598
  %v3615 = vpack.c.b16 %v3601, %v3600
  %v3616 = vpack.c.b16 %v3603, %v3602
  %v3617 = vpack.c.b16 %v3605, %v3604
  %v3618 = vpack.c.b16 %v3607, %v3606
  %v3619 = vpack.c.b16 %v3609, %v3608
  %v3620 = vpack.c.b16 %v3611, %v3610
  %v3621 = vpack.c.b16 %v3613, %v3612
  %3630 = vmatpush.bf16.msra.mxu0 %v3581
  %3631 = vmatpush.bf16.msra.mxu0 %v3580
  %3632 = vmatpush.bf16.msra.mxu0 %v3579
  %3633 = vmatpush.bf16.msra.mxu0 %v3578
  %3634 = vmatpush.bf16.msra.mxu0 %v3577
  %3635 = vmatpush.bf16.msra.mxu0 %v3576
  %3636 = vmatpush.bf16.msra.mxu0 %v3575
  %3637 = vmatpush.bf16.msra.mxu0 %v3574
  %3638 = vmatmul.bf16.gmra.mxu0 %v3614
  %v3639 = vpop.f32.mrf.mxu0
  %v3640 = vadd.f32 0.0, %v3639
  %v3641 = vpop.f32.mrf.mxu0
  %v3642 = vadd.f32 0.0, %v3641
  %3643 = vmatmul.bf16.gmra.mxu0 %v3615
  %v3644 = vpop.f32.mrf.mxu0
  %v3645 = vadd.f32 0.0, %v3644
  %v3646 = vpop.f32.mrf.mxu0
  %v3647 = vadd.f32 0.0, %v3646
  %3648 = vmatmul.bf16.gmra.mxu0 %v3616
  %v3649 = vpop.f32.mrf.mxu0
  %v3650 = vadd.f32 0.0, %v3649
  %v3651 = vpop.f32.mrf.mxu0
  %v3652 = vadd.f32 0.0, %v3651
  %3653 = vmatmul.bf16.gmra.mxu0 %v3617
  %v3654 = vpop.f32.mrf.mxu0
  %v3655 = vadd.f32 0.0, %v3654
  %v3656 = vpop.f32.mrf.mxu0
  %v3657 = vadd.f32 0.0, %v3656
  %3658 = vmatmul.bf16.gmra.mxu0 %v3618
  %v3659 = vpop.f32.mrf.mxu0
  %v3660 = vadd.f32 0.0, %v3659
  %v3661 = vpop.f32.mrf.mxu0
  %v3662 = vadd.f32 0.0, %v3661
  %3663 = vmatmul.bf16.gmra.mxu0 %v3619
  %v3664 = vpop.f32.mrf.mxu0
  %v3665 = vadd.f32 0.0, %v3664
  %v3666 = vpop.f32.mrf.mxu0
  %v3667 = vadd.f32 0.0, %v3666
  %3668 = vmatmul.bf16.gmra.mxu0 %v3620
  %v3669 = vpop.f32.mrf.mxu0
  %v3670 = vadd.f32 0.0, %v3669
  %v3671 = vpop.f32.mrf.mxu0
  %v3672 = vadd.f32 0.0, %v3671
  %3673 = vmatmul.bf16.gmra.mxu0 %v3621
  %v3674 = vpop.f32.mrf.mxu0
  %v3675 = vadd.f32 0.0, %v3674
  %v3676 = vpop.f32.mrf.mxu0
  %v3677 = vadd.f32 0.0, %v3676
  %3678 = vdwg.mxu0
  %v3679 = vpack.c.bf16 %v3642, %v3640
  %v3680 = vpack.c.bf16 %v3647, %v3645
  %v3681 = vpack.c.bf16 %v3652, %v3650
  %v3682 = vpack.c.bf16 %v3657, %v3655
  %v3683 = vpack.c.bf16 %v3662, %v3660
  %v3684 = vpack.c.bf16 %v3667, %v3665
  %v3685 = vpack.c.bf16 %v3672, %v3670
  %v3686 = vpack.c.bf16 %v3677, %v3675
  %v3687 = vld [vmem:[%s4] sm:$0xf]
  %v3688 = vld [vmem:[%s4 + $0x4] sm:$0xf]
  %v3689 = vld [vmem:[%s4 + $0x8] sm:$0xf]
  %v3690 = vld [vmem:[%s4 + $0xc] sm:$0xf]
  %v3695 = vunpack.c.l.b16 %v3687
  %v3696 = vunpack.c.l.b16 %v3688
  %v3697 = vunpack.c.l.b16 %v3689
  %v3698 = vunpack.c.l.b16 %v3690
  %v3699 = vpack.c.b16 %v3696, %v3695
  %v3700 = vpack.c.b16 %v3698, %v3697
  %v3704 = vsel %vm47, %v3679, 0
  %v3707 = vsel %vm47, %v3680, 0
  %v3710 = vsel %vm47, %v3681, 0
  %v3713 = vsel %vm47, %v3682, 0
  %v3716 = vsel %vm47, %v3683, 0
  %v3719 = vsel %vm47, %v3684, 0
  %v3722 = vsel %vm47, %v3685, 0
  %v3725 = vsel %vm47, %v3686, 0
  %3727 = vmatpush.bf16.msra.mxu0 0
  %3728 = vmatpush.bf16.msra.mxu0 0
  %3729 = vmatpush.bf16.msra.mxu0 0
  %3730 = vmatpush.bf16.msra.mxu0 0
  %3731 = vmatpush.bf16.msra.mxu0 0
  %3732 = vmatpush.bf16.msra.mxu0 0
  %3733 = vmatpush.bf16.msra.mxu0 %v3700
  %3734 = vmatpush.bf16.msra.mxu0 %v3699
  %3735 = vmatmul.bf16.gmra.mxu0 %v3704
  %v3736 = vpop.f32.mrf.mxu0
  %v3737 = vadd.f32 0.0, %v3736
  %v3738 = vpop.f32.mrf.mxu0
  %v3739 = vadd.f32 0.0, %v3738
  %3740 = vmatmul.bf16.gmra.mxu0 %v3707
  %v3741 = vpop.f32.mrf.mxu0
  %v3742 = vadd.f32 0.0, %v3741
  %v3743 = vpop.f32.mrf.mxu0
  %v3744 = vadd.f32 0.0, %v3743
  %3745 = vmatmul.bf16.gmra.mxu0 %v3710
  %v3746 = vpop.f32.mrf.mxu0
  %v3747 = vadd.f32 0.0, %v3746
  %v3748 = vpop.f32.mrf.mxu0
  %v3749 = vadd.f32 0.0, %v3748
  %3750 = vmatmul.bf16.gmra.mxu0 %v3713
  %v3751 = vpop.f32.mrf.mxu0
  %v3752 = vadd.f32 0.0, %v3751
  %v3753 = vpop.f32.mrf.mxu0
  %v3754 = vadd.f32 0.0, %v3753
  %3755 = vmatmul.bf16.gmra.mxu0 %v3716
  %v3756 = vpop.f32.mrf.mxu0
  %v3757 = vadd.f32 0.0, %v3756
  %v3758 = vpop.f32.mrf.mxu0
  %v3759 = vadd.f32 0.0, %v3758
  %3760 = vmatmul.bf16.gmra.mxu0 %v3719
  %v3761 = vpop.f32.mrf.mxu0
  %v3762 = vadd.f32 0.0, %v3761
  %v3763 = vpop.f32.mrf.mxu0
  %v3764 = vadd.f32 0.0, %v3763
  %3765 = vmatmul.bf16.gmra.mxu0 %v3722
  %v3766 = vpop.f32.mrf.mxu0
  %v3767 = vadd.f32 0.0, %v3766
  %v3768 = vpop.f32.mrf.mxu0
  %v3769 = vadd.f32 0.0, %v3768
  %3770 = vmatmul.bf16.gmra.mxu0 %v3725
  %v3771 = vpop.f32.mrf.mxu0
  %v3772 = vadd.f32 0.0, %v3771
  %v3773 = vpop.f32.mrf.mxu0
  %v3774 = vadd.f32 0.0, %v3773
  %3775 = vdwg.mxu0
  %v3776 = vadd.f32 %v30, %v3737
  %v3777 = vadd.f32 %v31, %v3739
  %v3778 = vadd.f32 %v32, %v3742
  %v3779 = vadd.f32 %v33, %v3744
  %v3780 = vadd.f32 %v34, %v3747
  %v3781 = vadd.f32 %v35, %v3749
  %v3782 = vadd.f32 %v36, %v3752
  %v3783 = vadd.f32 %v37, %v3754
  %v3784 = vadd.f32 %v38, %v3757
  %v3785 = vadd.f32 %v39, %v3759
  %v3786 = vadd.f32 %v40, %v3762
  %v3787 = vadd.f32 %v41, %v3764
  %v3788 = vadd.f32 %v42, %v3767
  %v3789 = vadd.f32 %v43, %v3769
  %v3790 = vadd.f32 %v44, %v3772
  %v3791 = vadd.f32 %v45, %v3774
  %v3792 = vperm.slane %v46, 4
  %v3793 = vadd.f32 %v3776, %v3792
  %v3794 = vadd.f32 %v3777, %v3792
  %v3795 = vadd.f32 %v3778, %v3792
  %v3796 = vadd.f32 %v3779, %v3792
  %v3797 = vadd.f32 %v3780, %v3792
  %v3798 = vadd.f32 %v3781, %v3792
  %v3799 = vadd.f32 %v3782, %v3792
  %v3800 = vadd.f32 %v3783, %v3792
  %v3801 = vadd.f32 %v3784, %v3792
  %v3802 = vadd.f32 %v3785, %v3792
  %v3803 = vadd.f32 %v3786, %v3792
  %v3804 = vadd.f32 %v3787, %v3792
  %v3805 = vadd.f32 %v3788, %v3792
  %v3806 = vadd.f32 %v3789, %v3792
  %v3807 = vadd.f32 %v3790, %v3792
  %v3808 = vadd.f32 %v3791, %v3792
  %v3809 = vsel %vm47, %v3793, 0.0
  %3810 = vadd.xlane.f32.xlu0 %v3809
  %v3811 = vpop.xlane.xlu0 %3810
  %v3812 = vsel %vm47, %v3794, 0.0
  %3813 = vadd.xlane.f32.xlu0 %v3812
  %v3814 = vpop.xlane.xlu0 %3813
  %v3815 = vsel %vm47, %v3795, 0.0
  %3816 = vadd.xlane.f32.xlu0 %v3815
  %v3817 = vpop.xlane.xlu0 %3816
  %v3818 = vsel %vm47, %v3796, 0.0
  %3819 = vadd.xlane.f32.xlu0 %v3818
  %v3820 = vpop.xlane.xlu0 %3819
  %v3821 = vsel %vm47, %v3797, 0.0
  %3822 = vadd.xlane.f32.xlu0 %v3821
  %v3823 = vpop.xlane.xlu0 %3822
  %v3824 = vsel %vm47, %v3798, 0.0
  %3825 = vadd.xlane.f32.xlu0 %v3824
  %v3826 = vpop.xlane.xlu0 %3825
  %v3827 = vsel %vm47, %v3799, 0.0
  %3828 = vadd.xlane.f32.xlu0 %v3827
  %v3829 = vpop.xlane.xlu0 %3828
  %v3830 = vsel %vm47, %v3800, 0.0
  %3831 = vadd.xlane.f32.xlu0 %v3830
  %v3832 = vpop.xlane.xlu0 %3831
  %v3833 = vsel %vm47, %v3801, 0.0
  %3834 = vadd.xlane.f32.xlu0 %v3833
  %v3835 = vpop.xlane.xlu0 %3834
  %v3836 = vsel %vm47, %v3802, 0.0
  %3837 = vadd.xlane.f32.xlu0 %v3836
  %v3838 = vpop.xlane.xlu0 %3837
  %v3839 = vsel %vm47, %v3803, 0.0
  %3840 = vadd.xlane.f32.xlu0 %v3839
  %v3841 = vpop.xlane.xlu0 %3840
  %v3842 = vsel %vm47, %v3804, 0.0
  %3843 = vadd.xlane.f32.xlu0 %v3842
  %v3844 = vpop.xlane.xlu0 %3843
  %v3845 = vsel %vm47, %v3805, 0.0
  %3846 = vadd.xlane.f32.xlu0 %v3845
  %v3847 = vpop.xlane.xlu0 %3846
  %v3848 = vsel %vm47, %v3806, 0.0
  %3849 = vadd.xlane.f32.xlu0 %v3848
  %v3850 = vpop.xlane.xlu0 %3849
  %v3851 = vsel %vm47, %v3807, 0.0
  %3852 = vadd.xlane.f32.xlu0 %v3851
  %v3853 = vpop.xlane.xlu0 %3852
  %v3854 = vsel %vm47, %v3808, 0.0
  %3855 = vadd.xlane.f32.xlu0 %v3854
  %v3856 = vpop.xlane.xlu0 %3855
  %v3857 = vmul.f32 %v3811, %v102
  %v3858 = vmul.f32 %v3814, %v102
  %v3859 = vmul.f32 %v3817, %v102
  %v3860 = vmul.f32 %v3820, %v102
  %v3861 = vmul.f32 %v3823, %v102
  %v3862 = vmul.f32 %v3826, %v102
  %v3863 = vmul.f32 %v3829, %v102
  %v3864 = vmul.f32 %v3832, %v102
  %v3865 = vmul.f32 %v3835, %v102
  %v3866 = vmul.f32 %v3838, %v102
  %v3867 = vmul.f32 %v3841, %v102
  %v3868 = vmul.f32 %v3844, %v102
  %v3869 = vmul.f32 %v3847, %v102
  %v3870 = vmul.f32 %v3850, %v102
  %v3871 = vmul.f32 %v3853, %v102
  %v3872 = vmul.f32 %v3856, %v102
  %v3873 = vsub.f32 %v3793, %v3857
  %v3874 = vsub.f32 %v3794, %v3858
  %v3875 = vsub.f32 %v3795, %v3859
  %v3876 = vsub.f32 %v3796, %v3860
  %v3877 = vsub.f32 %v3797, %v3861
  %v3878 = vsub.f32 %v3798, %v3862
  %v3879 = vsub.f32 %v3799, %v3863
  %v3880 = vsub.f32 %v3800, %v3864
  %v3881 = vsub.f32 %v3801, %v3865
  %v3882 = vsub.f32 %v3802, %v3866
  %v3883 = vsub.f32 %v3803, %v3867
  %v3884 = vsub.f32 %v3804, %v3868
  %v3885 = vsub.f32 %v3805, %v3869
  %v3886 = vsub.f32 %v3806, %v3870
  %v3887 = vsub.f32 %v3807, %v3871
  %v3888 = vsub.f32 %v3808, %v3872
  %v3889 = vmul.f32 %v3873, %v3873
  %v3890 = vmul.f32 %v3874, %v3874
  %v3891 = vmul.f32 %v3875, %v3875
  %v3892 = vmul.f32 %v3876, %v3876
  %v3893 = vmul.f32 %v3877, %v3877
  %v3894 = vmul.f32 %v3878, %v3878
  %v3895 = vmul.f32 %v3879, %v3879
  %v3896 = vmul.f32 %v3880, %v3880
  %v3897 = vmul.f32 %v3881, %v3881
  %v3898 = vmul.f32 %v3882, %v3882
  %v3899 = vmul.f32 %v3883, %v3883
  %v3900 = vmul.f32 %v3884, %v3884
  %v3901 = vmul.f32 %v3885, %v3885
  %v3902 = vmul.f32 %v3886, %v3886
  %v3903 = vmul.f32 %v3887, %v3887
  %v3904 = vmul.f32 %v3888, %v3888
  %v3905 = vsel %vm47, %v3889, 0.0
  %3906 = vadd.xlane.f32.xlu0 %v3905
  %v3907 = vpop.xlane.xlu0 %3906
  %v3908 = vsel %vm47, %v3890, 0.0
  %3909 = vadd.xlane.f32.xlu0 %v3908
  %v3910 = vpop.xlane.xlu0 %3909
  %v3911 = vsel %vm47, %v3891, 0.0
  %3912 = vadd.xlane.f32.xlu0 %v3911
  %v3913 = vpop.xlane.xlu0 %3912
  %v3914 = vsel %vm47, %v3892, 0.0
  %3915 = vadd.xlane.f32.xlu0 %v3914
  %v3916 = vpop.xlane.xlu0 %3915
  %v3917 = vsel %vm47, %v3893, 0.0
  %3918 = vadd.xlane.f32.xlu0 %v3917
  %v3919 = vpop.xlane.xlu0 %3918
  %v3920 = vsel %vm47, %v3894, 0.0
  %3921 = vadd.xlane.f32.xlu0 %v3920
  %v3922 = vpop.xlane.xlu0 %3921
  %v3923 = vsel %vm47, %v3895, 0.0
  %3924 = vadd.xlane.f32.xlu0 %v3923
  %v3925 = vpop.xlane.xlu0 %3924
  %v3926 = vsel %vm47, %v3896, 0.0
  %3927 = vadd.xlane.f32.xlu0 %v3926
  %v3928 = vpop.xlane.xlu0 %3927
  %v3929 = vsel %vm47, %v3897, 0.0
  %3930 = vadd.xlane.f32.xlu0 %v3929
  %v3931 = vpop.xlane.xlu0 %3930
  %v3932 = vsel %vm47, %v3898, 0.0
  %3933 = vadd.xlane.f32.xlu0 %v3932
  %v3934 = vpop.xlane.xlu0 %3933
  %v3935 = vsel %vm47, %v3899, 0.0
  %3936 = vadd.xlane.f32.xlu0 %v3935
  %v3937 = vpop.xlane.xlu0 %3936
  %v3938 = vsel %vm47, %v3900, 0.0
  %3939 = vadd.xlane.f32.xlu0 %v3938
  %v3940 = vpop.xlane.xlu0 %3939
  %v3941 = vsel %vm47, %v3901, 0.0
  %3942 = vadd.xlane.f32.xlu0 %v3941
  %v3943 = vpop.xlane.xlu0 %3942
  %v3944 = vsel %vm47, %v3902, 0.0
  %3945 = vadd.xlane.f32.xlu0 %v3944
  %v3946 = vpop.xlane.xlu0 %3945
  %v3947 = vsel %vm47, %v3903, 0.0
  %3948 = vadd.xlane.f32.xlu0 %v3947
  %v3949 = vpop.xlane.xlu0 %3948
  %v3950 = vsel %vm47, %v3904, 0.0
  %3951 = vadd.xlane.f32.xlu0 %v3950
  %v3952 = vpop.xlane.xlu0 %3951
  %v3953 = vmul.f32 %v3907, %v102
  %v3954 = vmul.f32 %v3910, %v102
  %v3955 = vmul.f32 %v3913, %v102
  %v3956 = vmul.f32 %v3916, %v102
  %v3957 = vmul.f32 %v3919, %v102
  %v3958 = vmul.f32 %v3922, %v102
  %v3959 = vmul.f32 %v3925, %v102
  %v3960 = vmul.f32 %v3928, %v102
  %v3961 = vmul.f32 %v3931, %v102
  %v3962 = vmul.f32 %v3934, %v102
  %v3963 = vmul.f32 %v3937, %v102
  %v3964 = vmul.f32 %v3940, %v102
  %v3965 = vmul.f32 %v3943, %v102
  %v3966 = vmul.f32 %v3946, %v102
  %v3967 = vmul.f32 %v3949, %v102
  %v3968 = vmul.f32 %v3952, %v102
  %v3969 = vadd.f32 %v3953, 1e-05
  %v3970 = vadd.f32 %v3954, 1e-05
  %v3971 = vadd.f32 %v3955, 1e-05
  %v3972 = vadd.f32 %v3956, 1e-05
  %v3973 = vadd.f32 %v3957, 1e-05
  %v3974 = vadd.f32 %v3958, 1e-05
  %v3975 = vadd.f32 %v3959, 1e-05
  %v3976 = vadd.f32 %v3960, 1e-05
  %v3977 = vadd.f32 %v3961, 1e-05
  %v3978 = vadd.f32 %v3962, 1e-05
  %v3979 = vadd.f32 %v3963, 1e-05
  %v3980 = vadd.f32 %v3964, 1e-05
  %v3981 = vadd.f32 %v3965, 1e-05
  %v3982 = vadd.f32 %v3966, 1e-05
  %v3983 = vadd.f32 %v3967, 1e-05
  %v3984 = vadd.f32 %v3968, 1e-05
  %v3985 = vrsqrt.pop %v3969
  %v3986 = vmul.f32 %v3985, %v3969
  %v3987 = vmul.f32 %v3986, %v3985
  %v3988 = vmul.f32 0.5, %v3987
  %v3989 = vsub.f32 1.5, %v3988
  %v3990 = vmul.f32 %v3985, %v3989
  %vm3991 = vweird.f32 %v3969
  %vm3992 = vweird.f32 %v3985
  %vm3993 = vmor %vm3991, %vm3992
  %v3994 = vsel %vm3993, %v3985, %v3990
  %v3995 = vrsqrt.pop %v3970
  %v3996 = vmul.f32 %v3995, %v3970
  %v3997 = vmul.f32 %v3996, %v3995
  %v3998 = vmul.f32 0.5, %v3997
  %v3999 = vsub.f32 1.5, %v3998
  %v4000 = vmul.f32 %v3995, %v3999
  %vm4001 = vweird.f32 %v3970
  %vm4002 = vweird.f32 %v3995
  %vm4003 = vmor %vm4001, %vm4002
  %v4004 = vsel %vm4003, %v3995, %v4000
  %v4005 = vrsqrt.pop %v3971
  %v4006 = vmul.f32 %v4005, %v3971
  %v4007 = vmul.f32 %v4006, %v4005
  %v4008 = vmul.f32 0.5, %v4007
  %v4009 = vsub.f32 1.5, %v4008
  %v4010 = vmul.f32 %v4005, %v4009
  %vm4011 = vweird.f32 %v3971
  %vm4012 = vweird.f32 %v4005
  %vm4013 = vmor %vm4011, %vm4012
  %v4014 = vsel %vm4013, %v4005, %v4010
  %v4015 = vrsqrt.pop %v3972
  %v4016 = vmul.f32 %v4015, %v3972
  %v4017 = vmul.f32 %v4016, %v4015
  %v4018 = vmul.f32 0.5, %v4017
  %v4019 = vsub.f32 1.5, %v4018
  %v4020 = vmul.f32 %v4015, %v4019
  %vm4021 = vweird.f32 %v3972
  %vm4022 = vweird.f32 %v4015
  %vm4023 = vmor %vm4021, %vm4022
  %v4024 = vsel %vm4023, %v4015, %v4020
  %v4025 = vrsqrt.pop %v3973
  %v4026 = vmul.f32 %v4025, %v3973
  %v4027 = vmul.f32 %v4026, %v4025
  %v4028 = vmul.f32 0.5, %v4027
  %v4029 = vsub.f32 1.5, %v4028
  %v4030 = vmul.f32 %v4025, %v4029
  %vm4031 = vweird.f32 %v3973
  %vm4032 = vweird.f32 %v4025
  %vm4033 = vmor %vm4031, %vm4032
  %v4034 = vsel %vm4033, %v4025, %v4030
  %v4035 = vrsqrt.pop %v3974
  %v4036 = vmul.f32 %v4035, %v3974
  %v4037 = vmul.f32 %v4036, %v4035
  %v4038 = vmul.f32 0.5, %v4037
  %v4039 = vsub.f32 1.5, %v4038
  %v4040 = vmul.f32 %v4035, %v4039
  %vm4041 = vweird.f32 %v3974
  %vm4042 = vweird.f32 %v4035
  %vm4043 = vmor %vm4041, %vm4042
  %v4044 = vsel %vm4043, %v4035, %v4040
  %v4045 = vrsqrt.pop %v3975
  %v4046 = vmul.f32 %v4045, %v3975
  %v4047 = vmul.f32 %v4046, %v4045
  %v4048 = vmul.f32 0.5, %v4047
  %v4049 = vsub.f32 1.5, %v4048
  %v4050 = vmul.f32 %v4045, %v4049
  %vm4051 = vweird.f32 %v3975
  %vm4052 = vweird.f32 %v4045
  %vm4053 = vmor %vm4051, %vm4052
  %v4054 = vsel %vm4053, %v4045, %v4050
  %v4055 = vrsqrt.pop %v3976
  %v4056 = vmul.f32 %v4055, %v3976
  %v4057 = vmul.f32 %v4056, %v4055
  %v4058 = vmul.f32 0.5, %v4057
  %v4059 = vsub.f32 1.5, %v4058
  %v4060 = vmul.f32 %v4055, %v4059
  %vm4061 = vweird.f32 %v3976
  %vm4062 = vweird.f32 %v4055
  %vm4063 = vmor %vm4061, %vm4062
  %v4064 = vsel %vm4063, %v4055, %v4060
  %v4065 = vrsqrt.pop %v3977
  %v4066 = vmul.f32 %v4065, %v3977
  %v4067 = vmul.f32 %v4066, %v4065
  %v4068 = vmul.f32 0.5, %v4067
  %v4069 = vsub.f32 1.5, %v4068
  %v4070 = vmul.f32 %v4065, %v4069
  %vm4071 = vweird.f32 %v3977
  %vm4072 = vweird.f32 %v4065
  %vm4073 = vmor %vm4071, %vm4072
  %v4074 = vsel %vm4073, %v4065, %v4070
  %v4075 = vrsqrt.pop %v3978
  %v4076 = vmul.f32 %v4075, %v3978
  %v4077 = vmul.f32 %v4076, %v4075
  %v4078 = vmul.f32 0.5, %v4077
  %v4079 = vsub.f32 1.5, %v4078
  %v4080 = vmul.f32 %v4075, %v4079
  %vm4081 = vweird.f32 %v3978
  %vm4082 = vweird.f32 %v4075
  %vm4083 = vmor %vm4081, %vm4082
  %v4084 = vsel %vm4083, %v4075, %v4080
  %v4085 = vrsqrt.pop %v3979
  %v4086 = vmul.f32 %v4085, %v3979
  %v4087 = vmul.f32 %v4086, %v4085
  %v4088 = vmul.f32 0.5, %v4087
  %v4089 = vsub.f32 1.5, %v4088
  %v4090 = vmul.f32 %v4085, %v4089
  %vm4091 = vweird.f32 %v3979
  %vm4092 = vweird.f32 %v4085
  %vm4093 = vmor %vm4091, %vm4092
  %v4094 = vsel %vm4093, %v4085, %v4090
  %v4095 = vrsqrt.pop %v3980
  %v4096 = vmul.f32 %v4095, %v3980
  %v4097 = vmul.f32 %v4096, %v4095
  %v4098 = vmul.f32 0.5, %v4097
  %v4099 = vsub.f32 1.5, %v4098
  %v4100 = vmul.f32 %v4095, %v4099
  %vm4101 = vweird.f32 %v3980
  %vm4102 = vweird.f32 %v4095
  %vm4103 = vmor %vm4101, %vm4102
  %v4104 = vsel %vm4103, %v4095, %v4100
  %v4105 = vrsqrt.pop %v3981
  %v4106 = vmul.f32 %v4105, %v3981
  %v4107 = vmul.f32 %v4106, %v4105
  %v4108 = vmul.f32 0.5, %v4107
  %v4109 = vsub.f32 1.5, %v4108
  %v4110 = vmul.f32 %v4105, %v4109
  %vm4111 = vweird.f32 %v3981
  %vm4112 = vweird.f32 %v4105
  %vm4113 = vmor %vm4111, %vm4112
  %v4114 = vsel %vm4113, %v4105, %v4110
  %v4115 = vrsqrt.pop %v3982
  %v4116 = vmul.f32 %v4115, %v3982
  %v4117 = vmul.f32 %v4116, %v4115
  %v4118 = vmul.f32 0.5, %v4117
  %v4119 = vsub.f32 1.5, %v4118
  %v4120 = vmul.f32 %v4115, %v4119
  %vm4121 = vweird.f32 %v3982
  %vm4122 = vweird.f32 %v4115
  %vm4123 = vmor %vm4121, %vm4122
  %v4124 = vsel %vm4123, %v4115, %v4120
  %v4125 = vrsqrt.pop %v3983
  %v4126 = vmul.f32 %v4125, %v3983
  %v4127 = vmul.f32 %v4126, %v4125
  %v4128 = vmul.f32 0.5, %v4127
  %v4129 = vsub.f32 1.5, %v4128
  %v4130 = vmul.f32 %v4125, %v4129
  %vm4131 = vweird.f32 %v3983
  %vm4132 = vweird.f32 %v4125
  %vm4133 = vmor %vm4131, %vm4132
  %v4134 = vsel %vm4133, %v4125, %v4130
  %v4135 = vrsqrt.pop %v3984
  %v4136 = vmul.f32 %v4135, %v3984
  %v4137 = vmul.f32 %v4136, %v4135
  %v4138 = vmul.f32 0.5, %v4137
  %v4139 = vsub.f32 1.5, %v4138
  %v4140 = vmul.f32 %v4135, %v4139
  %vm4141 = vweird.f32 %v3984
  %vm4142 = vweird.f32 %v4135
  %vm4143 = vmor %vm4141, %vm4142
  %v4144 = vsel %vm4143, %v4135, %v4140
  %v4145 = vmul.f32 %v3873, %v3994
  %v4146 = vmul.f32 %v3874, %v4004
  %v4147 = vmul.f32 %v3875, %v4014
  %v4148 = vmul.f32 %v3876, %v4024
  %v4149 = vmul.f32 %v3877, %v4034
  %v4150 = vmul.f32 %v3878, %v4044
  %v4151 = vmul.f32 %v3879, %v4054
  %v4152 = vmul.f32 %v3880, %v4064
  %v4153 = vmul.f32 %v3881, %v4074
  %v4154 = vmul.f32 %v3882, %v4084
  %v4155 = vmul.f32 %v3883, %v4094
  %v4156 = vmul.f32 %v3884, %v4104
  %v4157 = vmul.f32 %v3885, %v4114
  %v4158 = vmul.f32 %v3886, %v4124
  %v4159 = vmul.f32 %v3887, %v4134
  %v4160 = vmul.f32 %v3888, %v4144
  %v4161 = vperm.slane %v46, 2
  %v4162 = vmul.f32 %v4145, %v4161
  %v4163 = vmul.f32 %v4146, %v4161
  %v4164 = vmul.f32 %v4147, %v4161
  %v4165 = vmul.f32 %v4148, %v4161
  %v4166 = vmul.f32 %v4149, %v4161
  %v4167 = vmul.f32 %v4150, %v4161
  %v4168 = vmul.f32 %v4151, %v4161
  %v4169 = vmul.f32 %v4152, %v4161
  %v4170 = vmul.f32 %v4153, %v4161
  %v4171 = vmul.f32 %v4154, %v4161
  %v4172 = vmul.f32 %v4155, %v4161
  %v4173 = vmul.f32 %v4156, %v4161
  %v4174 = vmul.f32 %v4157, %v4161
  %v4175 = vmul.f32 %v4158, %v4161
  %v4176 = vmul.f32 %v4159, %v4161
  %v4177 = vmul.f32 %v4160, %v4161
  %v4178 = vperm.slane %v46, 3
  %v4179 = vadd.f32 %v4162, %v4178
  %v4180 = vadd.f32 %v4163, %v4178
  %v4181 = vadd.f32 %v4164, %v4178
  %v4182 = vadd.f32 %v4165, %v4178
  %v4183 = vadd.f32 %v4166, %v4178
  %v4184 = vadd.f32 %v4167, %v4178
  %v4185 = vadd.f32 %v4168, %v4178
  %v4186 = vadd.f32 %v4169, %v4178
  %v4187 = vadd.f32 %v4170, %v4178
  %v4188 = vadd.f32 %v4171, %v4178
  %v4189 = vadd.f32 %v4172, %v4178
  %v4190 = vadd.f32 %v4173, %v4178
  %v4191 = vadd.f32 %v4174, %v4178
  %v4192 = vadd.f32 %v4175, %v4178
  %v4193 = vadd.f32 %v4176, %v4178
  %v4194 = vadd.f32 %v4177, %v4178
  %v4195 = vpack.c.bf16 %v4180, %v4179
  %v4196 = vpack.c.bf16 %v4182, %v4181
  %v4197 = vpack.c.bf16 %v4184, %v4183
  %v4198 = vpack.c.bf16 %v4186, %v4185
  %v4199 = vpack.c.bf16 %v4188, %v4187
  %v4200 = vpack.c.bf16 %v4190, %v4189
  %v4201 = vpack.c.bf16 %v4192, %v4191
  %v4202 = vpack.c.bf16 %v4194, %v4193
  %v4203 = vld [vmem:[%s5] sm:$0xf]
  %v4204 = vld [vmem:[%s5 + $0x4] sm:$0xf]
  %v4205 = vld [vmem:[%s5 + $0x8] sm:$0xf]
  %v4206 = vld [vmem:[%s5 + $0xc] sm:$0xf]
  %v4207 = vperm.slane %v46, 6
  %v4212 = vunpack.c.l.b16 %v4203
  %v4213 = vunpack.c.l.b16 %v4204
  %v4214 = vunpack.c.l.b16 %v4205
  %v4215 = vunpack.c.l.b16 %v4206
  %v4216 = vpack.c.b16 %v4213, %v4212
  %v4217 = vpack.c.b16 %v4215, %v4214
  %v4221 = vsel %vm47, %v4195, 0
  %v4224 = vsel %vm47, %v4196, 0
  %v4227 = vsel %vm47, %v4197, 0
  %v4230 = vsel %vm47, %v4198, 0
  %v4233 = vsel %vm47, %v4199, 0
  %v4236 = vsel %vm47, %v4200, 0
  %v4239 = vsel %vm47, %v4201, 0
  %v4242 = vsel %vm47, %v4202, 0
  %4244 = vmatpush.bf16.msra.mxu0 0
  %4245 = vmatpush.bf16.msra.mxu0 0
  %4246 = vmatpush.bf16.msra.mxu0 0
  %4247 = vmatpush.bf16.msra.mxu0 0
  %4248 = vmatpush.bf16.msra.mxu0 0
  %4249 = vmatpush.bf16.msra.mxu0 0
  %4250 = vmatpush.bf16.msra.mxu0 %v4217
  %4251 = vmatpush.bf16.msra.mxu0 %v4216
  %4252 = vmatmul.bf16.gmra.mxu0 %v4221
  %v4253 = vpop.f32.mrf.mxu0
  %v4254 = vadd.f32 %v4207, %v4253
  %v4255 = vpop.f32.mrf.mxu0
  %v4256 = vadd.f32 %v4207, %v4255
  %4257 = vmatmul.bf16.gmra.mxu0 %v4224
  %v4258 = vpop.f32.mrf.mxu0
  %v4259 = vadd.f32 %v4207, %v4258
  %v4260 = vpop.f32.mrf.mxu0
  %v4261 = vadd.f32 %v4207, %v4260
  %4262 = vmatmul.bf16.gmra.mxu0 %v4227
  %v4263 = vpop.f32.mrf.mxu0
  %v4264 = vadd.f32 %v4207, %v4263
  %v4265 = vpop.f32.mrf.mxu0
  %v4266 = vadd.f32 %v4207, %v4265
  %4267 = vmatmul.bf16.gmra.mxu0 %v4230
  %v4268 = vpop.f32.mrf.mxu0
  %v4269 = vadd.f32 %v4207, %v4268
  %v4270 = vpop.f32.mrf.mxu0
  %v4271 = vadd.f32 %v4207, %v4270
  %4272 = vmatmul.bf16.gmra.mxu0 %v4233
  %v4273 = vpop.f32.mrf.mxu0
  %v4274 = vadd.f32 %v4207, %v4273
  %v4275 = vpop.f32.mrf.mxu0
  %v4276 = vadd.f32 %v4207, %v4275
  %4277 = vmatmul.bf16.gmra.mxu0 %v4236
  %v4278 = vpop.f32.mrf.mxu0
  %v4279 = vadd.f32 %v4207, %v4278
  %v4280 = vpop.f32.mrf.mxu0
  %v4281 = vadd.f32 %v4207, %v4280
  %4282 = vmatmul.bf16.gmra.mxu0 %v4239
  %v4283 = vpop.f32.mrf.mxu0
  %v4284 = vadd.f32 %v4207, %v4283
  %v4285 = vpop.f32.mrf.mxu0
  %v4286 = vadd.f32 %v4207, %v4285
  %4287 = vmatmul.bf16.gmra.mxu0 %v4242
  %v4288 = vpop.f32.mrf.mxu0
  %v4289 = vadd.f32 %v4207, %v4288
  %v4290 = vpop.f32.mrf.mxu0
  %v4291 = vadd.f32 %v4207, %v4290
  %4292 = vdwg.mxu0
  %v4293 = vmul.f32 %v4254, 0.5
  %v4294 = vmul.f32 %v4256, 0.5
  %v4295 = vmul.f32 %v4259, 0.5
  %v4296 = vmul.f32 %v4261, 0.5
  %v4297 = vmul.f32 %v4264, 0.5
  %v4298 = vmul.f32 %v4266, 0.5
  %v4299 = vmul.f32 %v4269, 0.5
  %v4300 = vmul.f32 %v4271, 0.5
  %v4301 = vmul.f32 %v4274, 0.5
  %v4302 = vmul.f32 %v4276, 0.5
  %v4303 = vmul.f32 %v4279, 0.5
  %v4304 = vmul.f32 %v4281, 0.5
  %v4305 = vmul.f32 %v4284, 0.5
  %v4306 = vmul.f32 %v4286, 0.5
  %v4307 = vmul.f32 %v4289, 0.5
  %v4308 = vmul.f32 %v4291, 0.5
  %v4309 = vmul.f32 %v4254, 0.70710677
  %v4310 = vmul.f32 %v4256, 0.70710677
  %v4311 = vmul.f32 %v4259, 0.70710677
  %v4312 = vmul.f32 %v4261, 0.70710677
  %v4313 = vmul.f32 %v4264, 0.70710677
  %v4314 = vmul.f32 %v4266, 0.70710677
  %v4315 = vmul.f32 %v4269, 0.70710677
  %v4316 = vmul.f32 %v4271, 0.70710677
  %v4317 = vmul.f32 %v4274, 0.70710677
  %v4318 = vmul.f32 %v4276, 0.70710677
  %v4319 = vmul.f32 %v4279, 0.70710677
  %v4320 = vmul.f32 %v4281, 0.70710677
  %v4321 = vmul.f32 %v4284, 0.70710677
  %v4322 = vmul.f32 %v4286, 0.70710677
  %v4323 = vmul.f32 %v4289, 0.70710677
  %v4324 = vmul.f32 %v4291, 0.70710677
  %v4325 = vmul.f32 %v4309, %v4309
  %v4326 = vmin.f32 16.0, %v4325
  %v4327 = vmul.f32 %v4326, 2.1237322e-06
  %v4328 = vadd.f32 %v4327, 0.00028619796
  %v4329 = vmul.f32 %v4326, %v4328
  %v4330 = vadd.f32 %v4329, 0.0036580483
  %v4331 = vmul.f32 %v4326, %v4330
  %v4332 = vadd.f32 %v4331, 0.05243302
  %v4333 = vmul.f32 %v4326, %v4332
  %v4334 = vadd.f32 %v4333, 0.18741608
  %v4335 = vmul.f32 %v4326, %v4334
  %v4336 = vadd.f32 %v4335, 1.1283791
  %v4337 = vmul.f32 %v4309, %v4336
  %v4338 = vmul.f32 %v4326, 3.8918573e-05
  %v4339 = vadd.f32 %v4338, 0.001143296
  %v4340 = vmul.f32 %v4326, %v4339
  %v4341 = vadd.f32 %v4340, 0.014752088
  %v4342 = vmul.f32 %v4326, %v4341
  %v4343 = vadd.f32 %v4342, 0.112945676
  %v4344 = vmul.f32 %v4326, %v4343
  %v4345 = vadd.f32 %v4344, 0.4994258
  %v4346 = vmul.f32 %v4326, %v4345
  %v4347 = vadd.f32 %v4346, 1.0
  %v4348 = vrcp.pop %v4347
  %v4349 = vmul.f32 %v4347, %v4348
  %v4350 = vsub.f32 1.0, %v4349
  %v4351 = vmul.f32 %v4348, %v4350
  %v4352 = vadd.f32 %v4348, %v4351
  %vm4353 = vweird.f32 %v4347
  %vm4354 = vweird.f32 %v4348
  %vm4355 = vmor %vm4353, %vm4354
  %v4356 = vsel %vm4355, %v4348, %v4352
  %v4357 = vand.u32 2147483647, %v4347
  %vm4358 = vcmp.eq.f32.partialorder %v4357, 8.507059e+37
  %v4359 = vand.u32 %v4347, 2147483648
  %v4360 = vor.u32 1.1754944e-38, %v4359
  %v4361 = vsel %vm4358, %v4360, %v4356
  %v4362 = vmul.f32 %v4337, %v4361
  %v4363 = vmin.f32 %v4362, 1.0
  %v4364 = vmax.f32 %v4363, -1.0
  %v4365 = vmul.f32 %v4310, %v4310
  %v4366 = vmin.f32 16.0, %v4365
  %v4367 = vmul.f32 %v4366, 2.1237322e-06
  %v4368 = vadd.f32 %v4367, 0.00028619796
  %v4369 = vmul.f32 %v4366, %v4368
  %v4370 = vadd.f32 %v4369, 0.0036580483
  %v4371 = vmul.f32 %v4366, %v4370
  %v4372 = vadd.f32 %v4371, 0.05243302
  %v4373 = vmul.f32 %v4366, %v4372
  %v4374 = vadd.f32 %v4373, 0.18741608
  %v4375 = vmul.f32 %v4366, %v4374
  %v4376 = vadd.f32 %v4375, 1.1283791
  %v4377 = vmul.f32 %v4310, %v4376
  %v4378 = vmul.f32 %v4366, 3.8918573e-05
  %v4379 = vadd.f32 %v4378, 0.001143296
  %v4380 = vmul.f32 %v4366, %v4379
  %v4381 = vadd.f32 %v4380, 0.014752088
  %v4382 = vmul.f32 %v4366, %v4381
  %v4383 = vadd.f32 %v4382, 0.112945676
  %v4384 = vmul.f32 %v4366, %v4383
  %v4385 = vadd.f32 %v4384, 0.4994258
  %v4386 = vmul.f32 %v4366, %v4385
  %v4387 = vadd.f32 %v4386, 1.0
  %v4388 = vrcp.pop %v4387
  %v4389 = vmul.f32 %v4387, %v4388
  %v4390 = vsub.f32 1.0, %v4389
  %v4391 = vmul.f32 %v4388, %v4390
  %v4392 = vadd.f32 %v4388, %v4391
  %vm4393 = vweird.f32 %v4387
  %vm4394 = vweird.f32 %v4388
  %vm4395 = vmor %vm4393, %vm4394
  %v4396 = vsel %vm4395, %v4388, %v4392
  %v4397 = vand.u32 2147483647, %v4387
  %vm4398 = vcmp.eq.f32.partialorder %v4397, 8.507059e+37
  %v4399 = vand.u32 %v4387, 2147483648
  %v4400 = vor.u32 1.1754944e-38, %v4399
  %v4401 = vsel %vm4398, %v4400, %v4396
  %v4402 = vmul.f32 %v4377, %v4401
  %v4403 = vmin.f32 %v4402, 1.0
  %v4404 = vmax.f32 %v4403, -1.0
  %v4405 = vmul.f32 %v4311, %v4311
  %v4406 = vmin.f32 16.0, %v4405
  %v4407 = vmul.f32 %v4406, 2.1237322e-06
  %v4408 = vadd.f32 %v4407, 0.00028619796
  %v4409 = vmul.f32 %v4406, %v4408
  %v4410 = vadd.f32 %v4409, 0.0036580483
  %v4411 = vmul.f32 %v4406, %v4410
  %v4412 = vadd.f32 %v4411, 0.05243302
  %v4413 = vmul.f32 %v4406, %v4412
  %v4414 = vadd.f32 %v4413, 0.18741608
  %v4415 = vmul.f32 %v4406, %v4414
  %v4416 = vadd.f32 %v4415, 1.1283791
  %v4417 = vmul.f32 %v4311, %v4416
  %v4418 = vmul.f32 %v4406, 3.8918573e-05
  %v4419 = vadd.f32 %v4418, 0.001143296
  %v4420 = vmul.f32 %v4406, %v4419
  %v4421 = vadd.f32 %v4420, 0.014752088
  %v4422 = vmul.f32 %v4406, %v4421
  %v4423 = vadd.f32 %v4422, 0.112945676
  %v4424 = vmul.f32 %v4406, %v4423
  %v4425 = vadd.f32 %v4424, 0.4994258
  %v4426 = vmul.f32 %v4406, %v4425
  %v4427 = vadd.f32 %v4426, 1.0
  %v4428 = vrcp.pop %v4427
  %v4429 = vmul.f32 %v4427, %v4428
  %v4430 = vsub.f32 1.0, %v4429
  %v4431 = vmul.f32 %v4428, %v4430
  %v4432 = vadd.f32 %v4428, %v4431
  %vm4433 = vweird.f32 %v4427
  %vm4434 = vweird.f32 %v4428
  %vm4435 = vmor %vm4433, %vm4434
  %v4436 = vsel %vm4435, %v4428, %v4432
  %v4437 = vand.u32 2147483647, %v4427
  %vm4438 = vcmp.eq.f32.partialorder %v4437, 8.507059e+37
  %v4439 = vand.u32 %v4427, 2147483648
  %v4440 = vor.u32 1.1754944e-38, %v4439
  %v4441 = vsel %vm4438, %v4440, %v4436
  %v4442 = vmul.f32 %v4417, %v4441
  %v4443 = vmin.f32 %v4442, 1.0
  %v4444 = vmax.f32 %v4443, -1.0
  %v4445 = vmul.f32 %v4312, %v4312
  %v4446 = vmin.f32 16.0, %v4445
  %v4447 = vmul.f32 %v4446, 2.1237322e-06
  %v4448 = vadd.f32 %v4447, 0.00028619796
  %v4449 = vmul.f32 %v4446, %v4448
  %v4450 = vadd.f32 %v4449, 0.0036580483
  %v4451 = vmul.f32 %v4446, %v4450
  %v4452 = vadd.f32 %v4451, 0.05243302
  %v4453 = vmul.f32 %v4446, %v4452
  %v4454 = vadd.f32 %v4453, 0.18741608
  %v4455 = vmul.f32 %v4446, %v4454
  %v4456 = vadd.f32 %v4455, 1.1283791
  %v4457 = vmul.f32 %v4312, %v4456
  %v4458 = vmul.f32 %v4446, 3.8918573e-05
  %v4459 = vadd.f32 %v4458, 0.001143296
  %v4460 = vmul.f32 %v4446, %v4459
  %v4461 = vadd.f32 %v4460, 0.014752088
  %v4462 = vmul.f32 %v4446, %v4461
  %v4463 = vadd.f32 %v4462, 0.112945676
  %v4464 = vmul.f32 %v4446, %v4463
  %v4465 = vadd.f32 %v4464, 0.4994258
  %v4466 = vmul.f32 %v4446, %v4465
  %v4467 = vadd.f32 %v4466, 1.0
  %v4468 = vrcp.pop %v4467
  %v4469 = vmul.f32 %v4467, %v4468
  %v4470 = vsub.f32 1.0, %v4469
  %v4471 = vmul.f32 %v4468, %v4470
  %v4472 = vadd.f32 %v4468, %v4471
  %vm4473 = vweird.f32 %v4467
  %vm4474 = vweird.f32 %v4468
  %vm4475 = vmor %vm4473, %vm4474
  %v4476 = vsel %vm4475, %v4468, %v4472
  %v4477 = vand.u32 2147483647, %v4467
  %vm4478 = vcmp.eq.f32.partialorder %v4477, 8.507059e+37
  %v4479 = vand.u32 %v4467, 2147483648
  %v4480 = vor.u32 1.1754944e-38, %v4479
  %v4481 = vsel %vm4478, %v4480, %v4476
  %v4482 = vmul.f32 %v4457, %v4481
  %v4483 = vmin.f32 %v4482, 1.0
  %v4484 = vmax.f32 %v4483, -1.0
  %v4485 = vmul.f32 %v4313, %v4313
  %v4486 = vmin.f32 16.0, %v4485
  %v4487 = vmul.f32 %v4486, 2.1237322e-06
  %v4488 = vadd.f32 %v4487, 0.00028619796
  %v4489 = vmul.f32 %v4486, %v4488
  %v4490 = vadd.f32 %v4489, 0.0036580483
  %v4491 = vmul.f32 %v4486, %v4490
  %v4492 = vadd.f32 %v4491, 0.05243302
  %v4493 = vmul.f32 %v4486, %v4492
  %v4494 = vadd.f32 %v4493, 0.18741608
  %v4495 = vmul.f32 %v4486, %v4494
  %v4496 = vadd.f32 %v4495, 1.1283791
  %v4497 = vmul.f32 %v4313, %v4496
  %v4498 = vmul.f32 %v4486, 3.8918573e-05
  %v4499 = vadd.f32 %v4498, 0.001143296
  %v4500 = vmul.f32 %v4486, %v4499
  %v4501 = vadd.f32 %v4500, 0.014752088
  %v4502 = vmul.f32 %v4486, %v4501
  %v4503 = vadd.f32 %v4502, 0.112945676
  %v4504 = vmul.f32 %v4486, %v4503
  %v4505 = vadd.f32 %v4504, 0.4994258
  %v4506 = vmul.f32 %v4486, %v4505
  %v4507 = vadd.f32 %v4506, 1.0
  %v4508 = vrcp.pop %v4507
  %v4509 = vmul.f32 %v4507, %v4508
  %v4510 = vsub.f32 1.0, %v4509
  %v4511 = vmul.f32 %v4508, %v4510
  %v4512 = vadd.f32 %v4508, %v4511
  %vm4513 = vweird.f32 %v4507
  %vm4514 = vweird.f32 %v4508
  %vm4515 = vmor %vm4513, %vm4514
  %v4516 = vsel %vm4515, %v4508, %v4512
  %v4517 = vand.u32 2147483647, %v4507
  %vm4518 = vcmp.eq.f32.partialorder %v4517, 8.507059e+37
  %v4519 = vand.u32 %v4507, 2147483648
  %v4520 = vor.u32 1.1754944e-38, %v4519
  %v4521 = vsel %vm4518, %v4520, %v4516
  %v4522 = vmul.f32 %v4497, %v4521
  %v4523 = vmin.f32 %v4522, 1.0
  %v4524 = vmax.f32 %v4523, -1.0
  %v4525 = vmul.f32 %v4314, %v4314
  %v4526 = vmin.f32 16.0, %v4525
  %v4527 = vmul.f32 %v4526, 2.1237322e-06
  %v4528 = vadd.f32 %v4527, 0.00028619796
  %v4529 = vmul.f32 %v4526, %v4528
  %v4530 = vadd.f32 %v4529, 0.0036580483
  %v4531 = vmul.f32 %v4526, %v4530
  %v4532 = vadd.f32 %v4531, 0.05243302
  %v4533 = vmul.f32 %v4526, %v4532
  %v4534 = vadd.f32 %v4533, 0.18741608
  %v4535 = vmul.f32 %v4526, %v4534
  %v4536 = vadd.f32 %v4535, 1.1283791
  %v4537 = vmul.f32 %v4314, %v4536
  %v4538 = vmul.f32 %v4526, 3.8918573e-05
  %v4539 = vadd.f32 %v4538, 0.001143296
  %v4540 = vmul.f32 %v4526, %v4539
  %v4541 = vadd.f32 %v4540, 0.014752088
  %v4542 = vmul.f32 %v4526, %v4541
  %v4543 = vadd.f32 %v4542, 0.112945676
  %v4544 = vmul.f32 %v4526, %v4543
  %v4545 = vadd.f32 %v4544, 0.4994258
  %v4546 = vmul.f32 %v4526, %v4545
  %v4547 = vadd.f32 %v4546, 1.0
  %v4548 = vrcp.pop %v4547
  %v4549 = vmul.f32 %v4547, %v4548
  %v4550 = vsub.f32 1.0, %v4549
  %v4551 = vmul.f32 %v4548, %v4550
  %v4552 = vadd.f32 %v4548, %v4551
  %vm4553 = vweird.f32 %v4547
  %vm4554 = vweird.f32 %v4548
  %vm4555 = vmor %vm4553, %vm4554
  %v4556 = vsel %vm4555, %v4548, %v4552
  %v4557 = vand.u32 2147483647, %v4547
  %vm4558 = vcmp.eq.f32.partialorder %v4557, 8.507059e+37
  %v4559 = vand.u32 %v4547, 2147483648
  %v4560 = vor.u32 1.1754944e-38, %v4559
  %v4561 = vsel %vm4558, %v4560, %v4556
  %v4562 = vmul.f32 %v4537, %v4561
  %v4563 = vmin.f32 %v4562, 1.0
  %v4564 = vmax.f32 %v4563, -1.0
  %v4565 = vmul.f32 %v4315, %v4315
  %v4566 = vmin.f32 16.0, %v4565
  %v4567 = vmul.f32 %v4566, 2.1237322e-06
  %v4568 = vadd.f32 %v4567, 0.00028619796
  %v4569 = vmul.f32 %v4566, %v4568
  %v4570 = vadd.f32 %v4569, 0.0036580483
  %v4571 = vmul.f32 %v4566, %v4570
  %v4572 = vadd.f32 %v4571, 0.05243302
  %v4573 = vmul.f32 %v4566, %v4572
  %v4574 = vadd.f32 %v4573, 0.18741608
  %v4575 = vmul.f32 %v4566, %v4574
  %v4576 = vadd.f32 %v4575, 1.1283791
  %v4577 = vmul.f32 %v4315, %v4576
  %v4578 = vmul.f32 %v4566, 3.8918573e-05
  %v4579 = vadd.f32 %v4578, 0.001143296
  %v4580 = vmul.f32 %v4566, %v4579
  %v4581 = vadd.f32 %v4580, 0.014752088
  %v4582 = vmul.f32 %v4566, %v4581
  %v4583 = vadd.f32 %v4582, 0.112945676
  %v4584 = vmul.f32 %v4566, %v4583
  %v4585 = vadd.f32 %v4584, 0.4994258
  %v4586 = vmul.f32 %v4566, %v4585
  %v4587 = vadd.f32 %v4586, 1.0
  %v4588 = vrcp.pop %v4587
  %v4589 = vmul.f32 %v4587, %v4588
  %v4590 = vsub.f32 1.0, %v4589
  %v4591 = vmul.f32 %v4588, %v4590
  %v4592 = vadd.f32 %v4588, %v4591
  %vm4593 = vweird.f32 %v4587
  %vm4594 = vweird.f32 %v4588
  %vm4595 = vmor %vm4593, %vm4594
  %v4596 = vsel %vm4595, %v4588, %v4592
  %v4597 = vand.u32 2147483647, %v4587
  %vm4598 = vcmp.eq.f32.partialorder %v4597, 8.507059e+37
  %v4599 = vand.u32 %v4587, 2147483648
  %v4600 = vor.u32 1.1754944e-38, %v4599
  %v4601 = vsel %vm4598, %v4600, %v4596
  %v4602 = vmul.f32 %v4577, %v4601
  %v4603 = vmin.f32 %v4602, 1.0
  %v4604 = vmax.f32 %v4603, -1.0
  %v4605 = vmul.f32 %v4316, %v4316
  %v4606 = vmin.f32 16.0, %v4605
  %v4607 = vmul.f32 %v4606, 2.1237322e-06
  %v4608 = vadd.f32 %v4607, 0.00028619796
  %v4609 = vmul.f32 %v4606, %v4608
  %v4610 = vadd.f32 %v4609, 0.0036580483
  %v4611 = vmul.f32 %v4606, %v4610
  %v4612 = vadd.f32 %v4611, 0.05243302
  %v4613 = vmul.f32 %v4606, %v4612
  %v4614 = vadd.f32 %v4613, 0.18741608
  %v4615 = vmul.f32 %v4606, %v4614
  %v4616 = vadd.f32 %v4615, 1.1283791
  %v4617 = vmul.f32 %v4316, %v4616
  %v4618 = vmul.f32 %v4606, 3.8918573e-05
  %v4619 = vadd.f32 %v4618, 0.001143296
  %v4620 = vmul.f32 %v4606, %v4619
  %v4621 = vadd.f32 %v4620, 0.014752088
  %v4622 = vmul.f32 %v4606, %v4621
  %v4623 = vadd.f32 %v4622, 0.112945676
  %v4624 = vmul.f32 %v4606, %v4623
  %v4625 = vadd.f32 %v4624, 0.4994258
  %v4626 = vmul.f32 %v4606, %v4625
  %v4627 = vadd.f32 %v4626, 1.0
  %v4628 = vrcp.pop %v4627
  %v4629 = vmul.f32 %v4627, %v4628
  %v4630 = vsub.f32 1.0, %v4629
  %v4631 = vmul.f32 %v4628, %v4630
  %v4632 = vadd.f32 %v4628, %v4631
  %vm4633 = vweird.f32 %v4627
  %vm4634 = vweird.f32 %v4628
  %vm4635 = vmor %vm4633, %vm4634
  %v4636 = vsel %vm4635, %v4628, %v4632
  %v4637 = vand.u32 2147483647, %v4627
  %vm4638 = vcmp.eq.f32.partialorder %v4637, 8.507059e+37
  %v4639 = vand.u32 %v4627, 2147483648
  %v4640 = vor.u32 1.1754944e-38, %v4639
  %v4641 = vsel %vm4638, %v4640, %v4636
  %v4642 = vmul.f32 %v4617, %v4641
  %v4643 = vmin.f32 %v4642, 1.0
  %v4644 = vmax.f32 %v4643, -1.0
  %v4645 = vmul.f32 %v4317, %v4317
  %v4646 = vmin.f32 16.0, %v4645
  %v4647 = vmul.f32 %v4646, 2.1237322e-06
  %v4648 = vadd.f32 %v4647, 0.00028619796
  %v4649 = vmul.f32 %v4646, %v4648
  %v4650 = vadd.f32 %v4649, 0.0036580483
  %v4651 = vmul.f32 %v4646, %v4650
  %v4652 = vadd.f32 %v4651, 0.05243302
  %v4653 = vmul.f32 %v4646, %v4652
  %v4654 = vadd.f32 %v4653, 0.18741608
  %v4655 = vmul.f32 %v4646, %v4654
  %v4656 = vadd.f32 %v4655, 1.1283791
  %v4657 = vmul.f32 %v4317, %v4656
  %v4658 = vmul.f32 %v4646, 3.8918573e-05
  %v4659 = vadd.f32 %v4658, 0.001143296
  %v4660 = vmul.f32 %v4646, %v4659
  %v4661 = vadd.f32 %v4660, 0.014752088
  %v4662 = vmul.f32 %v4646, %v4661
  %v4663 = vadd.f32 %v4662, 0.112945676
  %v4664 = vmul.f32 %v4646, %v4663
  %v4665 = vadd.f32 %v4664, 0.4994258
  %v4666 = vmul.f32 %v4646, %v4665
  %v4667 = vadd.f32 %v4666, 1.0
  %v4668 = vrcp.pop %v4667
  %v4669 = vmul.f32 %v4667, %v4668
  %v4670 = vsub.f32 1.0, %v4669
  %v4671 = vmul.f32 %v4668, %v4670
  %v4672 = vadd.f32 %v4668, %v4671
  %vm4673 = vweird.f32 %v4667
  %vm4674 = vweird.f32 %v4668
  %vm4675 = vmor %vm4673, %vm4674
  %v4676 = vsel %vm4675, %v4668, %v4672
  %v4677 = vand.u32 2147483647, %v4667
  %vm4678 = vcmp.eq.f32.partialorder %v4677, 8.507059e+37
  %v4679 = vand.u32 %v4667, 2147483648
  %v4680 = vor.u32 1.1754944e-38, %v4679
  %v4681 = vsel %vm4678, %v4680, %v4676
  %v4682 = vmul.f32 %v4657, %v4681
  %v4683 = vmin.f32 %v4682, 1.0
  %v4684 = vmax.f32 %v4683, -1.0
  %v4685 = vmul.f32 %v4318, %v4318
  %v4686 = vmin.f32 16.0, %v4685
  %v4687 = vmul.f32 %v4686, 2.1237322e-06
  %v4688 = vadd.f32 %v4687, 0.00028619796
  %v4689 = vmul.f32 %v4686, %v4688
  %v4690 = vadd.f32 %v4689, 0.0036580483
  %v4691 = vmul.f32 %v4686, %v4690
  %v4692 = vadd.f32 %v4691, 0.05243302
  %v4693 = vmul.f32 %v4686, %v4692
  %v4694 = vadd.f32 %v4693, 0.18741608
  %v4695 = vmul.f32 %v4686, %v4694
  %v4696 = vadd.f32 %v4695, 1.1283791
  %v4697 = vmul.f32 %v4318, %v4696
  %v4698 = vmul.f32 %v4686, 3.8918573e-05
  %v4699 = vadd.f32 %v4698, 0.001143296
  %v4700 = vmul.f32 %v4686, %v4699
  %v4701 = vadd.f32 %v4700, 0.014752088
  %v4702 = vmul.f32 %v4686, %v4701
  %v4703 = vadd.f32 %v4702, 0.112945676
  %v4704 = vmul.f32 %v4686, %v4703
  %v4705 = vadd.f32 %v4704, 0.4994258
  %v4706 = vmul.f32 %v4686, %v4705
  %v4707 = vadd.f32 %v4706, 1.0
  %v4708 = vrcp.pop %v4707
  %v4709 = vmul.f32 %v4707, %v4708
  %v4710 = vsub.f32 1.0, %v4709
  %v4711 = vmul.f32 %v4708, %v4710
  %v4712 = vadd.f32 %v4708, %v4711
  %vm4713 = vweird.f32 %v4707
  %vm4714 = vweird.f32 %v4708
  %vm4715 = vmor %vm4713, %vm4714
  %v4716 = vsel %vm4715, %v4708, %v4712
  %v4717 = vand.u32 2147483647, %v4707
  %vm4718 = vcmp.eq.f32.partialorder %v4717, 8.507059e+37
  %v4719 = vand.u32 %v4707, 2147483648
  %v4720 = vor.u32 1.1754944e-38, %v4719
  %v4721 = vsel %vm4718, %v4720, %v4716
  %v4722 = vmul.f32 %v4697, %v4721
  %v4723 = vmin.f32 %v4722, 1.0
  %v4724 = vmax.f32 %v4723, -1.0
  %v4725 = vmul.f32 %v4319, %v4319
  %v4726 = vmin.f32 16.0, %v4725
  %v4727 = vmul.f32 %v4726, 2.1237322e-06
  %v4728 = vadd.f32 %v4727, 0.00028619796
  %v4729 = vmul.f32 %v4726, %v4728
  %v4730 = vadd.f32 %v4729, 0.0036580483
  %v4731 = vmul.f32 %v4726, %v4730
  %v4732 = vadd.f32 %v4731, 0.05243302
  %v4733 = vmul.f32 %v4726, %v4732
  %v4734 = vadd.f32 %v4733, 0.18741608
  %v4735 = vmul.f32 %v4726, %v4734
  %v4736 = vadd.f32 %v4735, 1.1283791
  %v4737 = vmul.f32 %v4319, %v4736
  %v4738 = vmul.f32 %v4726, 3.8918573e-05
  %v4739 = vadd.f32 %v4738, 0.001143296
  %v4740 = vmul.f32 %v4726, %v4739
  %v4741 = vadd.f32 %v4740, 0.014752088
  %v4742 = vmul.f32 %v4726, %v4741
  %v4743 = vadd.f32 %v4742, 0.112945676
  %v4744 = vmul.f32 %v4726, %v4743
  %v4745 = vadd.f32 %v4744, 0.4994258
  %v4746 = vmul.f32 %v4726, %v4745
  %v4747 = vadd.f32 %v4746, 1.0
  %v4748 = vrcp.pop %v4747
  %v4749 = vmul.f32 %v4747, %v4748
  %v4750 = vsub.f32 1.0, %v4749
  %v4751 = vmul.f32 %v4748, %v4750
  %v4752 = vadd.f32 %v4748, %v4751
  %vm4753 = vweird.f32 %v4747
  %vm4754 = vweird.f32 %v4748
  %vm4755 = vmor %vm4753, %vm4754
  %v4756 = vsel %vm4755, %v4748, %v4752
  %v4757 = vand.u32 2147483647, %v4747
  %vm4758 = vcmp.eq.f32.partialorder %v4757, 8.507059e+37
  %v4759 = vand.u32 %v4747, 2147483648
  %v4760 = vor.u32 1.1754944e-38, %v4759
  %v4761 = vsel %vm4758, %v4760, %v4756
  %v4762 = vmul.f32 %v4737, %v4761
  %v4763 = vmin.f32 %v4762, 1.0
  %v4764 = vmax.f32 %v4763, -1.0
  %v4765 = vmul.f32 %v4320, %v4320
  %v4766 = vmin.f32 16.0, %v4765
  %v4767 = vmul.f32 %v4766, 2.1237322e-06
  %v4768 = vadd.f32 %v4767, 0.00028619796
  %v4769 = vmul.f32 %v4766, %v4768
  %v4770 = vadd.f32 %v4769, 0.0036580483
  %v4771 = vmul.f32 %v4766, %v4770
  %v4772 = vadd.f32 %v4771, 0.05243302
  %v4773 = vmul.f32 %v4766, %v4772
  %v4774 = vadd.f32 %v4773, 0.18741608
  %v4775 = vmul.f32 %v4766, %v4774
  %v4776 = vadd.f32 %v4775, 1.1283791
  %v4777 = vmul.f32 %v4320, %v4776
  %v4778 = vmul.f32 %v4766, 3.8918573e-05
  %v4779 = vadd.f32 %v4778, 0.001143296
  %v4780 = vmul.f32 %v4766, %v4779
  %v4781 = vadd.f32 %v4780, 0.014752088
  %v4782 = vmul.f32 %v4766, %v4781
  %v4783 = vadd.f32 %v4782, 0.112945676
  %v4784 = vmul.f32 %v4766, %v4783
  %v4785 = vadd.f32 %v4784, 0.4994258
  %v4786 = vmul.f32 %v4766, %v4785
  %v4787 = vadd.f32 %v4786, 1.0
  %v4788 = vrcp.pop %v4787
  %v4789 = vmul.f32 %v4787, %v4788
  %v4790 = vsub.f32 1.0, %v4789
  %v4791 = vmul.f32 %v4788, %v4790
  %v4792 = vadd.f32 %v4788, %v4791
  %vm4793 = vweird.f32 %v4787
  %vm4794 = vweird.f32 %v4788
  %vm4795 = vmor %vm4793, %vm4794
  %v4796 = vsel %vm4795, %v4788, %v4792
  %v4797 = vand.u32 2147483647, %v4787
  %vm4798 = vcmp.eq.f32.partialorder %v4797, 8.507059e+37
  %v4799 = vand.u32 %v4787, 2147483648
  %v4800 = vor.u32 1.1754944e-38, %v4799
  %v4801 = vsel %vm4798, %v4800, %v4796
  %v4802 = vmul.f32 %v4777, %v4801
  %v4803 = vmin.f32 %v4802, 1.0
  %v4804 = vmax.f32 %v4803, -1.0
  %v4805 = vmul.f32 %v4321, %v4321
  %v4806 = vmin.f32 16.0, %v4805
  %v4807 = vmul.f32 %v4806, 2.1237322e-06
  %v4808 = vadd.f32 %v4807, 0.00028619796
  %v4809 = vmul.f32 %v4806, %v4808
  %v4810 = vadd.f32 %v4809, 0.0036580483
  %v4811 = vmul.f32 %v4806, %v4810
  %v4812 = vadd.f32 %v4811, 0.05243302
  %v4813 = vmul.f32 %v4806, %v4812
  %v4814 = vadd.f32 %v4813, 0.18741608
  %v4815 = vmul.f32 %v4806, %v4814
  %v4816 = vadd.f32 %v4815, 1.1283791
  %v4817 = vmul.f32 %v4321, %v4816
  %v4818 = vmul.f32 %v4806, 3.8918573e-05
  %v4819 = vadd.f32 %v4818, 0.001143296
  %v4820 = vmul.f32 %v4806, %v4819
  %v4821 = vadd.f32 %v4820, 0.014752088
  %v4822 = vmul.f32 %v4806, %v4821
  %v4823 = vadd.f32 %v4822, 0.112945676
  %v4824 = vmul.f32 %v4806, %v4823
  %v4825 = vadd.f32 %v4824, 0.4994258
  %v4826 = vmul.f32 %v4806, %v4825
  %v4827 = vadd.f32 %v4826, 1.0
  %v4828 = vrcp.pop %v4827
  %v4829 = vmul.f32 %v4827, %v4828
  %v4830 = vsub.f32 1.0, %v4829
  %v4831 = vmul.f32 %v4828, %v4830
  %v4832 = vadd.f32 %v4828, %v4831
  %vm4833 = vweird.f32 %v4827
  %vm4834 = vweird.f32 %v4828
  %vm4835 = vmor %vm4833, %vm4834
  %v4836 = vsel %vm4835, %v4828, %v4832
  %v4837 = vand.u32 2147483647, %v4827
  %vm4838 = vcmp.eq.f32.partialorder %v4837, 8.507059e+37
  %v4839 = vand.u32 %v4827, 2147483648
  %v4840 = vor.u32 1.1754944e-38, %v4839
  %v4841 = vsel %vm4838, %v4840, %v4836
  %v4842 = vmul.f32 %v4817, %v4841
  %v4843 = vmin.f32 %v4842, 1.0
  %v4844 = vmax.f32 %v4843, -1.0
  %v4845 = vmul.f32 %v4322, %v4322
  %v4846 = vmin.f32 16.0, %v4845
  %v4847 = vmul.f32 %v4846, 2.1237322e-06
  %v4848 = vadd.f32 %v4847, 0.00028619796
  %v4849 = vmul.f32 %v4846, %v4848
  %v4850 = vadd.f32 %v4849, 0.0036580483
  %v4851 = vmul.f32 %v4846, %v4850
  %v4852 = vadd.f32 %v4851, 0.05243302
  %v4853 = vmul.f32 %v4846, %v4852
  %v4854 = vadd.f32 %v4853, 0.18741608
  %v4855 = vmul.f32 %v4846, %v4854
  %v4856 = vadd.f32 %v4855, 1.1283791
  %v4857 = vmul.f32 %v4322, %v4856
  %v4858 = vmul.f32 %v4846, 3.8918573e-05
  %v4859 = vadd.f32 %v4858, 0.001143296
  %v4860 = vmul.f32 %v4846, %v4859
  %v4861 = vadd.f32 %v4860, 0.014752088
  %v4862 = vmul.f32 %v4846, %v4861
  %v4863 = vadd.f32 %v4862, 0.112945676
  %v4864 = vmul.f32 %v4846, %v4863
  %v4865 = vadd.f32 %v4864, 0.4994258
  %v4866 = vmul.f32 %v4846, %v4865
  %v4867 = vadd.f32 %v4866, 1.0
  %v4868 = vrcp.pop %v4867
  %v4869 = vmul.f32 %v4867, %v4868
  %v4870 = vsub.f32 1.0, %v4869
  %v4871 = vmul.f32 %v4868, %v4870
  %v4872 = vadd.f32 %v4868, %v4871
  %vm4873 = vweird.f32 %v4867
  %vm4874 = vweird.f32 %v4868
  %vm4875 = vmor %vm4873, %vm4874
  %v4876 = vsel %vm4875, %v4868, %v4872
  %v4877 = vand.u32 2147483647, %v4867
  %vm4878 = vcmp.eq.f32.partialorder %v4877, 8.507059e+37
  %v4879 = vand.u32 %v4867, 2147483648
  %v4880 = vor.u32 1.1754944e-38, %v4879
  %v4881 = vsel %vm4878, %v4880, %v4876
  %v4882 = vmul.f32 %v4857, %v4881
  %v4883 = vmin.f32 %v4882, 1.0
  %v4884 = vmax.f32 %v4883, -1.0
  %v4885 = vmul.f32 %v4323, %v4323
  %v4886 = vmin.f32 16.0, %v4885
  %v4887 = vmul.f32 %v4886, 2.1237322e-06
  %v4888 = vadd.f32 %v4887, 0.00028619796
  %v4889 = vmul.f32 %v4886, %v4888
  %v4890 = vadd.f32 %v4889, 0.0036580483
  %v4891 = vmul.f32 %v4886, %v4890
  %v4892 = vadd.f32 %v4891, 0.05243302
  %v4893 = vmul.f32 %v4886, %v4892
  %v4894 = vadd.f32 %v4893, 0.18741608
  %v4895 = vmul.f32 %v4886, %v4894
  %v4896 = vadd.f32 %v4895, 1.1283791
  %v4897 = vmul.f32 %v4323, %v4896
  %v4898 = vmul.f32 %v4886, 3.8918573e-05
  %v4899 = vadd.f32 %v4898, 0.001143296
  %v4900 = vmul.f32 %v4886, %v4899
  %v4901 = vadd.f32 %v4900, 0.014752088
  %v4902 = vmul.f32 %v4886, %v4901
  %v4903 = vadd.f32 %v4902, 0.112945676
  %v4904 = vmul.f32 %v4886, %v4903
  %v4905 = vadd.f32 %v4904, 0.4994258
  %v4906 = vmul.f32 %v4886, %v4905
  %v4907 = vadd.f32 %v4906, 1.0
  %v4908 = vrcp.pop %v4907
  %v4909 = vmul.f32 %v4907, %v4908
  %v4910 = vsub.f32 1.0, %v4909
  %v4911 = vmul.f32 %v4908, %v4910
  %v4912 = vadd.f32 %v4908, %v4911
  %vm4913 = vweird.f32 %v4907
  %vm4914 = vweird.f32 %v4908
  %vm4915 = vmor %vm4913, %vm4914
  %v4916 = vsel %vm4915, %v4908, %v4912
  %v4917 = vand.u32 2147483647, %v4907
  %vm4918 = vcmp.eq.f32.partialorder %v4917, 8.507059e+37
  %v4919 = vand.u32 %v4907, 2147483648
  %v4920 = vor.u32 1.1754944e-38, %v4919
  %v4921 = vsel %vm4918, %v4920, %v4916
  %v4922 = vmul.f32 %v4897, %v4921
  %v4923 = vmin.f32 %v4922, 1.0
  %v4924 = vmax.f32 %v4923, -1.0
  %v4925 = vmul.f32 %v4324, %v4324
  %v4926 = vmin.f32 16.0, %v4925
  %v4927 = vmul.f32 %v4926, 2.1237322e-06
  %v4928 = vadd.f32 %v4927, 0.00028619796
  %v4929 = vmul.f32 %v4926, %v4928
  %v4930 = vadd.f32 %v4929, 0.0036580483
  %v4931 = vmul.f32 %v4926, %v4930
  %v4932 = vadd.f32 %v4931, 0.05243302
  %v4933 = vmul.f32 %v4926, %v4932
  %v4934 = vadd.f32 %v4933, 0.18741608
  %v4935 = vmul.f32 %v4926, %v4934
  %v4936 = vadd.f32 %v4935, 1.1283791
  %v4937 = vmul.f32 %v4324, %v4936
  %v4938 = vmul.f32 %v4926, 3.8918573e-05
  %v4939 = vadd.f32 %v4938, 0.001143296
  %v4940 = vmul.f32 %v4926, %v4939
  %v4941 = vadd.f32 %v4940, 0.014752088
  %v4942 = vmul.f32 %v4926, %v4941
  %v4943 = vadd.f32 %v4942, 0.112945676
  %v4944 = vmul.f32 %v4926, %v4943
  %v4945 = vadd.f32 %v4944, 0.4994258
  %v4946 = vmul.f32 %v4926, %v4945
  %v4947 = vadd.f32 %v4946, 1.0
  %v4948 = vrcp.pop %v4947
  %v4949 = vmul.f32 %v4947, %v4948
  %v4950 = vsub.f32 1.0, %v4949
  %v4951 = vmul.f32 %v4948, %v4950
  %v4952 = vadd.f32 %v4948, %v4951
  %vm4953 = vweird.f32 %v4947
  %vm4954 = vweird.f32 %v4948
  %vm4955 = vmor %vm4953, %vm4954
  %v4956 = vsel %vm4955, %v4948, %v4952
  %v4957 = vand.u32 2147483647, %v4947
  %vm4958 = vcmp.eq.f32.partialorder %v4957, 8.507059e+37
  %v4959 = vand.u32 %v4947, 2147483648
  %v4960 = vor.u32 1.1754944e-38, %v4959
  %v4961 = vsel %vm4958, %v4960, %v4956
  %v4962 = vmul.f32 %v4937, %v4961
  %v4963 = vmin.f32 %v4962, 1.0
  %v4964 = vmax.f32 %v4963, -1.0
  %v4965 = vadd.f32 %v4364, 1.0
  %v4966 = vadd.f32 %v4404, 1.0
  %v4967 = vadd.f32 %v4444, 1.0
  %v4968 = vadd.f32 %v4484, 1.0
  %v4969 = vadd.f32 %v4524, 1.0
  %v4970 = vadd.f32 %v4564, 1.0
  %v4971 = vadd.f32 %v4604, 1.0
  %v4972 = vadd.f32 %v4644, 1.0
  %v4973 = vadd.f32 %v4684, 1.0
  %v4974 = vadd.f32 %v4724, 1.0
  %v4975 = vadd.f32 %v4764, 1.0
  %v4976 = vadd.f32 %v4804, 1.0
  %v4977 = vadd.f32 %v4844, 1.0
  %v4978 = vadd.f32 %v4884, 1.0
  %v4979 = vadd.f32 %v4924, 1.0
  %v4980 = vadd.f32 %v4964, 1.0
  %v4981 = vmul.f32 %v4293, %v4965
  %v4982 = vmul.f32 %v4294, %v4966
  %v4983 = vmul.f32 %v4295, %v4967
  %v4984 = vmul.f32 %v4296, %v4968
  %v4985 = vmul.f32 %v4297, %v4969
  %v4986 = vmul.f32 %v4298, %v4970
  %v4987 = vmul.f32 %v4299, %v4971
  %v4988 = vmul.f32 %v4300, %v4972
  %v4989 = vmul.f32 %v4301, %v4973
  %v4990 = vmul.f32 %v4302, %v4974
  %v4991 = vmul.f32 %v4303, %v4975
  %v4992 = vmul.f32 %v4304, %v4976
  %v4993 = vmul.f32 %v4305, %v4977
  %v4994 = vmul.f32 %v4306, %v4978
  %v4995 = vmul.f32 %v4307, %v4979
  %v4996 = vmul.f32 %v4308, %v4980
  %v4997 = vpack.c.bf16 %v4982, %v4981
  %v4998 = vpack.c.bf16 %v4984, %v4983
  %v4999 = vpack.c.bf16 %v4986, %v4985
  %v5000 = vpack.c.bf16 %v4988, %v4987
  %v5001 = vpack.c.bf16 %v4990, %v4989
  %v5002 = vpack.c.bf16 %v4992, %v4991
  %v5003 = vpack.c.bf16 %v4994, %v4993
  %v5004 = vpack.c.bf16 %v4996, %v4995
  %v5005 = vld [vmem:[%s6] sm:$0xf]
  %v5006 = vld [vmem:[%s6 + $0x4] sm:$0xf]
  %v5007 = vld [vmem:[%s6 + $0x8] sm:$0xf]
  %v5008 = vld [vmem:[%s6 + $0xc] sm:$0xf]
  %v5009 = vld [vmem:[%s6 + $0x10] sm:$0xf]
  %v5010 = vld [vmem:[%s6 + $0x14] sm:$0xf]
  %v5011 = vld [vmem:[%s6 + $0x18] sm:$0xf]
  %v5012 = vld [vmem:[%s6 + $0x1c] sm:$0xf]
  %v5013 = vld [vmem:[%s6 + $0x20] sm:$0xf]
  %v5014 = vld [vmem:[%s6 + $0x24] sm:$0xf]
  %v5015 = vld [vmem:[%s6 + $0x28] sm:$0xf]
  %v5016 = vld [vmem:[%s6 + $0x2c] sm:$0xf]
  %v5017 = vld [vmem:[%s6 + $0x30] sm:$0xf]
  %v5018 = vld [vmem:[%s6 + $0x34] sm:$0xf]
  %v5019 = vld [vmem:[%s6 + $0x38] sm:$0xf]
  %v5020 = vld [vmem:[%s6 + $0x3c] sm:$0xf]
  %v5021 = vperm.slane %v46, 5
  %v5038 = vunpack.c.l.b16 %v5005
  %v5039 = vunpack.c.l.b16 %v5006
  %v5040 = vunpack.c.l.b16 %v5007
  %v5041 = vunpack.c.l.b16 %v5008
  %v5042 = vunpack.c.l.b16 %v5009
  %v5043 = vunpack.c.l.b16 %v5010
  %v5044 = vunpack.c.l.b16 %v5011
  %v5045 = vunpack.c.l.b16 %v5012
  %v5046 = vunpack.c.l.b16 %v5013
  %v5047 = vunpack.c.l.b16 %v5014
  %v5048 = vunpack.c.l.b16 %v5015
  %v5049 = vunpack.c.l.b16 %v5016
  %v5050 = vunpack.c.l.b16 %v5017
  %v5051 = vunpack.c.l.b16 %v5018
  %v5052 = vunpack.c.l.b16 %v5019
  %v5053 = vunpack.c.l.b16 %v5020
  %v5054 = vpack.c.b16 %v5039, %v5038
  %v5055 = vpack.c.b16 %v5041, %v5040
  %v5056 = vpack.c.b16 %v5043, %v5042
  %v5057 = vpack.c.b16 %v5045, %v5044
  %v5058 = vpack.c.b16 %v5047, %v5046
  %v5059 = vpack.c.b16 %v5049, %v5048
  %v5060 = vpack.c.b16 %v5051, %v5050
  %v5061 = vpack.c.b16 %v5053, %v5052
  %5070 = vmatpush.bf16.msra.mxu0 %v5061
  %5071 = vmatpush.bf16.msra.mxu0 %v5060
  %5072 = vmatpush.bf16.msra.mxu0 %v5059
  %5073 = vmatpush.bf16.msra.mxu0 %v5058
  %5074 = vmatpush.bf16.msra.mxu0 %v5057
  %5075 = vmatpush.bf16.msra.mxu0 %v5056
  %5076 = vmatpush.bf16.msra.mxu0 %v5055
  %5077 = vmatpush.bf16.msra.mxu0 %v5054
  %5078 = vmatmul.bf16.gmra.mxu0 %v4997
  %v5079 = vpop.f32.mrf.mxu0
  %v5080 = vadd.f32 %v5021, %v5079
  %v5081 = vpop.f32.mrf.mxu0
  %v5082 = vadd.f32 %v5021, %v5081
  %5083 = vmatmul.bf16.gmra.mxu0 %v4998
  %v5084 = vpop.f32.mrf.mxu0
  %v5085 = vadd.f32 %v5021, %v5084
  %v5086 = vpop.f32.mrf.mxu0
  %v5087 = vadd.f32 %v5021, %v5086
  %5088 = vmatmul.bf16.gmra.mxu0 %v4999
  %v5089 = vpop.f32.mrf.mxu0
  %v5090 = vadd.f32 %v5021, %v5089
  %v5091 = vpop.f32.mrf.mxu0
  %v5092 = vadd.f32 %v5021, %v5091
  %5093 = vmatmul.bf16.gmra.mxu0 %v5000
  %v5094 = vpop.f32.mrf.mxu0
  %v5095 = vadd.f32 %v5021, %v5094
  %v5096 = vpop.f32.mrf.mxu0
  %v5097 = vadd.f32 %v5021, %v5096
  %5098 = vmatmul.bf16.gmra.mxu0 %v5001
  %v5099 = vpop.f32.mrf.mxu0
  %v5100 = vadd.f32 %v5021, %v5099
  %v5101 = vpop.f32.mrf.mxu0
  %v5102 = vadd.f32 %v5021, %v5101
  %5103 = vmatmul.bf16.gmra.mxu0 %v5002
  %v5104 = vpop.f32.mrf.mxu0
  %v5105 = vadd.f32 %v5021, %v5104
  %v5106 = vpop.f32.mrf.mxu0
  %v5107 = vadd.f32 %v5021, %v5106
  %5108 = vmatmul.bf16.gmra.mxu0 %v5003
  %v5109 = vpop.f32.mrf.mxu0
  %v5110 = vadd.f32 %v5021, %v5109
  %v5111 = vpop.f32.mrf.mxu0
  %v5112 = vadd.f32 %v5021, %v5111
  %5113 = vmatmul.bf16.gmra.mxu0 %v5004
  %v5114 = vpop.f32.mrf.mxu0
  %v5115 = vadd.f32 %v5021, %v5114
  %v5116 = vpop.f32.mrf.mxu0
  %v5117 = vadd.f32 %v5021, %v5116
  %5118 = vdwg.mxu0
  %v5119 = vadd.f32 %v3793, %v5080
  %v5120 = vadd.f32 %v3794, %v5082
  %v5121 = vadd.f32 %v3795, %v5085
  %v5122 = vadd.f32 %v3796, %v5087
  %v5123 = vadd.f32 %v3797, %v5090
  %v5124 = vadd.f32 %v3798, %v5092
  %v5125 = vadd.f32 %v3799, %v5095
  %v5126 = vadd.f32 %v3800, %v5097
  %v5127 = vadd.f32 %v3801, %v5100
  %v5128 = vadd.f32 %v3802, %v5102
  %v5129 = vadd.f32 %v3803, %v5105
  %v5130 = vadd.f32 %v3804, %v5107
  %v5131 = vadd.f32 %v3805, %v5110
  %v5132 = vadd.f32 %v3806, %v5112
  %v5133 = vadd.f32 %v3807, %v5115
  %v5134 = vadd.f32 %v3808, %v5117
  %5135 = vst.msk [vmem:[%s8] sm:$0xff] %vm47, %v5119
  %5136 = vst.msk [vmem:[%s8 + $0x8] sm:$0xff] %vm47, %v5120
  %5137 = vst.msk [vmem:[%s8 + $0x10] sm:$0xff] %vm47, %v5121
  %5138 = vst.msk [vmem:[%s8 + $0x18] sm:$0xff] %vm47, %v5122
  %5139 = vst.msk [vmem:[%s8 + $0x20] sm:$0xff] %vm47, %v5123
  %5140 = vst.msk [vmem:[%s8 + $0x28] sm:$0xff] %vm47, %v5124
  %5141 = vst.msk [vmem:[%s8 + $0x30] sm:$0xff] %vm47, %v5125
  %5142 = vst.msk [vmem:[%s8 + $0x38] sm:$0xff] %vm47, %v5126
  %5143 = vst.msk [vmem:[%s8 + $0x40] sm:$0xff] %vm47, %v5127
  %5144 = vst.msk [vmem:[%s8 + $0x48] sm:$0xff] %vm47, %v5128
  %5145 = vst.msk [vmem:[%s8 + $0x50] sm:$0xff] %vm47, %v5129
  %5146 = vst.msk [vmem:[%s8 + $0x58] sm:$0xff] %vm47, %v5130
  %5147 = vst.msk [vmem:[%s8 + $0x60] sm:$0xff] %vm47, %v5131
  %5148 = vst.msk [vmem:[%s8 + $0x68] sm:$0xff] %vm47, %v5132
  %5149 = vst.msk [vmem:[%s8 + $0x70] sm:$0xff] %vm47, %v5133
  %5150 = vst.msk [vmem:[%s8 + $0x78] sm:$0xff] %vm47, %v5134
  // Predicated region
  $region34: #{cmt_block_forward.1} parent=0 // pred_check
    _
  $region35: #{cmt_block_forward.1} parent=0 // pred_check_branch
    %5152 = sbr.rel (0) target = $region37
  $region36: #{cmt_block_forward.1} parent=0 // pred_region
    _
  $region37: #{cmt_block_forward.1} parent=0 // pred_fallthru
    _
  // Predicated region
  $region38: #{cmt_block_forward.1} parent=0 // pred_check
    _
  $region39: #{cmt_block_forward.1} parent=0 // pred_check_branch
    %5154 = sbr.rel (0) target = $region41
  $region40: #{cmt_block_forward.1} parent=0 // pred_region
    _
  $region41: #{cmt_block_forward.1} parent=0 // pred_fallthru
    _

</llo_original>
